<compile_context>
chip_gen: v7x
topology: tpu7x:2x2x1
jax: 0.10.0
libtpu: 0.0.40
codegen_flags: <defaults>
</compile_context>

<pallas_src>
import functools

import jax
import jax.numpy as jnp
from jax.experimental import pallas as pl
from jax.experimental.pallas import tpu as pltpu


def _round_up(x, m):
    return ((x + m - 1) // m) * m


def _clstm_kernel(x_ref, wih0_ref, b0_ref, whh0_ref, wih1_ref, whh1_ref, b1_ref,
                  h_out_ref, h0_s, c0_s, h1_s, c1_s, *, seq_len, needs_mask):
    """Recurrent part of the 2-layer LSTM for one (batch block, time block).

    x_ref   : (TT, TB, D)  raw input block (matmul dtype, f32 or bf16).
    wih0_ref: (D, 4H)      layer-0 input weights   (matmul dtype).
    b0_ref  : (1, 4H)      layer-0 fused bias (f32).
    whh0_ref: (H, 4H)      layer-0 recurrent weights (matmul dtype).
    wih1_ref: (H, 4H)      layer-1 input weights   (matmul dtype).
    whh1_ref: (H, 4H)      layer-1 recurrent weights (matmul dtype).
    b1_ref  : (1, 4H)      layer-1 fused bias (f32).
    h_out_ref: (TB, H)     last hidden state of layer 1 (written on last time step).
    *_s     : (TB, H) f32  VMEM scratch carrying h/c of both layers across time blocks.

    Gate column order is [i, f, o, g] (pre-permuted in make_params).
    """
    t_blk = pl.program_id(1)
    TT, TB, D = x_ref.shape
    G = wih0_ref.shape[1]
    H = G // 4
    mm_dtype = wih0_ref.dtype

    @pl.when(t_blk == 0)
    def _():
        h0_s[...] = jnp.zeros_like(h0_s)
        c0_s[...] = jnp.zeros_like(c0_s)
        h1_s[...] = jnp.zeros_like(h1_s)
        c1_s[...] = jnp.zeros_like(c1_s)

    # Layer-0 input projection for the whole time block in ONE MXU call;
    # it does not depend on the recurrence carry, so it runs off the serial chain.
    x = x_ref[...].reshape(TT * TB, D)
    xg = jnp.dot(x, wih0_ref[...], preferred_element_type=jnp.float32)
    xg = xg.reshape(TT, TB, G) + b0_ref[...]        # bias folded in once

    # Loop-invariant loads / broadcasts hoisted out of the unrolled time loop.
    whh0 = whh0_ref[...]
    wih1 = wih1_ref[...]
    whh1 = whh1_ref[...]
    b1 = jnp.broadcast_to(b1_ref[...], (TB, G))

    h0 = h0_s[...]
    c0 = c0_s[...]
    h1 = h1_s[...]
    c1 = c1_s[...]

    def activate(gates, c_prev):
        # Gate order [i, f, o, g]: one sigmoid over (TB, 3H), one tanh over (TB, H).
        sig = jax.nn.sigmoid(gates[:, :3 * H])
        g_g = jnp.tanh(gates[:, 3 * H:])
        i_g = sig[:, 0 * H:1 * H]
        f_g = sig[:, 1 * H:2 * H]
        o_g = sig[:, 2 * H:3 * H]
        c_new = f_g * c_prev + i_g * g_g
        h_new = o_g * jnp.tanh(c_new)
        return h_new, c_new

    # Static (fully unrolled) loop over the TT timesteps held in this block.
    # TODO(synk): switch to lax.fori_loop(unroll=2-4) if per-step gate tiles grow
    # beyond ~16 vregs (large TB * 4H) to avoid vreg spills.
    for t in range(TT):
        # Layer 0: single recurrent matmul on the serial chain.
        g0 = xg[t] + jnp.dot(h0.astype(mm_dtype), whh0,
                             preferred_element_type=jnp.float32)
        h0n, c0n = activate(g0, c0)
        # Layer 1: two accumulated dots, no per-step lane concatenation.
        g1 = (jnp.dot(h0n.astype(mm_dtype), wih1, preferred_element_type=jnp.float32)
              + jnp.dot(h1.astype(mm_dtype), whh1, preferred_element_type=jnp.float32)
              + b1)
        h1n, c1n = activate(g1, c1)
        if needs_mask:
            step_valid = (t_blk * TT + t) < seq_len   # mask padded tail steps
            h0 = jnp.where(step_valid, h0n, h0)
            c0 = jnp.where(step_valid, c0n, c0)
            h1 = jnp.where(step_valid, h1n, h1)
            c1 = jnp.where(step_valid, c1n, c1)
        else:
            h0, c0, h1, c1 = h0n, c0n, h1n, c1n

    # Persist state across time blocks.
    h0_s[...] = h0
    c0_s[...] = c0
    h1_s[...] = h1
    c1_s[...] = c1

    @pl.when(t_blk == pl.num_programs(1) - 1)
    def _():
        h_out_ref[...] = h1


def clstm_forward(feats, params, *, matmul_dtype=jnp.float32, max_block_t=32,
                  batch_block=None, vmem_budget_bytes=24 << 20):
    """2-layer LSTM forward; returns h_n[-1] of shape (B, H).

    feats: (T, B, D) float32, time-major like PyTorch nn.LSTM default.
    matmul_dtype: dtype for MXU operands (f32 = exact, bf16 = faster). Carries,
                  biases and activations are always f32.
    batch_block:  optional batch tile (multiple of 8) to split the batch over a
                  leading "parallel" grid axis (megacore / v7x 2-TC sharding).
    """
    # TODO(synk): optional init_hidden (non-zero initial state) is not wired in;
    # the PyTorch default (zeros) is used, matching cLSTM.forward(feats).
    T, B, D = feats.shape
    H = params["whh0"].shape[0]
    G = 4 * H

    # --- batch tiling (f32 sublane alignment); padded rows sliced off at the end.
    TB = _round_up(B if batch_block is None else batch_block, 8)
    B_pad = _round_up(max(B, TB), TB)
    nb = B_pad // TB

    # --- VMEM-budget-aware time block size TT; pad T so the grid divides evenly.
    mm_itemsize = jnp.dtype(matmul_dtype).itemsize
    fixed = (2 * ((D + 3 * H) * G * mm_itemsize + 2 * G * 4)   # weights+biases (x2 buf)
             + 5 * TB * H * 4)                                  # state scratch + out block
    per_t = 2 * TB * D * mm_itemsize                            # double-buffered x block
    tt_budget = max(1, (vmem_budget_bytes - fixed) // max(per_t, 1))
    unroll_cap = max_block_t if TB * G * 4 <= 16 * 4096 else 8  # vreg-pressure guard
    TT = int(max(1, min(T, max_block_t, tt_budget, unroll_cap)))
    T_pad = _round_up(T, TT)
    nt = T_pad // TT
    needs_mask = (T_pad != T)

    x = feats.astype(matmul_dtype)
    if (T_pad != T) or (B_pad != B):
        x = jnp.pad(x, ((0, T_pad - T), (0, B_pad - B), (0, 0)))

    wih0 = params["wih0"].astype(matmul_dtype)
    whh0 = params["whh0"].astype(matmul_dtype)
    wih1 = params["wih1"].astype(matmul_dtype)
    whh1 = params["whh1"].astype(matmul_dtype)
    b0 = params["b0"].astype(jnp.float32)
    b1 = params["b1"].astype(jnp.float32)

    kernel = functools.partial(_clstm_kernel, seq_len=T, needs_mask=needs_mask)

    h_last = pl.pallas_call(
        kernel,
        out_shape=jax.ShapeDtypeStruct((B_pad, H), jnp.float32),
        grid_spec=pltpu.PrefetchScalarGridSpec(
            num_scalar_prefetch=0,
            grid=(nb, nt),                                   # (batch, time) — time inner
            in_specs=[
                pl.BlockSpec((TT, TB, D), lambda b, t: (t, b, 0)),   # x block
                pl.BlockSpec((D, G), lambda b, t: (0, 0)),           # wih0
                pl.BlockSpec((1, G), lambda b, t: (0, 0)),           # b0
                pl.BlockSpec((H, G), lambda b, t: (0, 0)),           # whh0
                pl.BlockSpec((H, G), lambda b, t: (0, 0)),           # wih1
                pl.BlockSpec((H, G), lambda b, t: (0, 0)),           # whh1
                pl.BlockSpec((1, G), lambda b, t: (0, 0)),           # b1
            ],
            out_specs=pl.BlockSpec((TB, H), lambda b, t: (b, 0)),
            scratch_shapes=[pltpu.VMEM((TB, H), jnp.float32)] * 4,
        ),
        compiler_params=pltpu.CompilerParams(
            dimension_semantics=("parallel", "arbitrary"),
            vmem_limit_bytes=32 << 20),
    )(x, wih0, b0, whh0, wih1, whh1, b1)

    return h_last[:B]


def _permute_gates(w):
    """Reorder PyTorch gate blocks [i, f, g, o] -> [i, f, o, g] along axis 0."""
    H = w.shape[0] // 4
    return jnp.concatenate([w[:2 * H], w[3 * H:], w[2 * H:3 * H]], axis=0)


def make_params(key, input_size, hidden_size):
    """PyTorch-style init U(-1/sqrt(H), 1/sqrt(H)); weights are gate-permuted to
    [i, f, o, g] column order and pre-transposed so compute is x @ W (W: (in, 4H))."""
    H = hidden_size
    bound = 1.0 / float(H) ** 0.5
    ks = jax.random.split(key, 8)
    u = lambda k, shape: jax.random.uniform(k, shape, jnp.float32, -bound, bound)

    # PyTorch layouts: weight_ih_l0 (4H, D), weight_hh_l0 (4H, H), biases (4H,)
    wih0 = u(ks[0], (4 * H, input_size))
    whh0 = u(ks[1], (4 * H, H))
    bih0 = u(ks[2], (4 * H,))
    bhh0 = u(ks[3], (4 * H,))
    wih1 = u(ks[4], (4 * H, H))
    whh1 = u(ks[5], (4 * H, H))
    bih1 = u(ks[6], (4 * H,))
    bhh1 = u(ks[7], (4 * H,))

    pb = lambda b: _permute_gates(b.reshape(4 * H, 1)).reshape(1, 4 * H)
    return {
        "wih0": _permute_gates(wih0).T,        # (D, 4H) cols [i,f,o,g]
        "whh0": _permute_gates(whh0).T,        # (H, 4H)
        "b0": pb(bih0 + bhh0),                 # (1, 4H)
        "wih1": _permute_gates(wih1).T,        # (H, 4H)
        "whh1": _permute_gates(whh1).T,        # (H, 4H)
        "b1": pb(bih1 + bhh1),                 # (1, 4H)
    }


def _reference_forward(feats, params):
    """Pure-JAX f32 reference of the same 2-layer LSTM (returns h_n[-1]).
    Uses the same [i, f, o, g] gate-permuted weights, so it is numerically the
    same network as the original PyTorch nn.LSTM with the unpermuted weights."""
    T, B, D = feats.shape
    H = params["whh0"].shape[0]

    def act(g, c):
        i = jax.nn.sigmoid(g[:, 0 * H:1 * H])
        f = jax.nn.sigmoid(g[:, 1 * H:2 * H])
        o = jax.nn.sigmoid(g[:, 2 * H:3 * H])
        gg = jnp.tanh(g[:, 3 * H:4 * H])
        c2 = f * c + i * gg
        return o * jnp.tanh(c2), c2

    h0 = c0 = h1 = c1 = jnp.zeros((B, H), jnp.float32)
    for t in range(T):
        g0 = feats[t] @ params["wih0"] + params["b0"] + h0 @ params["whh0"]
        h0, c0 = act(g0, c0)
        g1 = h0 @ params["wih1"] + h1 @ params["whh1"] + params["b1"]
        h1, c1 = act(g1, c1)
    return h1


if __name__ == "__main__":
    T, B, D, H = 8, 4, 16, 32

    key = jax.random.PRNGKey(0)
    k_feat, k_par = jax.random.split(key)
    feats = jax.random.normal(k_feat, (T, B, D), jnp.float32)
    params = make_params(k_par, D, H)

    # f32 MXU path (exact-precision check against the f32 reference).
    h = jax.block_until_ready(clstm_forward(feats, params))
    h_ref = _reference_forward(feats, params)
    assert h.shape == (B, H)
    assert jnp.allclose(h, h_ref, atol=1e-4, rtol=1e-4)

    # bf16 MXU-operand path (weights / x bf16, carries & activations f32).
    h_bf16 = jax.block_until_ready(
        clstm_forward(feats, params, matmul_dtype=jnp.bfloat16))
    assert jnp.allclose(h_bf16, h_ref, atol=5e-2, rtol=5e-2)

    # Non-divisible (prime-ish) T exercises the padded + masked tail path.
    T2 = 7
    feats2 = jax.random.normal(jax.random.PRNGKey(1), (T2, B, D), jnp.float32)
    h2 = jax.block_until_ready(clstm_forward(feats2, params, max_block_t=4))
    h2_ref = _reference_forward(feats2, params)
    assert jnp.allclose(h2, h2_ref, atol=1e-4, rtol=1e-4)

    print("KERNEL_OK")
</pallas_src>

<mosaic_0001>
module attributes {stable_mosaic.version = 11 : i64} {
  func.func @_clstm_kernel(%arg0: i32, %arg1: i32, %arg2: memref<8x8x16xf32, #tpu.memory_space<vmem>>, %arg3: memref<16x128xf32, #tpu.memory_space<vmem>>, %arg4: memref<1x128xf32, #tpu.memory_space<vmem>>, %arg5: memref<32x128xf32, #tpu.memory_space<vmem>>, %arg6: memref<32x128xf32, #tpu.memory_space<vmem>>, %arg7: memref<32x128xf32, #tpu.memory_space<vmem>>, %arg8: memref<1x128xf32, #tpu.memory_space<vmem>>, %arg9: memref<8x32xf32, #tpu.memory_space<vmem>>, %arg10: memref<8x32xf32, #tpu.memory_space<vmem>>, %arg11: memref<8x32xf32, #tpu.memory_space<vmem>>, %arg12: memref<8x32xf32, #tpu.memory_space<vmem>>, %arg13: memref<8x32xf32, #tpu.memory_space<vmem>>) attributes {dimension_semantics = [#tpu.dimension_semantics<parallel>, #tpu.dimension_semantics<arbitrary>], iteration_bounds = array<i64: 1, 1>, scalar_prefetch = 0 : i64, scratch_operands = 4 : i64, tpu.core_type = #tpu.core_type<tc>, window_params = [{transform_indices = @transform_0, window_bounds = array<i64: 8, 8, 16>}, {pipeline_mode = #tpu.pipeline_mode<synchronous>, transform_indices = @transform_1, window_bounds = array<i64: 16, 128>}, {pipeline_mode = #tpu.pipeline_mode<synchronous>, transform_indices = @transform_2, window_bounds = array<i64: 1, 128>}, {pipeline_mode = #tpu.pipeline_mode<synchronous>, transform_indices = @transform_3, window_bounds = array<i64: 32, 128>}, {pipeline_mode = #tpu.pipeline_mode<synchronous>, transform_indices = @transform_4, window_bounds = array<i64: 32, 128>}, {pipeline_mode = #tpu.pipeline_mode<synchronous>, transform_indices = @transform_5, window_bounds = array<i64: 32, 128>}, {pipeline_mode = #tpu.pipeline_mode<synchronous>, transform_indices = @transform_6, window_bounds = array<i64: 1, 128>}, {transform_indices = @transform_7, window_bounds = array<i64: 8, 32>}]} {
    %c0_i32 = arith.constant 0 : i32
    %0 = arith.cmpi eq, %arg1, %c0_i32 : i32
    %1 = arith.extui %0 : i1 to i32
    %c0_i32_0 = arith.constant 0 : i32
    %2 = arith.cmpi ne, %1, %c0_i32_0 : i32
    scf.if %2 {
      %cst_73 = arith.constant 0.000000e+00 : f32
      %349 = vector.broadcast %cst_73 : f32 to vector<8x32xf32>
      %c0_74 = arith.constant 0 : index
      %c0_75 = arith.constant 0 : index
      %350 = vector.load %arg10[%c0_74, %c0_75] : memref<8x32xf32, #tpu.memory_space<vmem>>, vector<8x32xf32>
      tpu.vector_store %arg10[%c0_74, %c0_75], %349 {strides = array<i32>} : memref<8x32xf32, #tpu.memory_space<vmem>>, vector<8x32xf32>,
      %cst_76 = arith.constant 0.000000e+00 : f32
      %351 = vector.broadcast %cst_76 : f32 to vector<8x32xf32>
      %c0_77 = arith.constant 0 : index
      %c0_78 = arith.constant 0 : index
      %352 = vector.load %arg11[%c0_77, %c0_78] : memref<8x32xf32, #tpu.memory_space<vmem>>, vector<8x32xf32>
      tpu.vector_store %arg11[%c0_77, %c0_78], %351 {strides = array<i32>} : memref<8x32xf32, #tpu.memory_space<vmem>>, vector<8x32xf32>,
      %cst_79 = arith.constant 0.000000e+00 : f32
      %353 = vector.broadcast %cst_79 : f32 to vector<8x32xf32>
      %c0_80 = arith.constant 0 : index
      %c0_81 = arith.constant 0 : index
      %354 = vector.load %arg12[%c0_80, %c0_81] : memref<8x32xf32, #tpu.memory_space<vmem>>, vector<8x32xf32>
      tpu.vector_store %arg12[%c0_80, %c0_81], %353 {strides = array<i32>} : memref<8x32xf32, #tpu.memory_space<vmem>>, vector<8x32xf32>,
      %cst_82 = arith.constant 0.000000e+00 : f32
      %355 = vector.broadcast %cst_82 : f32 to vector<8x32xf32>
      %c0_83 = arith.constant 0 : index
      %c0_84 = arith.constant 0 : index
      %356 = vector.load %arg13[%c0_83, %c0_84] : memref<8x32xf32, #tpu.memory_space<vmem>>, vector<8x32xf32>
      tpu.vector_store %arg13[%c0_83, %c0_84], %355 {strides = array<i32>} : memref<8x32xf32, #tpu.memory_space<vmem>>, vector<8x32xf32>,
    } else {
    }
    %c0 = arith.constant 0 : index
    %c0_1 = arith.constant 0 : index
    %c0_2 = arith.constant 0 : index
    %3 = vector.load %arg2[%c0, %c0_1, %c0_2] : memref<8x8x16xf32, #tpu.memory_space<vmem>>, vector<8x8x16xf32>
    %4 = vector.shape_cast %3 : vector<8x8x16xf32> to vector<64x16xf32>
    %c0_3 = arith.constant 0 : index
    %c0_4 = arith.constant 0 : index
    %5 = vector.load %arg3[%c0_3, %c0_4] : memref<16x128xf32, #tpu.memory_space<vmem>>, vector<16x128xf32>
    %cst = arith.constant dense<0.000000e+00> : vector<64x128xf32>
    %6 = tpu.matmul %4, %5, %cst {dimension_numbers = #tpu.dot_dimension_numbers<[1], [0], [0], [1], [0, 0, 1, 1], [], []>} : vector<64x16xf32>, vector<16x128xf32>, vector<64x128xf32> -> vector<64x128xf32>
    %7 = vector.shape_cast %6 : vector<64x128xf32> to vector<8x8x128xf32>
    %c0_5 = arith.constant 0 : index
    %c0_6 = arith.constant 0 : index
    %8 = vector.load %arg4[%c0_5, %c0_6] : memref<1x128xf32, #tpu.memory_space<vmem>>, vector<1x128xf32>
    %9 = vector.shape_cast %8 : vector<1x128xf32> to vector<1x1x128xf32>
    %10 = vector.broadcast %9 : vector<1x1x128xf32> to vector<8x8x128xf32>
    %11 = arith.addf %7, %10 : vector<8x8x128xf32>
    %c0_7 = arith.constant 0 : index
    %c0_8 = arith.constant 0 : index
    %12 = vector.load %arg5[%c0_7, %c0_8] : memref<32x128xf32, #tpu.memory_space<vmem>>, vector<32x128xf32>
    %c0_9 = arith.constant 0 : index
    %c0_10 = arith.constant 0 : index
    %13 = vector.load %arg6[%c0_9, %c0_10] : memref<32x128xf32, #tpu.memory_space<vmem>>, vector<32x128xf32>
    %c0_11 = arith.constant 0 : index
    %c0_12 = arith.constant 0 : index
    %14 = vector.load %arg7[%c0_11, %c0_12] : memref<32x128xf32, #tpu.memory_space<vmem>>, vector<32x128xf32>
    %c0_13 = arith.constant 0 : index
    %c0_14 = arith.constant 0 : index
    %15 = vector.load %arg8[%c0_13, %c0_14] : memref<1x128xf32, #tpu.memory_space<vmem>>, vector<1x128xf32>
    %16 = vector.shape_cast %15 : vector<1x128xf32> to vector<1x128xf32>
    %17 = vector.broadcast %16 : vector<1x128xf32> to vector<8x128xf32>
    %c0_15 = arith.constant 0 : index
    %c0_16 = arith.constant 0 : index
    %18 = vector.load %arg10[%c0_15, %c0_16] : memref<8x32xf32, #tpu.memory_space<vmem>>, vector<8x32xf32>
    %c0_17 = arith.constant 0 : index
    %c0_18 = arith.constant 0 : index
    %19 = vector.load %arg11[%c0_17, %c0_18] : memref<8x32xf32, #tpu.memory_space<vmem>>, vector<8x32xf32>
    %c0_19 = arith.constant 0 : index
    %c0_20 = arith.constant 0 : index
    %20 = vector.load %arg12[%c0_19, %c0_20] : memref<8x32xf32, #tpu.memory_space<vmem>>, vector<8x32xf32>
    %c0_21 = arith.constant 0 : index
    %c0_22 = arith.constant 0 : index
    %21 = vector.load %arg13[%c0_21, %c0_22] : memref<8x32xf32, #tpu.memory_space<vmem>>, vector<8x32xf32>
    %22 = vector.extract_strided_slice %11 {offsets = [0, 0, 0], sizes = [1, 8, 128], strides = [1, 1, 1]} : vector<8x8x128xf32> to vector<1x8x128xf32>
    %23 = vector.shape_cast %22 : vector<1x8x128xf32> to vector<8x128xf32>
    %cst_23 = arith.constant dense<0.000000e+00> : vector<8x128xf32>
    %24 = tpu.matmul %18, %12, %cst_23 {dimension_numbers = #tpu.dot_dimension_numbers<[1], [0], [0], [1], [0, 0, 1, 1], [], []>} : vector<8x32xf32>, vector<32x128xf32>, vector<8x128xf32> -> vector<8x128xf32>
    %25 = arith.addf %23, %24 : vector<8x128xf32>
    %26 = vector.extract_strided_slice %25 {offsets = [0, 0], sizes = [8, 96], strides = [1, 1]} : vector<8x128xf32> to vector<8x96xf32>
    %27 = arith.negf %26 : vector<8x96xf32>
    %28 = math.exp %27 : vector<8x96xf32>
    %cst_24 = arith.constant 1.000000e+00 : f32
    %29 = vector.broadcast %cst_24 : f32 to vector<8x96xf32>
    %30 = arith.addf %29, %28 : vector<8x96xf32>
    %31 = arith.divf %29, %30 : vector<8x96xf32>
    %32 = vector.extract_strided_slice %25 {offsets = [0, 96], sizes = [8, 32], strides = [1, 1]} : vector<8x128xf32> to vector<8x32xf32>
    %33 = math.tanh %32 : vector<8x32xf32>
    %34 = vector.extract_strided_slice %31 {offsets = [0, 0], sizes = [8, 32], strides = [1, 1]} : vector<8x96xf32> to vector<8x32xf32>
    %35 = vector.extract_strided_slice %31 {offsets = [0, 32], sizes = [8, 32], strides = [1, 1]} : vector<8x96xf32> to vector<8x32xf32>
    %36 = vector.extract_strided_slice %31 {offsets = [0, 64], sizes = [8, 32], strides = [1, 1]} : vector<8x96xf32> to vector<8x32xf32>
    %37 = arith.mulf %35, %19 : vector<8x32xf32>
    %38 = arith.mulf %34, %33 : vector<8x32xf32>
    %39 = arith.addf %37, %38 : vector<8x32xf32>
    %40 = math.tanh %39 : vector<8x32xf32>
    %41 = arith.mulf %36, %40 : vector<8x32xf32>
    %cst_25 = arith.constant dense<0.000000e+00> : vector<8x128xf32>
    %42 = tpu.matmul %41, %13, %cst_25 {dimension_numbers = #tpu.dot_dimension_numbers<[1], [0], [0], [1], [0, 0, 1, 1], [], []>} : vector<8x32xf32>, vector<32x128xf32>, vector<8x128xf32> -> vector<8x128xf32>
    %cst_26 = arith.constant dense<0.000000e+00> : vector<8x128xf32>
    %43 = tpu.matmul %20, %14, %cst_26 {dimension_numbers = #tpu.dot_dimension_numbers<[1], [0], [0], [1], [0, 0, 1, 1], [], []>} : vector<8x32xf32>, vector<32x128xf32>, vector<8x128xf32> -> vector<8x128xf32>
    %44 = arith.addf %42, %43 : vector<8x128xf32>
    %45 = arith.addf %44, %17 : vector<8x128xf32>
    %46 = vector.extract_strided_slice %45 {offsets = [0, 0], sizes = [8, 96], strides = [1, 1]} : vector<8x128xf32> to vector<8x96xf32>
    %47 = arith.negf %46 : vector<8x96xf32>
    %48 = math.exp %47 : vector<8x96xf32>
    %cst_27 = arith.constant 1.000000e+00 : f32
    %49 = vector.broadcast %cst_27 : f32 to vector<8x96xf32>
    %50 = arith.addf %49, %48 : vector<8x96xf32>
    %51 = arith.divf %49, %50 : vector<8x96xf32>
    %52 = vector.extract_strided_slice %45 {offsets = [0, 96], sizes = [8, 32], strides = [1, 1]} : vector<8x128xf32> to vector<8x32xf32>
    %53 = math.tanh %52 : vector<8x32xf32>
    %54 = vector.extract_strided_slice %51 {offsets = [0, 0], sizes = [8, 32], strides = [1, 1]} : vector<8x96xf32> to vector<8x32xf32>
    %55 = vector.extract_strided_slice %51 {offsets = [0, 32], sizes = [8, 32], strides = [1, 1]} : vector<8x96xf32> to vector<8x32xf32>
    %56 = vector.extract_strided_slice %51 {offsets = [0, 64], sizes = [8, 32], strides = [1, 1]} : vector<8x96xf32> to vector<8x32xf32>
    %57 = arith.mulf %55, %21 : vector<8x32xf32>
    %58 = arith.mulf %54, %53 : vector<8x32xf32>
    %59 = arith.addf %57, %58 : vector<8x32xf32>
    %60 = math.tanh %59 : vector<8x32xf32>
    %61 = arith.mulf %56, %60 : vector<8x32xf32>
    %62 = vector.extract_strided_slice %11 {offsets = [1, 0, 0], sizes = [1, 8, 128], strides = [1, 1, 1]} : vector<8x8x128xf32> to vector<1x8x128xf32>
    %63 = vector.shape_cast %62 : vector<1x8x128xf32> to vector<8x128xf32>
    %cst_28 = arith.constant dense<0.000000e+00> : vector<8x128xf32>
    %64 = tpu.matmul %41, %12, %cst_28 {dimension_numbers = #tpu.dot_dimension_numbers<[1], [0], [0], [1], [0, 0, 1, 1], [], []>} : vector<8x32xf32>, vector<32x128xf32>, vector<8x128xf32> -> vector<8x128xf32>
    %65 = arith.addf %63, %64 : vector<8x128xf32>
    %66 = vector.extract_strided_slice %65 {offsets = [0, 0], sizes = [8, 96], strides = [1, 1]} : vector<8x128xf32> to vector<8x96xf32>
    %67 = arith.negf %66 : vector<8x96xf32>
    %68 = math.exp %67 : vector<8x96xf32>
    %cst_29 = arith.constant 1.000000e+00 : f32
    %69 = vector.broadcast %cst_29 : f32 to vector<8x96xf32>
    %70 = arith.addf %69, %68 : vector<8x96xf32>
    %71 = arith.divf %69, %70 : vector<8x96xf32>
    %72 = vector.extract_strided_slice %65 {offsets = [0, 96], sizes = [8, 32], strides = [1, 1]} : vector<8x128xf32> to vector<8x32xf32>
    %73 = math.tanh %72 : vector<8x32xf32>
    %74 = vector.extract_strided_slice %71 {offsets = [0, 0], sizes = [8, 32], strides = [1, 1]} : vector<8x96xf32> to vector<8x32xf32>
    %75 = vector.extract_strided_slice %71 {offsets = [0, 32], sizes = [8, 32], strides = [1, 1]} : vector<8x96xf32> to vector<8x32xf32>
    %76 = vector.extract_strided_slice %71 {offsets = [0, 64], sizes = [8, 32], strides = [1, 1]} : vector<8x96xf32> to vector<8x32xf32>
    %77 = arith.mulf %75, %39 : vector<8x32xf32>
    %78 = arith.mulf %74, %73 : vector<8x32xf32>
    %79 = arith.addf %77, %78 : vector<8x32xf32>
    %80 = math.tanh %79 : vector<8x32xf32>
    %81 = arith.mulf %76, %80 : vector<8x32xf32>
    %cst_30 = arith.constant dense<0.000000e+00> : vector<8x128xf32>
    %82 = tpu.matmul %81, %13, %cst_30 {dimension_numbers = #tpu.dot_dimension_numbers<[1], [0], [0], [1], [0, 0, 1, 1], [], []>} : vector<8x32xf32>, vector<32x128xf32>, vector<8x128xf32> -> vector<8x128xf32>
    %cst_31 = arith.constant dense<0.000000e+00> : vector<8x128xf32>
    %83 = tpu.matmul %61, %14, %cst_31 {dimension_numbers = #tpu.dot_dimension_numbers<[1], [0], [0], [1], [0, 0, 1, 1], [], []>} : vector<8x32xf32>, vector<32x128xf32>, vector<8x128xf32> -> vector<8x128xf32>
    %84 = arith.addf %82, %83 : vector<8x128xf32>
    %85 = arith.addf %84, %17 : vector<8x128xf32>
    %86 = vector.extract_strided_slice %85 {offsets = [0, 0], sizes = [8, 96], strides = [1, 1]} : vector<8x128xf32> to vector<8x96xf32>
    %87 = arith.negf %86 : vector<8x96xf32>
    %88 = math.exp %87 : vector<8x96xf32>
    %cst_32 = arith.constant 1.000000e+00 : f32
    %89 = vector.broadcast %cst_32 : f32 to vector<8x96xf32>
    %90 = arith.addf %89, %88 : vector<8x96xf32>
    %91 = arith.divf %89, %90 : vector<8x96xf32>
    %92 = vector.extract_strided_slice %85 {offsets = [0, 96], sizes = [8, 32], strides = [1, 1]} : vector<8x128xf32> to vector<8x32xf32>
    %93 = math.tanh %92 : vector<8x32xf32>
    %94 = vector.extract_strided_slice %91 {offsets = [0, 0], sizes = [8, 32], strides = [1, 1]} : vector<8x96xf32> to vector<8x32xf32>
    %95 = vector.extract_strided_slice %91 {offsets = [0, 32], sizes = [8, 32], strides = [1, 1]} : vector<8x96xf32> to vector<8x32xf32>
    %96 = vector.extract_strided_slice %91 {offsets = [0, 64], sizes = [8, 32], strides = [1, 1]} : vector<8x96xf32> to vector<8x32xf32>
    %97 = arith.mulf %95, %59 : vector<8x32xf32>
    %98 = arith.mulf %94, %93 : vector<8x32xf32>
    %99 = arith.addf %97, %98 : vector<8x32xf32>
    %100 = math.tanh %99 : vector<8x32xf32>
    %101 = arith.mulf %96, %100 : vector<8x32xf32>
    %102 = vector.extract_strided_slice %11 {offsets = [2, 0, 0], sizes = [1, 8, 128], strides = [1, 1, 1]} : vector<8x8x128xf32> to vector<1x8x128xf32>
    %103 = vector.shape_cast %102 : vector<1x8x128xf32> to vector<8x128xf32>
    %cst_33 = arith.constant dense<0.000000e+00> : vector<8x128xf32>
    %104 = tpu.matmul %81, %12, %cst_33 {dimension_numbers = #tpu.dot_dimension_numbers<[1], [0], [0], [1], [0, 0, 1, 1], [], []>} : vector<8x32xf32>, vector<32x128xf32>, vector<8x128xf32> -> vector<8x128xf32>
    %105 = arith.addf %103, %104 : vector<8x128xf32>
    %106 = vector.extract_strided_slice %105 {offsets = [0, 0], sizes = [8, 96], strides = [1, 1]} : vector<8x128xf32> to vector<8x96xf32>
    %107 = arith.negf %106 : vector<8x96xf32>
    %108 = math.exp %107 : vector<8x96xf32>
    %cst_34 = arith.constant 1.000000e+00 : f32
    %109 = vector.broadcast %cst_34 : f32 to vector<8x96xf32>
    %110 = arith.addf %109, %108 : vector<8x96xf32>
    %111 = arith.divf %109, %110 : vector<8x96xf32>
    %112 = vector.extract_strided_slice %105 {offsets = [0, 96], sizes = [8, 32], strides = [1, 1]} : vector<8x128xf32> to vector<8x32xf32>
    %113 = math.tanh %112 : vector<8x32xf32>
    %114 = vector.extract_strided_slice %111 {offsets = [0, 0], sizes = [8, 32], strides = [1, 1]} : vector<8x96xf32> to vector<8x32xf32>
    %115 = vector.extract_strided_slice %111 {offsets = [0, 32], sizes = [8, 32], strides = [1, 1]} : vector<8x96xf32> to vector<8x32xf32>
    %116 = vector.extract_strided_slice %111 {offsets = [0, 64], sizes = [8, 32], strides = [1, 1]} : vector<8x96xf32> to vector<8x32xf32>
    %117 = arith.mulf %115, %79 : vector<8x32xf32>
    %118 = arith.mulf %114, %113 : vector<8x32xf32>
    %119 = arith.addf %117, %118 : vector<8x32xf32>
    %120 = math.tanh %119 : vector<8x32xf32>
    %121 = arith.mulf %116, %120 : vector<8x32xf32>
    %cst_35 = arith.constant dense<0.000000e+00> : vector<8x128xf32>
    %122 = tpu.matmul %121, %13, %cst_35 {dimension_numbers = #tpu.dot_dimension_numbers<[1], [0], [0], [1], [0, 0, 1, 1], [], []>} : vector<8x32xf32>, vector<32x128xf32>, vector<8x128xf32> -> vector<8x128xf32>
    %cst_36 = arith.constant dense<0.000000e+00> : vector<8x128xf32>
    %123 = tpu.matmul %101, %14, %cst_36 {dimension_numbers = #tpu.dot_dimension_numbers<[1], [0], [0], [1], [0, 0, 1, 1], [], []>} : vector<8x32xf32>, vector<32x128xf32>, vector<8x128xf32> -> vector<8x128xf32>
    %124 = arith.addf %122, %123 : vector<8x128xf32>
    %125 = arith.addf %124, %17 : vector<8x128xf32>
    %126 = vector.extract_strided_slice %125 {offsets = [0, 0], sizes = [8, 96], strides = [1, 1]} : vector<8x128xf32> to vector<8x96xf32>
    %127 = arith.negf %126 : vector<8x96xf32>
    %128 = math.exp %127 : vector<8x96xf32>
    %cst_37 = arith.constant 1.000000e+00 : f32
    %129 = vector.broadcast %cst_37 : f32 to vector<8x96xf32>
    %130 = arith.addf %129, %128 : vector<8x96xf32>
    %131 = arith.divf %129, %130 : vector<8x96xf32>
    %132 = vector.extract_strided_slice %125 {offsets = [0, 96], sizes = [8, 32], strides = [1, 1]} : vector<8x128xf32> to vector<8x32xf32>
    %133 = math.tanh %132 : vector<8x32xf32>
    %134 = vector.extract_strided_slice %131 {offsets = [0, 0], sizes = [8, 32], strides = [1, 1]} : vector<8x96xf32> to vector<8x32xf32>
    %135 = vector.extract_strided_slice %131 {offsets = [0, 32], sizes = [8, 32], strides = [1, 1]} : vector<8x96xf32> to vector<8x32xf32>
    %136 = vector.extract_strided_slice %131 {offsets = [0, 64], sizes = [8, 32], strides = [1, 1]} : vector<8x96xf32> to vector<8x32xf32>
    %137 = arith.mulf %135, %99 : vector<8x32xf32>
    %138 = arith.mulf %134, %133 : vector<8x32xf32>
    %139 = arith.addf %137, %138 : vector<8x32xf32>
    %140 = math.tanh %139 : vector<8x32xf32>
    %141 = arith.mulf %136, %140 : vector<8x32xf32>
    %142 = vector.extract_strided_slice %11 {offsets = [3, 0, 0], sizes = [1, 8, 128], strides = [1, 1, 1]} : vector<8x8x128xf32> to vector<1x8x128xf32>
    %143 = vector.shape_cast %142 : vector<1x8x128xf32> to vector<8x128xf32>
    %cst_38 = arith.constant dense<0.000000e+00> : vector<8x128xf32>
    %144 = tpu.matmul %121, %12, %cst_38 {dimension_numbers = #tpu.dot_dimension_numbers<[1], [0], [0], [1], [0, 0, 1, 1], [], []>} : vector<8x32xf32>, vector<32x128xf32>, vector<8x128xf32> -> vector<8x128xf32>
    %145 = arith.addf %143, %144 : vector<8x128xf32>
    %146 = vector.extract_strided_slice %145 {offsets = [0, 0], sizes = [8, 96], strides = [1, 1]} : vector<8x128xf32> to vector<8x96xf32>
    %147 = arith.negf %146 : vector<8x96xf32>
    %148 = math.exp %147 : vector<8x96xf32>
    %cst_39 = arith.constant 1.000000e+00 : f32
    %149 = vector.broadcast %cst_39 : f32 to vector<8x96xf32>
    %150 = arith.addf %149, %148 : vector<8x96xf32>
    %151 = arith.divf %149, %150 : vector<8x96xf32>
    %152 = vector.extract_strided_slice %145 {offsets = [0, 96], sizes = [8, 32], strides = [1, 1]} : vector<8x128xf32> to vector<8x32xf32>
    %153 = math.tanh %152 : vector<8x32xf32>
    %154 = vector.extract_strided_slice %151 {offsets = [0, 0], sizes = [8, 32], strides = [1, 1]} : vector<8x96xf32> to vector<8x32xf32>
    %155 = vector.extract_strided_slice %151 {offsets = [0, 32], sizes = [8, 32], strides = [1, 1]} : vector<8x96xf32> to vector<8x32xf32>
    %156 = vector.extract_strided_slice %151 {offsets = [0, 64], sizes = [8, 32], strides = [1, 1]} : vector<8x96xf32> to vector<8x32xf32>
    %157 = arith.mulf %155, %119 : vector<8x32xf32>
    %158 = arith.mulf %154, %153 : vector<8x32xf32>
    %159 = arith.addf %157, %158 : vector<8x32xf32>
    %160 = math.tanh %159 : vector<8x32xf32>
    %161 = arith.mulf %156, %160 : vector<8x32xf32>
    %cst_40 = arith.constant dense<0.000000e+00> : vector<8x128xf32>
    %162 = tpu.matmul %161, %13, %cst_40 {dimension_numbers = #tpu.dot_dimension_numbers<[1], [0], [0], [1], [0, 0, 1, 1], [], []>} : vector<8x32xf32>, vector<32x128xf32>, vector<8x128xf32> -> vector<8x128xf32>
    %cst_41 = arith.constant dense<0.000000e+00> : vector<8x128xf32>
    %163 = tpu.matmul %141, %14, %cst_41 {dimension_numbers = #tpu.dot_dimension_numbers<[1], [0], [0], [1], [0, 0, 1, 1], [], []>} : vector<8x32xf32>, vector<32x128xf32>, vector<8x128xf32> -> vector<8x128xf32>
    %164 = arith.addf %162, %163 : vector<8x128xf32>
    %165 = arith.addf %164, %17 : vector<8x128xf32>
    %166 = vector.extract_strided_slice %165 {offsets = [0, 0], sizes = [8, 96], strides = [1, 1]} : vector<8x128xf32> to vector<8x96xf32>
    %167 = arith.negf %166 : vector<8x96xf32>
    %168 = math.exp %167 : vector<8x96xf32>
    %cst_42 = arith.constant 1.000000e+00 : f32
    %169 = vector.broadcast %cst_42 : f32 to vector<8x96xf32>
    %170 = arith.addf %169, %168 : vector<8x96xf32>
    %171 = arith.divf %169, %170 : vector<8x96xf32>
    %172 = vector.extract_strided_slice %165 {offsets = [0, 96], sizes = [8, 32], strides = [1, 1]} : vector<8x128xf32> to vector<8x32xf32>
    %173 = math.tanh %172 : vector<8x32xf32>
    %174 = vector.extract_strided_slice %171 {offsets = [0, 0], sizes = [8, 32], strides = [1, 1]} : vector<8x96xf32> to vector<8x32xf32>
    %175 = vector.extract_strided_slice %171 {offsets = [0, 32], sizes = [8, 32], strides = [1, 1]} : vector<8x96xf32> to vector<8x32xf32>
    %176 = vector.extract_strided_slice %171 {offsets = [0, 64], sizes = [8, 32], strides = [1, 1]} : vector<8x96xf32> to vector<8x32xf32>
    %177 = arith.mulf %175, %139 : vector<8x32xf32>
    %178 = arith.mulf %174, %173 : vector<8x32xf32>
    %179 = arith.addf %177, %178 : vector<8x32xf32>
    %180 = math.tanh %179 : vector<8x32xf32>
    %181 = arith.mulf %176, %180 : vector<8x32xf32>
    %182 = vector.extract_strided_slice %11 {offsets = [4, 0, 0], sizes = [1, 8, 128], strides = [1, 1, 1]} : vector<8x8x128xf32> to vector<1x8x128xf32>
    %183 = vector.shape_cast %182 : vector<1x8x128xf32> to vector<8x128xf32>
    %cst_43 = arith.constant dense<0.000000e+00> : vector<8x128xf32>
    %184 = tpu.matmul %161, %12, %cst_43 {dimension_numbers = #tpu.dot_dimension_numbers<[1], [0], [0], [1], [0, 0, 1, 1], [], []>} : vector<8x32xf32>, vector<32x128xf32>, vector<8x128xf32> -> vector<8x128xf32>
    %185 = arith.addf %183, %184 : vector<8x128xf32>
    %186 = vector.extract_strided_slice %185 {offsets = [0, 0], sizes = [8, 96], strides = [1, 1]} : vector<8x128xf32> to vector<8x96xf32>
    %187 = arith.negf %186 : vector<8x96xf32>
    %188 = math.exp %187 : vector<8x96xf32>
    %cst_44 = arith.constant 1.000000e+00 : f32
    %189 = vector.broadcast %cst_44 : f32 to vector<8x96xf32>
    %190 = arith.addf %189, %188 : vector<8x96xf32>
    %191 = arith.divf %189, %190 : vector<8x96xf32>
    %192 = vector.extract_strided_slice %185 {offsets = [0, 96], sizes = [8, 32], strides = [1, 1]} : vector<8x128xf32> to vector<8x32xf32>
    %193 = math.tanh %192 : vector<8x32xf32>
    %194 = vector.extract_strided_slice %191 {offsets = [0, 0], sizes = [8, 32], strides = [1, 1]} : vector<8x96xf32> to vector<8x32xf32>
    %195 = vector.extract_strided_slice %191 {offsets = [0, 32], sizes = [8, 32], strides = [1, 1]} : vector<8x96xf32> to vector<8x32xf32>
    %196 = vector.extract_strided_slice %191 {offsets = [0, 64], sizes = [8, 32], strides = [1, 1]} : vector<8x96xf32> to vector<8x32xf32>
    %197 = arith.mulf %195, %159 : vector<8x32xf32>
    %198 = arith.mulf %194, %193 : vector<8x32xf32>
    %199 = arith.addf %197, %198 : vector<8x32xf32>
    %200 = math.tanh %199 : vector<8x32xf32>
    %201 = arith.mulf %196, %200 : vector<8x32xf32>
    %cst_45 = arith.constant dense<0.000000e+00> : vector<8x128xf32>
    %202 = tpu.matmul %201, %13, %cst_45 {dimension_numbers = #tpu.dot_dimension_numbers<[1], [0], [0], [1], [0, 0, 1, 1], [], []>} : vector<8x32xf32>, vector<32x128xf32>, vector<8x128xf32> -> vector<8x128xf32>
    %cst_46 = arith.constant dense<0.000000e+00> : vector<8x128xf32>
    %203 = tpu.matmul %181, %14, %cst_46 {dimension_numbers = #tpu.dot_dimension_numbers<[1], [0], [0], [1], [0, 0, 1, 1], [], []>} : vector<8x32xf32>, vector<32x128xf32>, vector<8x128xf32> -> vector<8x128xf32>
    %204 = arith.addf %202, %203 : vector<8x128xf32>
    %205 = arith.addf %204, %17 : vector<8x128xf32>
    %206 = vector.extract_strided_slice %205 {offsets = [0, 0], sizes = [8, 96], strides = [1, 1]} : vector<8x128xf32> to vector<8x96xf32>
    %207 = arith.negf %206 : vector<8x96xf32>
    %208 = math.exp %207 : vector<8x96xf32>
    %cst_47 = arith.constant 1.000000e+00 : f32
    %209 = vector.broadcast %cst_47 : f32 to vector<8x96xf32>
    %210 = arith.addf %209, %208 : vector<8x96xf32>
    %211 = arith.divf %209, %210 : vector<8x96xf32>
    %212 = vector.extract_strided_slice %205 {offsets = [0, 96], sizes = [8, 32], strides = [1, 1]} : vector<8x128xf32> to vector<8x32xf32>
    %213 = math.tanh %212 : vector<8x32xf32>
    %214 = vector.extract_strided_slice %211 {offsets = [0, 0], sizes = [8, 32], strides = [1, 1]} : vector<8x96xf32> to vector<8x32xf32>
    %215 = vector.extract_strided_slice %211 {offsets = [0, 32], sizes = [8, 32], strides = [1, 1]} : vector<8x96xf32> to vector<8x32xf32>
    %216 = vector.extract_strided_slice %211 {offsets = [0, 64], sizes = [8, 32], strides = [1, 1]} : vector<8x96xf32> to vector<8x32xf32>
    %217 = arith.mulf %215, %179 : vector<8x32xf32>
    %218 = arith.mulf %214, %213 : vector<8x32xf32>
    %219 = arith.addf %217, %218 : vector<8x32xf32>
    %220 = math.tanh %219 : vector<8x32xf32>
    %221 = arith.mulf %216, %220 : vector<8x32xf32>
    %222 = vector.extract_strided_slice %11 {offsets = [5, 0, 0], sizes = [1, 8, 128], strides = [1, 1, 1]} : vector<8x8x128xf32> to vector<1x8x128xf32>
    %223 = vector.shape_cast %222 : vector<1x8x128xf32> to vector<8x128xf32>
    %cst_48 = arith.constant dense<0.000000e+00> : vector<8x128xf32>
    %224 = tpu.matmul %201, %12, %cst_48 {dimension_numbers = #tpu.dot_dimension_numbers<[1], [0], [0], [1], [0, 0, 1, 1], [], []>} : vector<8x32xf32>, vector<32x128xf32>, vector<8x128xf32> -> vector<8x128xf32>
    %225 = arith.addf %223, %224 : vector<8x128xf32>
    %226 = vector.extract_strided_slice %225 {offsets = [0, 0], sizes = [8, 96], strides = [1, 1]} : vector<8x128xf32> to vector<8x96xf32>
    %227 = arith.negf %226 : vector<8x96xf32>
    %228 = math.exp %227 : vector<8x96xf32>
    %cst_49 = arith.constant 1.000000e+00 : f32
    %229 = vector.broadcast %cst_49 : f32 to vector<8x96xf32>
    %230 = arith.addf %229, %228 : vector<8x96xf32>
    %231 = arith.divf %229, %230 : vector<8x96xf32>
    %232 = vector.extract_strided_slice %225 {offsets = [0, 96], sizes = [8, 32], strides = [1, 1]} : vector<8x128xf32> to vector<8x32xf32>
    %233 = math.tanh %232 : vector<8x32xf32>
    %234 = vector.extract_strided_slice %231 {offsets = [0, 0], sizes = [8, 32], strides = [1, 1]} : vector<8x96xf32> to vector<8x32xf32>
    %235 = vector.extract_strided_slice %231 {offsets = [0, 32], sizes = [8, 32], strides = [1, 1]} : vector<8x96xf32> to vector<8x32xf32>
    %236 = vector.extract_strided_slice %231 {offsets = [0, 64], sizes = [8, 32], strides = [1, 1]} : vector<8x96xf32> to vector<8x32xf32>
    %237 = arith.mulf %235, %199 : vector<8x32xf32>
    %238 = arith.mulf %234, %233 : vector<8x32xf32>
    %239 = arith.addf %237, %238 : vector<8x32xf32>
    %240 = math.tanh %239 : vector<8x32xf32>
    %241 = arith.mulf %236, %240 : vector<8x32xf32>
    %cst_50 = arith.constant dense<0.000000e+00> : vector<8x128xf32>
    %242 = tpu.matmul %241, %13, %cst_50 {dimension_numbers = #tpu.dot_dimension_numbers<[1], [0], [0], [1], [0, 0, 1, 1], [], []>} : vector<8x32xf32>, vector<32x128xf32>, vector<8x128xf32> -> vector<8x128xf32>
    %cst_51 = arith.constant dense<0.000000e+00> : vector<8x128xf32>
    %243 = tpu.matmul %221, %14, %cst_51 {dimension_numbers = #tpu.dot_dimension_numbers<[1], [0], [0], [1], [0, 0, 1, 1], [], []>} : vector<8x32xf32>, vector<32x128xf32>, vector<8x128xf32> -> vector<8x128xf32>
    %244 = arith.addf %242, %243 : vector<8x128xf32>
    %245 = arith.addf %244, %17 : vector<8x128xf32>
    %246 = vector.extract_strided_slice %245 {offsets = [0, 0], sizes = [8, 96], strides = [1, 1]} : vector<8x128xf32> to vector<8x96xf32>
    %247 = arith.negf %246 : vector<8x96xf32>
    %248 = math.exp %247 : vector<8x96xf32>
    %cst_52 = arith.constant 1.000000e+00 : f32
    %249 = vector.broadcast %cst_52 : f32 to vector<8x96xf32>
    %250 = arith.addf %249, %248 : vector<8x96xf32>
    %251 = arith.divf %249, %250 : vector<8x96xf32>
    %252 = vector.extract_strided_slice %245 {offsets = [0, 96], sizes = [8, 32], strides = [1, 1]} : vector<8x128xf32> to vector<8x32xf32>
    %253 = math.tanh %252 : vector<8x32xf32>
    %254 = vector.extract_strided_slice %251 {offsets = [0, 0], sizes = [8, 32], strides = [1, 1]} : vector<8x96xf32> to vector<8x32xf32>
    %255 = vector.extract_strided_slice %251 {offsets = [0, 32], sizes = [8, 32], strides = [1, 1]} : vector<8x96xf32> to vector<8x32xf32>
    %256 = vector.extract_strided_slice %251 {offsets = [0, 64], sizes = [8, 32], strides = [1, 1]} : vector<8x96xf32> to vector<8x32xf32>
    %257 = arith.mulf %255, %219 : vector<8x32xf32>
    %258 = arith.mulf %254, %253 : vector<8x32xf32>
    %259 = arith.addf %257, %258 : vector<8x32xf32>
    %260 = math.tanh %259 : vector<8x32xf32>
    %261 = arith.mulf %256, %260 : vector<8x32xf32>
    %262 = vector.extract_strided_slice %11 {offsets = [6, 0, 0], sizes = [1, 8, 128], strides = [1, 1, 1]} : vector<8x8x128xf32> to vector<1x8x128xf32>
    %263 = vector.shape_cast %262 : vector<1x8x128xf32> to vector<8x128xf32>
    %cst_53 = arith.constant dense<0.000000e+00> : vector<8x128xf32>
    %264 = tpu.matmul %241, %12, %cst_53 {dimension_numbers = #tpu.dot_dimension_numbers<[1], [0], [0], [1], [0, 0, 1, 1], [], []>} : vector<8x32xf32>, vector<32x128xf32>, vector<8x128xf32> -> vector<8x128xf32>
    %265 = arith.addf %263, %264 : vector<8x128xf32>
    %266 = vector.extract_strided_slice %265 {offsets = [0, 0], sizes = [8, 96], strides = [1, 1]} : vector<8x128xf32> to vector<8x96xf32>
    %267 = arith.negf %266 : vector<8x96xf32>
    %268 = math.exp %267 : vector<8x96xf32>
    %cst_54 = arith.constant 1.000000e+00 : f32
    %269 = vector.broadcast %cst_54 : f32 to vector<8x96xf32>
    %270 = arith.addf %269, %268 : vector<8x96xf32>
    %271 = arith.divf %269, %270 : vector<8x96xf32>
    %272 = vector.extract_strided_slice %265 {offsets = [0, 96], sizes = [8, 32], strides = [1, 1]} : vector<8x128xf32> to vector<8x32xf32>
    %273 = math.tanh %272 : vector<8x32xf32>
    %274 = vector.extract_strided_slice %271 {offsets = [0, 0], sizes = [8, 32], strides = [1, 1]} : vector<8x96xf32> to vector<8x32xf32>
    %275 = vector.extract_strided_slice %271 {offsets = [0, 32], sizes = [8, 32], strides = [1, 1]} : vector<8x96xf32> to vector<8x32xf32>
    %276 = vector.extract_strided_slice %271 {offsets = [0, 64], sizes = [8, 32], strides = [1, 1]} : vector<8x96xf32> to vector<8x32xf32>
    %277 = arith.mulf %275, %239 : vector<8x32xf32>
    %278 = arith.mulf %274, %273 : vector<8x32xf32>
    %279 = arith.addf %277, %278 : vector<8x32xf32>
    %280 = math.tanh %279 : vector<8x32xf32>
    %281 = arith.mulf %276, %280 : vector<8x32xf32>
    %cst_55 = arith.constant dense<0.000000e+00> : vector<8x128xf32>
    %282 = tpu.matmul %281, %13, %cst_55 {dimension_numbers = #tpu.dot_dimension_numbers<[1], [0], [0], [1], [0, 0, 1, 1], [], []>} : vector<8x32xf32>, vector<32x128xf32>, vector<8x128xf32> -> vector<8x128xf32>
    %cst_56 = arith.constant dense<0.000000e+00> : vector<8x128xf32>
    %283 = tpu.matmul %261, %14, %cst_56 {dimension_numbers = #tpu.dot_dimension_numbers<[1], [0], [0], [1], [0, 0, 1, 1], [], []>} : vector<8x32xf32>, vector<32x128xf32>, vector<8x128xf32> -> vector<8x128xf32>
    %284 = arith.addf %282, %283 : vector<8x128xf32>
    %285 = arith.addf %284, %17 : vector<8x128xf32>
    %286 = vector.extract_strided_slice %285 {offsets = [0, 0], sizes = [8, 96], strides = [1, 1]} : vector<8x128xf32> to vector<8x96xf32>
    %287 = arith.negf %286 : vector<8x96xf32>
    %288 = math.exp %287 : vector<8x96xf32>
    %cst_57 = arith.constant 1.000000e+00 : f32
    %289 = vector.broadcast %cst_57 : f32 to vector<8x96xf32>
    %290 = arith.addf %289, %288 : vector<8x96xf32>
    %291 = arith.divf %289, %290 : vector<8x96xf32>
    %292 = vector.extract_strided_slice %285 {offsets = [0, 96], sizes = [8, 32], strides = [1, 1]} : vector<8x128xf32> to vector<8x32xf32>
    %293 = math.tanh %292 : vector<8x32xf32>
    %294 = vector.extract_strided_slice %291 {offsets = [0, 0], sizes = [8, 32], strides = [1, 1]} : vector<8x96xf32> to vector<8x32xf32>
    %295 = vector.extract_strided_slice %291 {offsets = [0, 32], sizes = [8, 32], strides = [1, 1]} : vector<8x96xf32> to vector<8x32xf32>
    %296 = vector.extract_strided_slice %291 {offsets = [0, 64], sizes = [8, 32], strides = [1, 1]} : vector<8x96xf32> to vector<8x32xf32>
    %297 = arith.mulf %295, %259 : vector<8x32xf32>
    %298 = arith.mulf %294, %293 : vector<8x32xf32>
    %299 = arith.addf %297, %298 : vector<8x32xf32>
    %300 = math.tanh %299 : vector<8x32xf32>
    %301 = arith.mulf %296, %300 : vector<8x32xf32>
    %302 = vector.extract_strided_slice %11 {offsets = [7, 0, 0], sizes = [1, 8, 128], strides = [1, 1, 1]} : vector<8x8x128xf32> to vector<1x8x128xf32>
    %303 = vector.shape_cast %302 : vector<1x8x128xf32> to vector<8x128xf32>
    %cst_58 = arith.constant dense<0.000000e+00> : vector<8x128xf32>
    %304 = tpu.matmul %281, %12, %cst_58 {dimension_numbers = #tpu.dot_dimension_numbers<[1], [0], [0], [1], [0, 0, 1, 1], [], []>} : vector<8x32xf32>, vector<32x128xf32>, vector<8x128xf32> -> vector<8x128xf32>
    %305 = arith.addf %303, %304 : vector<8x128xf32>
    %306 = vector.extract_strided_slice %305 {offsets = [0, 0], sizes = [8, 96], strides = [1, 1]} : vector<8x128xf32> to vector<8x96xf32>
    %307 = arith.negf %306 : vector<8x96xf32>
    %308 = math.exp %307 : vector<8x96xf32>
    %cst_59 = arith.constant 1.000000e+00 : f32
    %309 = vector.broadcast %cst_59 : f32 to vector<8x96xf32>
    %310 = arith.addf %309, %308 : vector<8x96xf32>
    %311 = arith.divf %309, %310 : vector<8x96xf32>
    %312 = vector.extract_strided_slice %305 {offsets = [0, 96], sizes = [8, 32], strides = [1, 1]} : vector<8x128xf32> to vector<8x32xf32>
    %313 = math.tanh %312 : vector<8x32xf32>
    %314 = vector.extract_strided_slice %311 {offsets = [0, 0], sizes = [8, 32], strides = [1, 1]} : vector<8x96xf32> to vector<8x32xf32>
    %315 = vector.extract_strided_slice %311 {offsets = [0, 32], sizes = [8, 32], strides = [1, 1]} : vector<8x96xf32> to vector<8x32xf32>
    %316 = vector.extract_strided_slice %311 {offsets = [0, 64], sizes = [8, 32], strides = [1, 1]} : vector<8x96xf32> to vector<8x32xf32>
    %317 = arith.mulf %315, %279 : vector<8x32xf32>
    %318 = arith.mulf %314, %313 : vector<8x32xf32>
    %319 = arith.addf %317, %318 : vector<8x32xf32>
    %320 = math.tanh %319 : vector<8x32xf32>
    %321 = arith.mulf %316, %320 : vector<8x32xf32>
    %cst_60 = arith.constant dense<0.000000e+00> : vector<8x128xf32>
    %322 = tpu.matmul %321, %13, %cst_60 {dimension_numbers = #tpu.dot_dimension_numbers<[1], [0], [0], [1], [0, 0, 1, 1], [], []>} : vector<8x32xf32>, vector<32x128xf32>, vector<8x128xf32> -> vector<8x128xf32>
    %cst_61 = arith.constant dense<0.000000e+00> : vector<8x128xf32>
    %323 = tpu.matmul %301, %14, %cst_61 {dimension_numbers = #tpu.dot_dimension_numbers<[1], [0], [0], [1], [0, 0, 1, 1], [], []>} : vector<8x32xf32>, vector<32x128xf32>, vector<8x128xf32> -> vector<8x128xf32>
    %324 = arith.addf %322, %323 : vector<8x128xf32>
    %325 = arith.addf %324, %17 : vector<8x128xf32>
    %326 = vector.extract_strided_slice %325 {offsets = [0, 0], sizes = [8, 96], strides = [1, 1]} : vector<8x128xf32> to vector<8x96xf32>
    %327 = arith.negf %326 : vector<8x96xf32>
    %328 = math.exp %327 : vector<8x96xf32>
    %cst_62 = arith.constant 1.000000e+00 : f32
    %329 = vector.broadcast %cst_62 : f32 to vector<8x96xf32>
    %330 = arith.addf %329, %328 : vector<8x96xf32>
    %331 = arith.divf %329, %330 : vector<8x96xf32>
    %332 = vector.extract_strided_slice %325 {offsets = [0, 96], sizes = [8, 32], strides = [1, 1]} : vector<8x128xf32> to vector<8x32xf32>
    %333 = math.tanh %332 : vector<8x32xf32>
    %334 = vector.extract_strided_slice %331 {offsets = [0, 0], sizes = [8, 32], strides = [1, 1]} : vector<8x96xf32> to vector<8x32xf32>
    %335 = vector.extract_strided_slice %331 {offsets = [0, 32], sizes = [8, 32], strides = [1, 1]} : vector<8x96xf32> to vector<8x32xf32>
    %336 = vector.extract_strided_slice %331 {offsets = [0, 64], sizes = [8, 32], strides = [1, 1]} : vector<8x96xf32> to vector<8x32xf32>
    %337 = arith.mulf %335, %299 : vector<8x32xf32>
    %338 = arith.mulf %334, %333 : vector<8x32xf32>
    %339 = arith.addf %337, %338 : vector<8x32xf32>
    %340 = math.tanh %339 : vector<8x32xf32>
    %341 = arith.mulf %336, %340 : vector<8x32xf32>
    %c0_63 = arith.constant 0 : index
    %c0_64 = arith.constant 0 : index
    %342 = vector.load %arg10[%c0_63, %c0_64] : memref<8x32xf32, #tpu.memory_space<vmem>>, vector<8x32xf32>
    tpu.vector_store %arg10[%c0_63, %c0_64], %321 {strides = array<i32>} : memref<8x32xf32, #tpu.memory_space<vmem>>, vector<8x32xf32>,
    %c0_65 = arith.constant 0 : index
    %c0_66 = arith.constant 0 : index
    %343 = vector.load %arg11[%c0_65, %c0_66] : memref<8x32xf32, #tpu.memory_space<vmem>>, vector<8x32xf32>
    tpu.vector_store %arg11[%c0_65, %c0_66], %319 {strides = array<i32>} : memref<8x32xf32, #tpu.memory_space<vmem>>, vector<8x32xf32>,
    %c0_67 = arith.constant 0 : index
    %c0_68 = arith.constant 0 : index
    %344 = vector.load %arg12[%c0_67, %c0_68] : memref<8x32xf32, #tpu.memory_space<vmem>>, vector<8x32xf32>
    tpu.vector_store %arg12[%c0_67, %c0_68], %341 {strides = array<i32>} : memref<8x32xf32, #tpu.memory_space<vmem>>, vector<8x32xf32>,
    %c0_69 = arith.constant 0 : index
    %c0_70 = arith.constant 0 : index
    %345 = vector.load %arg13[%c0_69, %c0_70] : memref<8x32xf32, #tpu.memory_space<vmem>>, vector<8x32xf32>
    tpu.vector_store %arg13[%c0_69, %c0_70], %339 {strides = array<i32>} : memref<8x32xf32, #tpu.memory_space<vmem>>, vector<8x32xf32>,
    %c0_i32_71 = arith.constant 0 : i32
    %346 = arith.cmpi eq, %arg1, %c0_i32_71 : i32
    %347 = arith.extui %346 : i1 to i32
    %c0_i32_72 = arith.constant 0 : i32
    %348 = arith.cmpi ne, %347, %c0_i32_72 : i32
    scf.if %348 {
      %c0_73 = arith.constant 0 : index
      %c0_74 = arith.constant 0 : index
      %349 = vector.load %arg9[%c0_73, %c0_74] : memref<8x32xf32, #tpu.memory_space<vmem>>, vector<8x32xf32>
      tpu.vector_store %arg9[%c0_73, %c0_74], %341 {strides = array<i32>} : memref<8x32xf32, #tpu.memory_space<vmem>>, vector<8x32xf32>,
    } else {
    }
    return
  }
  func.func @transform_0(%arg0: i32, %arg1: i32) -> (i32, i32, i32) {
    %c0_i32 = arith.constant 0 : i32
    %c0_i32_0 = arith.constant 0 : i32
    return %arg1, %arg0, %c0_i32 : i32, i32, i32
  }
  func.func @transform_1(%arg0: i32, %arg1: i32) -> (i32, i32) {
    %c0_i32 = arith.constant 0 : i32
    %c0_i32_0 = arith.constant 0 : i32
    %c0_i32_1 = arith.constant 0 : i32
    return %c0_i32, %c0_i32_0 : i32, i32
  }
  func.func @transform_2(%arg0: i32, %arg1: i32) -> (i32, i32) {
    %c0_i32 = arith.constant 0 : i32
    %c0_i32_0 = arith.constant 0 : i32
    %c0_i32_1 = arith.constant 0 : i32
    return %c0_i32, %c0_i32_0 : i32, i32
  }
  func.func @transform_3(%arg0: i32, %arg1: i32) -> (i32, i32) {
    %c0_i32 = arith.constant 0 : i32
    %c0_i32_0 = arith.constant 0 : i32
    %c0_i32_1 = arith.constant 0 : i32
    return %c0_i32, %c0_i32_0 : i32, i32
  }
  func.func @transform_4(%arg0: i32, %arg1: i32) -> (i32, i32) {
    %c0_i32 = arith.constant 0 : i32
    %c0_i32_0 = arith.constant 0 : i32
    %c0_i32_1 = arith.constant 0 : i32
    return %c0_i32, %c0_i32_0 : i32, i32
  }
  func.func @transform_5(%arg0: i32, %arg1: i32) -> (i32, i32) {
    %c0_i32 = arith.constant 0 : i32
    %c0_i32_0 = arith.constant 0 : i32
    %c0_i32_1 = arith.constant 0 : i32
    return %c0_i32, %c0_i32_0 : i32, i32
  }
  func.func @transform_6(%arg0: i32, %arg1: i32) -> (i32, i32) {
    %c0_i32 = arith.constant 0 : i32
    %c0_i32_0 = arith.constant 0 : i32
    %c0_i32_1 = arith.constant 0 : i32
    return %c0_i32, %c0_i32_0 : i32, i32
  }
  func.func @transform_7(%arg0: i32, %arg1: i32) -> (i32, i32) {
    %c0_i32 = arith.constant 0 : i32
    %c0_i32_0 = arith.constant 0 : i32
    return %arg0, %c0_i32 : i32, i32
  }
}

</mosaic_0001>

<llo_original>
// kernel: tpu_custom_call.1
$region0: #{tpu_custom_call.1}
  #allocation0 [shape = 'u32[]', space=smem, size = 0x4, offset = 0x4, fixed_abs, tag = 'smem constant byte address 0x4 - core index']
  #allocation1 [shape = 'u32[144,128]{1,0:T(1,128)}', space=vmem, size = 0x12000, scoped, tag = 'internal scratch']
  #allocation2 [shape = 'f32[8,32]{1,0:T(8,128)}', space=vmem, size = 0x1000, scoped, tag = 'scratch operand']
  #allocation3 [shape = 'f32[8,32]{1,0:T(8,128)}', space=vmem, size = 0x1000, scoped, tag = 'scratch operand']
  #allocation4 [shape = 'f32[8,32]{1,0:T(8,128)}', space=vmem, size = 0x1000, scoped, tag = 'scratch operand']
  #allocation5 [shape = 'f32[8,32]{1,0:T(8,128)}', space=vmem, size = 0x1000, scoped, tag = 'scratch operand']
  %s0 = inlined_call_operand.hbm [shape: f32[8,8,16], index: 0, kind: input, shape index: {}]
  %s1 = inlined_call_operand.hbm [shape: f32[16,128], index: 1, kind: input, shape index: {}]
  %s2 = inlined_call_operand.vmem [shape: f32[1,128], index: 2, kind: input, shape index: {}]
  %s3 = inlined_call_operand.hbm [shape: f32[32,128], index: 3, kind: input, shape index: {}]
  %s4 = inlined_call_operand.hbm [shape: f32[32,128], index: 4, kind: input, shape index: {}]
  %s5 = inlined_call_operand.hbm [shape: f32[32,128], index: 5, kind: input, shape index: {}]
  %s6 = inlined_call_operand.vmem [shape: f32[1,128], index: 6, kind: input, shape index: {}]
  %s7 = inlined_call_operand.hbm [shape: f32[8,32], index: 7, kind: output, shape index: {}]
  %s8 = sld [smem:[#allocation0]]
  $region66: #{tpu_custom_call.1} parent=0
    _
  %s10 = ssub.s32 1, %s8
  %s11 = scalar_select 0, %s10, %s8
  $region1: #{tpu_custom_call.1} parent=0
    #allocation6 [shape = 'u8[32768]{0}', space=vmem, size = 0x8000, scoped, tag = 'input window, operand 0, single buffered']
    #allocation7 [shape = 's32[1]{0}', space=sflag, size = 0x4, scoped, tag = 'scoped memory for tpu_custom_call.1']
    #allocation8 [shape = 's32[1]{0}', space=sflag, size = 0x4, scoped, tag = 'scoped memory for tpu_custom_call.1']
    #allocation9 [shape = 'u8[8192]{0}', space=vmem, size = 0x2000, scoped, tag = 'input window, operand 1, single buffered']
    #allocation10 [shape = 's32[1]{0}', space=sflag, size = 0x4, scoped, tag = 'scoped memory for tpu_custom_call.1']
    #allocation11 [shape = 'u8[16384]{0}', space=vmem, size = 0x4000, scoped, tag = 'input window, operand 3, single buffered']
    #allocation12 [shape = 'u8[16384]{0}', space=vmem, size = 0x4000, scoped, tag = 'input window, operand 4, single buffered']
    #allocation13 [shape = 's32[1]{0}', space=sflag, size = 0x4, scoped, tag = 'scoped memory for tpu_custom_call.1']
    #allocation14 [shape = 'u8[16384]{0}', space=vmem, size = 0x4000, scoped, tag = 'input window, operand 5, single buffered']
    #allocation15 [shape = 'u8[4096]{0}', space=vmem, size = 0x1000, scoped, tag = 'output window, operand 0, single buffered']
    %12 = vsyncpa [#allocation7], 0
    %13 = vsyncpa [#allocation10], 0
    %14 = vsyncpa [#allocation13], 0
    %15 = vsyncpa [#allocation8], 0
    // Predicated region
    $region2: #{tpu_custom_call.1} parent=1 // pred_check
      _
    $region3: #{tpu_custom_call.1} parent=1 // pred_check_branch
      %17 = sbr.rel (0) target = $region5
    $region4: #{tpu_custom_call.1} parent=1 // pred_region
      %s19 = ssub.s32 1024, 1024
      %20 = vsyncadd [#allocation7], %s19
      %s21 = sshll.u32 [#allocation6], 4
      %s22 = int_to_ptr.vmem [resolvable:$true] %s21
      %27 = dma.hbm_to_vmem [thread:$0]  %s0, 1024, %s22, [#allocation7], 128, 128, 8
    $region5: #{tpu_custom_call.1} parent=1 // pred_fallthru
      _
    // Predicated region
    $region6: #{tpu_custom_call.1} parent=1 // pred_check
      _
    $region7: #{tpu_custom_call.1} parent=1 // pred_check_branch
      %29 = sbr.rel (0) target = $region9
    $region8: #{tpu_custom_call.1} parent=1 // pred_region
      %s31 = ssub.s32 256, 256
      %32 = vsyncadd [#allocation10], %s31
      %s33 = sshll.u32 [#allocation9], 4
      %s34 = int_to_ptr.vmem [resolvable:$true] %s33
      %39 = dma.hbm_to_vmem [thread:$0]  %s1, 256, %s34, [#allocation10], 128, 128, 8
    $region9: #{tpu_custom_call.1} parent=1 // pred_fallthru
      _
    // Predicated region
    $region10: #{tpu_custom_call.1} parent=1 // pred_check
      _
    $region11: #{tpu_custom_call.1} parent=1 // pred_check_branch
      %41 = sbr.rel (0) target = $region13
    $region12: #{tpu_custom_call.1} parent=1 // pred_region
      _
    $region13: #{tpu_custom_call.1} parent=1 // pred_fallthru
      _
    // Predicated region
    $region14: #{tpu_custom_call.1} parent=1 // pred_check
      _
    $region15: #{tpu_custom_call.1} parent=1 // pred_check_branch
      %43 = sbr.rel (0) target = $region17
    $region16: #{tpu_custom_call.1} parent=1 // pred_region
      %s45 = ssub.s32 512, 512
      %46 = vsyncadd [#allocation10], %s45
      %s47 = sshll.u32 [#allocation11], 4
      %s48 = int_to_ptr.vmem [resolvable:$true] %s47
      %53 = dma.hbm_to_vmem [thread:$0]  %s3, 512, %s48, [#allocation10], 128, 128, 8
    $region17: #{tpu_custom_call.1} parent=1 // pred_fallthru
      _
    // Predicated region
    $region18: #{tpu_custom_call.1} parent=1 // pred_check
      _
    $region19: #{tpu_custom_call.1} parent=1 // pred_check_branch
      %55 = sbr.rel (0) target = $region21
    $region20: #{tpu_custom_call.1} parent=1 // pred_region
      %s57 = ssub.s32 512, 512
      %58 = vsyncadd [#allocation13], %s57
      %s59 = sshll.u32 [#allocation12], 4
      %s60 = int_to_ptr.vmem [resolvable:$true] %s59
      %65 = dma.hbm_to_vmem [thread:$0]  %s4, 512, %s60, [#allocation13], 128, 128, 8
    $region21: #{tpu_custom_call.1} parent=1 // pred_fallthru
      _
    // Predicated region
    $region22: #{tpu_custom_call.1} parent=1 // pred_check
      _
    $region23: #{tpu_custom_call.1} parent=1 // pred_check_branch
      %67 = sbr.rel (0) target = $region25
    $region24: #{tpu_custom_call.1} parent=1 // pred_region
      %s69 = ssub.s32 512, 512
      %70 = vsyncadd [#allocation13], %s69
      %s71 = sshll.u32 [#allocation14], 4
      %s72 = int_to_ptr.vmem [resolvable:$true] %s71
      %77 = dma.hbm_to_vmem [thread:$0]  %s5, 512, %s72, [#allocation13], 128, 128, 8
    $region25: #{tpu_custom_call.1} parent=1 // pred_fallthru
      _
    // Predicated region
    $region26: #{tpu_custom_call.1} parent=1 // pred_check
      _
    $region27: #{tpu_custom_call.1} parent=1 // pred_check_branch
      %79 = sbr.rel (0) target = $region29
    $region28: #{tpu_custom_call.1} parent=1 // pred_region
      _
    $region29: #{tpu_custom_call.1} parent=1 // pred_fallthru
      _
    // Predicated region
    $region30: #{tpu_custom_call.1} parent=1 // pred_check
      _
    $region31: #{tpu_custom_call.1} parent=1 // pred_check_branch
      %81 = sbr.rel (0) target = $region33
    $region32: #{tpu_custom_call.1} parent=1 // pred_region
      %82 = dma.done [#allocation7], 1024
    $region33: #{tpu_custom_call.1} parent=1 // pred_fallthru
      _
    // Predicated region
    $region34: #{tpu_custom_call.1} parent=1 // pred_check
      _
    $region35: #{tpu_custom_call.1} parent=1 // pred_check_branch
      %84 = sbr.rel (0) target = $region37
    $region36: #{tpu_custom_call.1} parent=1 // pred_region
      %85 = dma.done [#allocation10], 256
    $region37: #{tpu_custom_call.1} parent=1 // pred_fallthru
      _
    // Predicated region
    $region38: #{tpu_custom_call.1} parent=1 // pred_check
      _
    $region39: #{tpu_custom_call.1} parent=1 // pred_check_branch
      %87 = sbr.rel (0) target = $region41
    $region40: #{tpu_custom_call.1} parent=1 // pred_region
      %88 = dma.done [#allocation10], 512
    $region41: #{tpu_custom_call.1} parent=1 // pred_fallthru
      _
    // Predicated region
    $region42: #{tpu_custom_call.1} parent=1 // pred_check
      _
    $region43: #{tpu_custom_call.1} parent=1 // pred_check_branch
      %90 = sbr.rel (0) target = $region45
    $region44: #{tpu_custom_call.1} parent=1 // pred_region
      %91 = dma.done [#allocation13], 512
    $region45: #{tpu_custom_call.1} parent=1 // pred_fallthru
      _
    // Predicated region
    $region46: #{tpu_custom_call.1} parent=1 // pred_check
      _
    $region47: #{tpu_custom_call.1} parent=1 // pred_check_branch
      %93 = sbr.rel (0) target = $region49
    $region48: #{tpu_custom_call.1} parent=1 // pred_region
      %94 = dma.done [#allocation13], 512
    $region49: #{tpu_custom_call.1} parent=1 // pred_fallthru
      _
    %p95 = scmp.eq.s32.totalorder 0, 0
    // Predicated region
    $region50: #{tpu_custom_call.1} parent=1 // pred_check
      %p96 = pneg %p95
    $region51: #{tpu_custom_call.1} parent=1 // pred_check_branch
      %98 = sbr.rel (%p96) target = $region53
    $region52: #{tpu_custom_call.1} parent=1 // pred_region
      %vm99 = vcmask 261120
      %100 = vst.msk [vmem:[#allocation2] sm:$0xff] %vm99, 0.0
      %101 = vst.msk [vmem:[#allocation3] sm:$0xff] %vm99, 0.0
      %102 = vst.msk [vmem:[#allocation4] sm:$0xff] %vm99, 0.0
      %103 = vst.msk [vmem:[#allocation5] sm:$0xff] %vm99, 0.0
    $region53: #{tpu_custom_call.1} parent=1 // pred_fallthru
      _
    %v104 = vld [vmem:[#allocation6] sm:$0xff]
    %v105 = vld [vmem:[#allocation6 + $0x8] sm:$0xff]
    %v106 = vld [vmem:[#allocation6 + $0x10] sm:$0xff]
    %v107 = vld [vmem:[#allocation6 + $0x18] sm:$0xff]
    %v108 = vld [vmem:[#allocation6 + $0x20] sm:$0xff]
    %v109 = vld [vmem:[#allocation6 + $0x28] sm:$0xff]
    %v110 = vld [vmem:[#allocation6 + $0x30] sm:$0xff]
    %v111 = vld [vmem:[#allocation6 + $0x38] sm:$0xff]
    %v112 = vld [vmem:[#allocation9] sm:$0xff]
    %v113 = vld [vmem:[#allocation9 + $0x8] sm:$0xff]
    %vm114 = vcmask 130048
    %v116 = vsel %vm114, %v104, 0
    %v119 = vsel %vm114, %v105, 0
    %v122 = vsel %vm114, %v106, 0
    %v125 = vsel %vm114, %v107, 0
    %v128 = vsel %vm114, %v108, 0
    %v131 = vsel %vm114, %v109, 0
    %v134 = vsel %vm114, %v110, 0
    %v137 = vsel %vm114, %v111, 0
    %139 = vmatprep.subr.mxu0 0.0
    %140 = vmatpush1.msra.mxu0 %v112
    %141 = vmatprep.subr.mxu0 0.0
    %142 = vmatpush1.msra.mxu0 %v113
    %143 = vmatprep.subr.mxu0 0.0
    %144 = vmatpush1.msra.mxu0 0.0
    %145 = vmatprep.subr.mxu0 0.0
    %146 = vmatpush1.msra.mxu0 0.0
    %147 = vmatprep.subr.mxu0 0.0
    %148 = vmatpush1.msra.mxu0 0.0
    %149 = vmatprep.subr.mxu0 0.0
    %150 = vmatpush1.msra.mxu0 0.0
    %151 = vmatprep.subr.mxu0 0.0
    %152 = vmatpush1.msra.mxu0 0.0
    %153 = vmatprep.subr.mxu0 0.0
    %154 = vmatpush1.msra.mxu0 0.0
    %155 = vmatprep.subr.mxu0 0.0
    %156 = vmatpush1.msra.mxu0 0.0
    %157 = vmatprep.subr.mxu0 0.0
    %158 = vmatpush1.msra.mxu0 0.0
    %159 = vmatprep.subr.mxu0 0.0
    %160 = vmatpush1.msra.mxu0 0.0
    %161 = vmatprep.subr.mxu0 0.0
    %162 = vmatpush1.msra.mxu0 0.0
    %163 = vmatprep.subr.mxu0 0.0
    %164 = vmatpush1.msra.mxu0 0.0
    %165 = vmatprep.subr.mxu0 0.0
    %166 = vmatpush1.msra.mxu0 0.0
    %167 = vmatprep.subr.mxu0 0.0
    %168 = vmatpush1.msra.mxu0 0.0
    %169 = vmatprep.subr.mxu0 0.0
    %170 = vmatpush1.msra.mxu0 0.0
    %171 = vmatprep.subr.mxu0 0.0
    %172 = vmatpush1.msra.mxu0 0.0
    %173 = vmatprep.subr.mxu0 0.0
    %174 = vmatpush1.msra.mxu0 0.0
    %175 = vmatprep.subr.mxu0 0.0
    %176 = vmatpush1.msra.mxu0 0.0
    %177 = vmatprep.subr.mxu0 0.0
    %178 = vmatpush1.msra.mxu0 0.0
    %179 = vmatprep.subr.mxu0 0.0
    %180 = vmatpush1.msra.mxu0 0.0
    %181 = vmatprep.subr.mxu0 0.0
    %182 = vmatpush1.msra.mxu0 0.0
    %183 = vmatprep.subr.mxu0 0.0
    %184 = vmatpush1.msra.mxu0 0.0
    %185 = vmatprep.subr.mxu0 0.0
    %186 = vmatpush1.msra.mxu0 0.0
    %187 = vmatprep.subr.mxu0 0.0
    %188 = vmatpush1.msra.mxu0 0.0
    %189 = vmatprep.subr.mxu0 0.0
    %190 = vmatpush1.msra.mxu0 0.0
    %191 = vmatprep.subr.mxu0 0.0
    %192 = vmatpush1.msra.mxu0 0.0
    %193 = vmatprep.subr.mxu0 0.0
    %194 = vmatpush1.msra.mxu0 0.0
    %195 = vmatprep.subr.mxu0 0.0
    %196 = vmatpush1.msra.mxu0 0.0
    %197 = vmatprep.subr.mxu0 0.0
    %198 = vmatpush1.msra.mxu0 0.0
    %199 = vmatprep.subr.mxu0 0.0
    %200 = vmatpush1.msra.mxu0 0.0
    %201 = vmatprep.subr.mxu0 0.0
    %202 = vmatpush1.msra.mxu0 0.0
    %203 = vmatprep.mubr.f32.mxu0 0.0
    %204 = vmatmul.mubr.f32.gmra.mrb[0].mxu0 %v116
    %v205 = vpop.f32.mrb[0].mxu0
    %v206 = vadd.f32 0.0, %v205
    %v207 = vpop.f32.mrb[0].mxu0
    %208 = vmatprep.mubr.f32.mxu0 0.0
    %209 = vmatmul.mubr.f32.gmra.mrb[0].mxu0 %v119
    %v210 = vpop.f32.mrb[0].mxu0
    %v211 = vadd.f32 0.0, %v210
    %v212 = vpop.f32.mrb[0].mxu0
    %213 = vmatprep.mubr.f32.mxu0 0.0
    %214 = vmatmul.mubr.f32.gmra.mrb[0].mxu0 %v122
    %v215 = vpop.f32.mrb[0].mxu0
    %v216 = vadd.f32 0.0, %v215
    %v217 = vpop.f32.mrb[0].mxu0
    %218 = vmatprep.mubr.f32.mxu0 0.0
    %219 = vmatmul.mubr.f32.gmra.mrb[0].mxu0 %v125
    %v220 = vpop.f32.mrb[0].mxu0
    %v221 = vadd.f32 0.0, %v220
    %v222 = vpop.f32.mrb[0].mxu0
    %223 = vmatprep.mubr.f32.mxu0 0.0
    %224 = vmatmul.mubr.f32.gmra.mrb[0].mxu0 %v128
    %v225 = vpop.f32.mrb[0].mxu0
    %v226 = vadd.f32 0.0, %v225
    %v227 = vpop.f32.mrb[0].mxu0
    %228 = vmatprep.mubr.f32.mxu0 0.0
    %229 = vmatmul.mubr.f32.gmra.mrb[0].mxu0 %v131
    %v230 = vpop.f32.mrb[0].mxu0
    %v231 = vadd.f32 0.0, %v230
    %v232 = vpop.f32.mrb[0].mxu0
    %233 = vmatprep.mubr.f32.mxu0 0.0
    %234 = vmatmul.mubr.f32.gmra.mrb[0].mxu0 %v134
    %v235 = vpop.f32.mrb[0].mxu0
    %v236 = vadd.f32 0.0, %v235
    %v237 = vpop.f32.mrb[0].mxu0
    %238 = vmatprep.mubr.f32.mxu0 0.0
    %239 = vmatmul.mubr.f32.gmra.mrb[0].mxu0 %v137
    %v240 = vpop.f32.mrb[0].mxu0
    %v241 = vadd.f32 0.0, %v240
    %v242 = vpop.f32.mrb[0].mxu0
    %243 = vdwg.mxu0
    %v244 = vld [vmem:[%s2] sm:$0x1]
    %v246 = vlaneseq
    %v247 = vshrl.u32 %v246, 7
    %v248 = vsub.s32 0, %v247
    %v249 = vrot.slane %v244, %v248
    %v251 = vadd.f32 %v206, %v249
    %v252 = vadd.f32 %v211, %v249
    %v253 = vadd.f32 %v216, %v249
    %v254 = vadd.f32 %v221, %v249
    %v255 = vadd.f32 %v226, %v249
    %v256 = vadd.f32 %v231, %v249
    %v257 = vadd.f32 %v236, %v249
    %v258 = vadd.f32 %v241, %v249
    %v259 = vld [vmem:[#allocation11] sm:$0xff]
    %v260 = vld [vmem:[#allocation11 + $0x8] sm:$0xff]
    %v261 = vld [vmem:[#allocation11 + $0x10] sm:$0xff]
    %v262 = vld [vmem:[#allocation11 + $0x18] sm:$0xff]
    %v263 = vld [vmem:[#allocation12] sm:$0xff]
    %v264 = vld [vmem:[#allocation12 + $0x8] sm:$0xff]
    %v265 = vld [vmem:[#allocation12 + $0x10] sm:$0xff]
    %v266 = vld [vmem:[#allocation12 + $0x18] sm:$0xff]
    %v267 = vld [vmem:[#allocation14] sm:$0xff]
    %v268 = vld [vmem:[#allocation14 + $0x8] sm:$0xff]
    %v269 = vld [vmem:[#allocation14 + $0x10] sm:$0xff]
    %v270 = vld [vmem:[#allocation14 + $0x18] sm:$0xff]
    %v271 = vld [vmem:[%s6] sm:$0x1]
    %v273 = vlaneseq
    %v274 = vshrl.u32 %v273, 7
    %v275 = vsub.s32 0, %v274
    %v276 = vrot.slane %v271, %v275
    %v278 = vld [vmem:[#allocation2] sm:$0xff]
    %v279 = vld [vmem:[#allocation3] sm:$0xff]
    %v280 = vld [vmem:[#allocation4] sm:$0xff]
    %v281 = vld [vmem:[#allocation5] sm:$0xff]
    %vm282 = vcmask 261120
    %v284 = vsel %vm282, %v278, 0
    %286 = vmatprep.subr.mxu0 0.0
    %287 = vmatpush1.msra.mxu0 %v259
    %288 = vmatprep.subr.mxu0 0.0
    %289 = vmatpush1.msra.mxu0 %v260
    %290 = vmatprep.subr.mxu0 0.0
    %291 = vmatpush1.msra.mxu0 %v261
    %292 = vmatprep.subr.mxu0 0.0
    %293 = vmatpush1.msra.mxu0 %v262
    %294 = vmatprep.subr.mxu0 0.0
    %295 = vmatpush1.msra.mxu0 0.0
    %296 = vmatprep.subr.mxu0 0.0
    %297 = vmatpush1.msra.mxu0 0.0
    %298 = vmatprep.subr.mxu0 0.0
    %299 = vmatpush1.msra.mxu0 0.0
    %300 = vmatprep.subr.mxu0 0.0
    %301 = vmatpush1.msra.mxu0 0.0
    %302 = vmatprep.subr.mxu0 0.0
    %303 = vmatpush1.msra.mxu0 0.0
    %304 = vmatprep.subr.mxu0 0.0
    %305 = vmatpush1.msra.mxu0 0.0
    %306 = vmatprep.subr.mxu0 0.0
    %307 = vmatpush1.msra.mxu0 0.0
    %308 = vmatprep.subr.mxu0 0.0
    %309 = vmatpush1.msra.mxu0 0.0
    %310 = vmatprep.subr.mxu0 0.0
    %311 = vmatpush1.msra.mxu0 0.0
    %312 = vmatprep.subr.mxu0 0.0
    %313 = vmatpush1.msra.mxu0 0.0
    %314 = vmatprep.subr.mxu0 0.0
    %315 = vmatpush1.msra.mxu0 0.0
    %316 = vmatprep.subr.mxu0 0.0
    %317 = vmatpush1.msra.mxu0 0.0
    %318 = vmatprep.subr.mxu0 0.0
    %319 = vmatpush1.msra.mxu0 0.0
    %320 = vmatprep.subr.mxu0 0.0
    %321 = vmatpush1.msra.mxu0 0.0
    %322 = vmatprep.subr.mxu0 0.0
    %323 = vmatpush1.msra.mxu0 0.0
    %324 = vmatprep.subr.mxu0 0.0
    %325 = vmatpush1.msra.mxu0 0.0
    %326 = vmatprep.subr.mxu0 0.0
    %327 = vmatpush1.msra.mxu0 0.0
    %328 = vmatprep.subr.mxu0 0.0
    %329 = vmatpush1.msra.mxu0 0.0
    %330 = vmatprep.subr.mxu0 0.0
    %331 = vmatpush1.msra.mxu0 0.0
    %332 = vmatprep.subr.mxu0 0.0
    %333 = vmatpush1.msra.mxu0 0.0
    %334 = vmatprep.subr.mxu0 0.0
    %335 = vmatpush1.msra.mxu0 0.0
    %336 = vmatprep.subr.mxu0 0.0
    %337 = vmatpush1.msra.mxu0 0.0
    %338 = vmatprep.subr.mxu0 0.0
    %339 = vmatpush1.msra.mxu0 0.0
    %340 = vmatprep.subr.mxu0 0.0
    %341 = vmatpush1.msra.mxu0 0.0
    %342 = vmatprep.subr.mxu0 0.0
    %343 = vmatpush1.msra.mxu0 0.0
    %344 = vmatprep.subr.mxu0 0.0
    %345 = vmatpush1.msra.mxu0 0.0
    %346 = vmatprep.subr.mxu0 0.0
    %347 = vmatpush1.msra.mxu0 0.0
    %348 = vmatprep.subr.mxu0 0.0
    %349 = vmatpush1.msra.mxu0 0.0
    %350 = vmatprep.mubr.f32.mxu0 0.0
    %351 = vmatmul.mubr.f32.gmra.mrb[0].mxu0 %v284
    %v352 = vpop.f32.mrb[0].mxu0
    %v353 = vadd.f32 0.0, %v352
    %v354 = vpop.f32.mrb[0].mxu0
    %355 = vdwg.mxu0
    %v356 = vadd.f32 %v251, %v353
    %v357 = vxor.u32 %v356, 2147483648
    %v358 = vmul.f32 %v357, 1.442695
    %v359 = vpow.pop %v358
    %v360 = vadd.f32 %v359, 1.0
    %v361 = vrcp.pop %v360
    %v362 = vmul.f32 1.0, %v361
    %v363 = vtanh.pop %v356
    %365 = vrot.lane.b32.xlu0 %v279, 32
    %v366 = vpop.permute.xlu0 %365
    %v368 = vmul.f32 %v362, %v366
    %370 = vrot.lane.b32.xlu0 %v363, 32
    %v371 = vpop.permute.xlu0 %370
    %v373 = vmul.f32 %v362, %v371
    %375 = vrot.lane.b32.xlu0 %v373, 32
    %v376 = vpop.permute.xlu0 %375
    %v378 = vadd.f32 %v368, %v376
    %v379 = vtanh.pop %v378
    %381 = vrot.lane.b32.xlu0 %v379, 32
    %v382 = vpop.permute.xlu0 %381
    %v384 = vmul.f32 %v362, %v382
    %v386 = vsel %vm282, %v280, 0
    %388 = vmatprep.subr.mxu0 0.0
    %389 = vmatpush1.msra.mxu0 %v267
    %390 = vmatprep.subr.mxu0 0.0
    %391 = vmatpush1.msra.mxu0 %v268
    %392 = vmatprep.subr.mxu0 0.0
    %393 = vmatpush1.msra.mxu0 %v269
    %394 = vmatprep.subr.mxu0 0.0
    %395 = vmatpush1.msra.mxu0 %v270
    %396 = vmatprep.subr.mxu0 0.0
    %397 = vmatpush1.msra.mxu0 0.0
    %398 = vmatprep.subr.mxu0 0.0
    %399 = vmatpush1.msra.mxu0 0.0
    %400 = vmatprep.subr.mxu0 0.0
    %401 = vmatpush1.msra.mxu0 0.0
    %402 = vmatprep.subr.mxu0 0.0
    %403 = vmatpush1.msra.mxu0 0.0
    %404 = vmatprep.subr.mxu0 0.0
    %405 = vmatpush1.msra.mxu0 0.0
    %406 = vmatprep.subr.mxu0 0.0
    %407 = vmatpush1.msra.mxu0 0.0
    %408 = vmatprep.subr.mxu0 0.0
    %409 = vmatpush1.msra.mxu0 0.0
    %410 = vmatprep.subr.mxu0 0.0
    %411 = vmatpush1.msra.mxu0 0.0
    %412 = vmatprep.subr.mxu0 0.0
    %413 = vmatpush1.msra.mxu0 0.0
    %414 = vmatprep.subr.mxu0 0.0
    %415 = vmatpush1.msra.mxu0 0.0
    %416 = vmatprep.subr.mxu0 0.0
    %417 = vmatpush1.msra.mxu0 0.0
    %418 = vmatprep.subr.mxu0 0.0
    %419 = vmatpush1.msra.mxu0 0.0
    %420 = vmatprep.subr.mxu0 0.0
    %421 = vmatpush1.msra.mxu0 0.0
    %422 = vmatprep.subr.mxu0 0.0
    %423 = vmatpush1.msra.mxu0 0.0
    %424 = vmatprep.subr.mxu0 0.0
    %425 = vmatpush1.msra.mxu0 0.0
    %426 = vmatprep.subr.mxu0 0.0
    %427 = vmatpush1.msra.mxu0 0.0
    %428 = vmatprep.subr.mxu0 0.0
    %429 = vmatpush1.msra.mxu0 0.0
    %430 = vmatprep.subr.mxu0 0.0
    %431 = vmatpush1.msra.mxu0 0.0
    %432 = vmatprep.subr.mxu0 0.0
    %433 = vmatpush1.msra.mxu0 0.0
    %434 = vmatprep.subr.mxu0 0.0
    %435 = vmatpush1.msra.mxu0 0.0
    %436 = vmatprep.subr.mxu0 0.0
    %437 = vmatpush1.msra.mxu0 0.0
    %438 = vmatprep.subr.mxu0 0.0
    %439 = vmatpush1.msra.mxu0 0.0
    %440 = vmatprep.subr.mxu0 0.0
    %441 = vmatpush1.msra.mxu0 0.0
    %442 = vmatprep.subr.mxu0 0.0
    %443 = vmatpush1.msra.mxu0 0.0
    %444 = vmatprep.subr.mxu0 0.0
    %445 = vmatpush1.msra.mxu0 0.0
    %446 = vmatprep.subr.mxu0 0.0
    %447 = vmatpush1.msra.mxu0 0.0
    %448 = vmatprep.subr.mxu0 0.0
    %449 = vmatpush1.msra.mxu0 0.0
    %450 = vmatprep.subr.mxu0 0.0
    %451 = vmatpush1.msra.mxu0 0.0
    %452 = vmatprep.mubr.f32.mxu0 0.0
    %453 = vmatmul.mubr.f32.gmra.mrb[0].mxu0 %v386
    %v454 = vpop.f32.mrb[0].mxu0
    %v455 = vadd.f32 0.0, %v454
    %v456 = vpop.f32.mrb[0].mxu0
    %457 = vdwg.mxu0
    %459 = vrot.lane.b32.xlu0 %v384, 64
    %v460 = vpop.permute.xlu0 %459
    %v461 = vsel %vm282, %v460, 0
    %463 = vmatprep.subr.mxu0 0.0
    %464 = vmatpush1.msra.mxu0 %v263
    %465 = vmatprep.subr.mxu0 0.0
    %466 = vmatpush1.msra.mxu0 %v264
    %467 = vmatprep.subr.mxu0 0.0
    %468 = vmatpush1.msra.mxu0 %v265
    %469 = vmatprep.subr.mxu0 0.0
    %470 = vmatpush1.msra.mxu0 %v266
    %471 = vmatprep.subr.mxu0 0.0
    %472 = vmatpush1.msra.mxu0 0.0
    %473 = vmatprep.subr.mxu0 0.0
    %474 = vmatpush1.msra.mxu0 0.0
    %475 = vmatprep.subr.mxu0 0.0
    %476 = vmatpush1.msra.mxu0 0.0
    %477 = vmatprep.subr.mxu0 0.0
    %478 = vmatpush1.msra.mxu0 0.0
    %479 = vmatprep.subr.mxu0 0.0
    %480 = vmatpush1.msra.mxu0 0.0
    %481 = vmatprep.subr.mxu0 0.0
    %482 = vmatpush1.msra.mxu0 0.0
    %483 = vmatprep.subr.mxu0 0.0
    %484 = vmatpush1.msra.mxu0 0.0
    %485 = vmatprep.subr.mxu0 0.0
    %486 = vmatpush1.msra.mxu0 0.0
    %487 = vmatprep.subr.mxu0 0.0
    %488 = vmatpush1.msra.mxu0 0.0
    %489 = vmatprep.subr.mxu0 0.0
    %490 = vmatpush1.msra.mxu0 0.0
    %491 = vmatprep.subr.mxu0 0.0
    %492 = vmatpush1.msra.mxu0 0.0
    %493 = vmatprep.subr.mxu0 0.0
    %494 = vmatpush1.msra.mxu0 0.0
    %495 = vmatprep.subr.mxu0 0.0
    %496 = vmatpush1.msra.mxu0 0.0
    %497 = vmatprep.subr.mxu0 0.0
    %498 = vmatpush1.msra.mxu0 0.0
    %499 = vmatprep.subr.mxu0 0.0
    %500 = vmatpush1.msra.mxu0 0.0
    %501 = vmatprep.subr.mxu0 0.0
    %502 = vmatpush1.msra.mxu0 0.0
    %503 = vmatprep.subr.mxu0 0.0
    %504 = vmatpush1.msra.mxu0 0.0
    %505 = vmatprep.subr.mxu0 0.0
    %506 = vmatpush1.msra.mxu0 0.0
    %507 = vmatprep.subr.mxu0 0.0
    %508 = vmatpush1.msra.mxu0 0.0
    %509 = vmatprep.subr.mxu0 0.0
    %510 = vmatpush1.msra.mxu0 0.0
    %511 = vmatprep.subr.mxu0 0.0
    %512 = vmatpush1.msra.mxu0 0.0
    %513 = vmatprep.subr.mxu0 0.0
    %514 = vmatpush1.msra.mxu0 0.0
    %515 = vmatprep.subr.mxu0 0.0
    %516 = vmatpush1.msra.mxu0 0.0
    %517 = vmatprep.subr.mxu0 0.0
    %518 = vmatpush1.msra.mxu0 0.0
    %519 = vmatprep.subr.mxu0 0.0
    %520 = vmatpush1.msra.mxu0 0.0
    %521 = vmatprep.subr.mxu0 0.0
    %522 = vmatpush1.msra.mxu0 0.0
    %523 = vmatprep.subr.mxu0 0.0
    %524 = vmatpush1.msra.mxu0 0.0
    %525 = vmatprep.subr.mxu0 0.0
    %526 = vmatpush1.msra.mxu0 0.0
    %527 = vmatprep.mubr.f32.mxu0 0.0
    %528 = vmatmul.mubr.f32.gmra.mrb[0].mxu0 %v461
    %v529 = vpop.f32.mrb[0].mxu0
    %v530 = vadd.f32 %v455, %v529
    %v531 = vpop.f32.mrb[0].mxu0
    %532 = vdwg.mxu0
    %v533 = vadd.f32 %v530, %v276
    %v534 = vxor.u32 %v533, 2147483648
    %v535 = vmul.f32 %v534, 1.442695
    %v536 = vpow.pop %v535
    %v537 = vadd.f32 %v536, 1.0
    %v538 = vrcp.pop %v537
    %v539 = vmul.f32 1.0, %v538
    %v540 = vtanh.pop %v533
    %542 = vrot.lane.b32.xlu0 %v281, 32
    %v543 = vpop.permute.xlu0 %542
    %v545 = vmul.f32 %v539, %v543
    %547 = vrot.lane.b32.xlu0 %v540, 32
    %v548 = vpop.permute.xlu0 %547
    %v550 = vmul.f32 %v539, %v548
    %552 = vrot.lane.b32.xlu0 %v550, 32
    %v553 = vpop.permute.xlu0 %552
    %v555 = vadd.f32 %v545, %v553
    %v556 = vtanh.pop %v555
    %558 = vrot.lane.b32.xlu0 %v556, 32
    %v559 = vpop.permute.xlu0 %558
    %v561 = vmul.f32 %v539, %v559
    %562 = vmatprep.subr.mxu0 0.0
    %563 = vmatpush1.msra.mxu0 %v259
    %564 = vmatprep.subr.mxu0 0.0
    %565 = vmatpush1.msra.mxu0 %v260
    %566 = vmatprep.subr.mxu0 0.0
    %567 = vmatpush1.msra.mxu0 %v261
    %568 = vmatprep.subr.mxu0 0.0
    %569 = vmatpush1.msra.mxu0 %v262
    %570 = vmatprep.subr.mxu0 0.0
    %571 = vmatpush1.msra.mxu0 0.0
    %572 = vmatprep.subr.mxu0 0.0
    %573 = vmatpush1.msra.mxu0 0.0
    %574 = vmatprep.subr.mxu0 0.0
    %575 = vmatpush1.msra.mxu0 0.0
    %576 = vmatprep.subr.mxu0 0.0
    %577 = vmatpush1.msra.mxu0 0.0
    %578 = vmatprep.subr.mxu0 0.0
    %579 = vmatpush1.msra.mxu0 0.0
    %580 = vmatprep.subr.mxu0 0.0
    %581 = vmatpush1.msra.mxu0 0.0
    %582 = vmatprep.subr.mxu0 0.0
    %583 = vmatpush1.msra.mxu0 0.0
    %584 = vmatprep.subr.mxu0 0.0
    %585 = vmatpush1.msra.mxu0 0.0
    %586 = vmatprep.subr.mxu0 0.0
    %587 = vmatpush1.msra.mxu0 0.0
    %588 = vmatprep.subr.mxu0 0.0
    %589 = vmatpush1.msra.mxu0 0.0
    %590 = vmatprep.subr.mxu0 0.0
    %591 = vmatpush1.msra.mxu0 0.0
    %592 = vmatprep.subr.mxu0 0.0
    %593 = vmatpush1.msra.mxu0 0.0
    %594 = vmatprep.subr.mxu0 0.0
    %595 = vmatpush1.msra.mxu0 0.0
    %596 = vmatprep.subr.mxu0 0.0
    %597 = vmatpush1.msra.mxu0 0.0
    %598 = vmatprep.subr.mxu0 0.0
    %599 = vmatpush1.msra.mxu0 0.0
    %600 = vmatprep.subr.mxu0 0.0
    %601 = vmatpush1.msra.mxu0 0.0
    %602 = vmatprep.subr.mxu0 0.0
    %603 = vmatpush1.msra.mxu0 0.0
    %604 = vmatprep.subr.mxu0 0.0
    %605 = vmatpush1.msra.mxu0 0.0
    %606 = vmatprep.subr.mxu0 0.0
    %607 = vmatpush1.msra.mxu0 0.0
    %608 = vmatprep.subr.mxu0 0.0
    %609 = vmatpush1.msra.mxu0 0.0
    %610 = vmatprep.subr.mxu0 0.0
    %611 = vmatpush1.msra.mxu0 0.0
    %612 = vmatprep.subr.mxu0 0.0
    %613 = vmatpush1.msra.mxu0 0.0
    %614 = vmatprep.subr.mxu0 0.0
    %615 = vmatpush1.msra.mxu0 0.0
    %616 = vmatprep.subr.mxu0 0.0
    %617 = vmatpush1.msra.mxu0 0.0
    %618 = vmatprep.subr.mxu0 0.0
    %619 = vmatpush1.msra.mxu0 0.0
    %620 = vmatprep.subr.mxu0 0.0
    %621 = vmatpush1.msra.mxu0 0.0
    %622 = vmatprep.subr.mxu0 0.0
    %623 = vmatpush1.msra.mxu0 0.0
    %624 = vmatprep.subr.mxu0 0.0
    %625 = vmatpush1.msra.mxu0 0.0
    %626 = vmatprep.mubr.f32.mxu0 0.0
    %627 = vmatmul.mubr.f32.gmra.mrb[0].mxu0 %v461
    %v628 = vpop.f32.mrb[0].mxu0
    %v629 = vadd.f32 0.0, %v628
    %v630 = vpop.f32.mrb[0].mxu0
    %631 = vdwg.mxu0
    %v632 = vadd.f32 %v252, %v629
    %v633 = vxor.u32 %v632, 2147483648
    %v634 = vmul.f32 %v633, 1.442695
    %v635 = vpow.pop %v634
    %v636 = vadd.f32 %v635, 1.0
    %v637 = vrcp.pop %v636
    %v638 = vmul.f32 1.0, %v637
    %v639 = vtanh.pop %v632
    %v640 = vmul.f32 %v638, %v378
    %642 = vrot.lane.b32.xlu0 %v639, 32
    %v643 = vpop.permute.xlu0 %642
    %v645 = vmul.f32 %v638, %v643
    %647 = vrot.lane.b32.xlu0 %v645, 32
    %v648 = vpop.permute.xlu0 %647
    %v650 = vadd.f32 %v640, %v648
    %v651 = vtanh.pop %v650
    %653 = vrot.lane.b32.xlu0 %v651, 32
    %v654 = vpop.permute.xlu0 %653
    %v656 = vmul.f32 %v638, %v654
    %658 = vrot.lane.b32.xlu0 %v561, 64
    %v659 = vpop.permute.xlu0 %658
    %v660 = vsel %vm282, %v659, 0
    %662 = vmatprep.subr.mxu0 0.0
    %663 = vmatpush1.msra.mxu0 %v267
    %664 = vmatprep.subr.mxu0 0.0
    %665 = vmatpush1.msra.mxu0 %v268
    %666 = vmatprep.subr.mxu0 0.0
    %667 = vmatpush1.msra.mxu0 %v269
    %668 = vmatprep.subr.mxu0 0.0
    %669 = vmatpush1.msra.mxu0 %v270
    %670 = vmatprep.subr.mxu0 0.0
    %671 = vmatpush1.msra.mxu0 0.0
    %672 = vmatprep.subr.mxu0 0.0
    %673 = vmatpush1.msra.mxu0 0.0
    %674 = vmatprep.subr.mxu0 0.0
    %675 = vmatpush1.msra.mxu0 0.0
    %676 = vmatprep.subr.mxu0 0.0
    %677 = vmatpush1.msra.mxu0 0.0
    %678 = vmatprep.subr.mxu0 0.0
    %679 = vmatpush1.msra.mxu0 0.0
    %680 = vmatprep.subr.mxu0 0.0
    %681 = vmatpush1.msra.mxu0 0.0
    %682 = vmatprep.subr.mxu0 0.0
    %683 = vmatpush1.msra.mxu0 0.0
    %684 = vmatprep.subr.mxu0 0.0
    %685 = vmatpush1.msra.mxu0 0.0
    %686 = vmatprep.subr.mxu0 0.0
    %687 = vmatpush1.msra.mxu0 0.0
    %688 = vmatprep.subr.mxu0 0.0
    %689 = vmatpush1.msra.mxu0 0.0
    %690 = vmatprep.subr.mxu0 0.0
    %691 = vmatpush1.msra.mxu0 0.0
    %692 = vmatprep.subr.mxu0 0.0
    %693 = vmatpush1.msra.mxu0 0.0
    %694 = vmatprep.subr.mxu0 0.0
    %695 = vmatpush1.msra.mxu0 0.0
    %696 = vmatprep.subr.mxu0 0.0
    %697 = vmatpush1.msra.mxu0 0.0
    %698 = vmatprep.subr.mxu0 0.0
    %699 = vmatpush1.msra.mxu0 0.0
    %700 = vmatprep.subr.mxu0 0.0
    %701 = vmatpush1.msra.mxu0 0.0
    %702 = vmatprep.subr.mxu0 0.0
    %703 = vmatpush1.msra.mxu0 0.0
    %704 = vmatprep.subr.mxu0 0.0
    %705 = vmatpush1.msra.mxu0 0.0
    %706 = vmatprep.subr.mxu0 0.0
    %707 = vmatpush1.msra.mxu0 0.0
    %708 = vmatprep.subr.mxu0 0.0
    %709 = vmatpush1.msra.mxu0 0.0
    %710 = vmatprep.subr.mxu0 0.0
    %711 = vmatpush1.msra.mxu0 0.0
    %712 = vmatprep.subr.mxu0 0.0
    %713 = vmatpush1.msra.mxu0 0.0
    %714 = vmatprep.subr.mxu0 0.0
    %715 = vmatpush1.msra.mxu0 0.0
    %716 = vmatprep.subr.mxu0 0.0
    %717 = vmatpush1.msra.mxu0 0.0
    %718 = vmatprep.subr.mxu0 0.0
    %719 = vmatpush1.msra.mxu0 0.0
    %720 = vmatprep.subr.mxu0 0.0
    %721 = vmatpush1.msra.mxu0 0.0
    %722 = vmatprep.subr.mxu0 0.0
    %723 = vmatpush1.msra.mxu0 0.0
    %724 = vmatprep.subr.mxu0 0.0
    %725 = vmatpush1.msra.mxu0 0.0
    %726 = vmatprep.mubr.f32.mxu0 0.0
    %727 = vmatmul.mubr.f32.gmra.mrb[0].mxu0 %v660
    %v728 = vpop.f32.mrb[0].mxu0
    %v729 = vadd.f32 0.0, %v728
    %v730 = vpop.f32.mrb[0].mxu0
    %731 = vdwg.mxu0
    %733 = vrot.lane.b32.xlu0 %v656, 64
    %v734 = vpop.permute.xlu0 %733
    %v735 = vsel %vm282, %v734, 0
    %737 = vmatprep.subr.mxu0 0.0
    %738 = vmatpush1.msra.mxu0 %v263
    %739 = vmatprep.subr.mxu0 0.0
    %740 = vmatpush1.msra.mxu0 %v264
    %741 = vmatprep.subr.mxu0 0.0
    %742 = vmatpush1.msra.mxu0 %v265
    %743 = vmatprep.subr.mxu0 0.0
    %744 = vmatpush1.msra.mxu0 %v266
    %745 = vmatprep.subr.mxu0 0.0
    %746 = vmatpush1.msra.mxu0 0.0
    %747 = vmatprep.subr.mxu0 0.0
    %748 = vmatpush1.msra.mxu0 0.0
    %749 = vmatprep.subr.mxu0 0.0
    %750 = vmatpush1.msra.mxu0 0.0
    %751 = vmatprep.subr.mxu0 0.0
    %752 = vmatpush1.msra.mxu0 0.0
    %753 = vmatprep.subr.mxu0 0.0
    %754 = vmatpush1.msra.mxu0 0.0
    %755 = vmatprep.subr.mxu0 0.0
    %756 = vmatpush1.msra.mxu0 0.0
    %757 = vmatprep.subr.mxu0 0.0
    %758 = vmatpush1.msra.mxu0 0.0
    %759 = vmatprep.subr.mxu0 0.0
    %760 = vmatpush1.msra.mxu0 0.0
    %761 = vmatprep.subr.mxu0 0.0
    %762 = vmatpush1.msra.mxu0 0.0
    %763 = vmatprep.subr.mxu0 0.0
    %764 = vmatpush1.msra.mxu0 0.0
    %765 = vmatprep.subr.mxu0 0.0
    %766 = vmatpush1.msra.mxu0 0.0
    %767 = vmatprep.subr.mxu0 0.0
    %768 = vmatpush1.msra.mxu0 0.0
    %769 = vmatprep.subr.mxu0 0.0
    %770 = vmatpush1.msra.mxu0 0.0
    %771 = vmatprep.subr.mxu0 0.0
    %772 = vmatpush1.msra.mxu0 0.0
    %773 = vmatprep.subr.mxu0 0.0
    %774 = vmatpush1.msra.mxu0 0.0
    %775 = vmatprep.subr.mxu0 0.0
    %776 = vmatpush1.msra.mxu0 0.0
    %777 = vmatprep.subr.mxu0 0.0
    %778 = vmatpush1.msra.mxu0 0.0
    %779 = vmatprep.subr.mxu0 0.0
    %780 = vmatpush1.msra.mxu0 0.0
    %781 = vmatprep.subr.mxu0 0.0
    %782 = vmatpush1.msra.mxu0 0.0
    %783 = vmatprep.subr.mxu0 0.0
    %784 = vmatpush1.msra.mxu0 0.0
    %785 = vmatprep.subr.mxu0 0.0
    %786 = vmatpush1.msra.mxu0 0.0
    %787 = vmatprep.subr.mxu0 0.0
    %788 = vmatpush1.msra.mxu0 0.0
    %789 = vmatprep.subr.mxu0 0.0
    %790 = vmatpush1.msra.mxu0 0.0
    %791 = vmatprep.subr.mxu0 0.0
    %792 = vmatpush1.msra.mxu0 0.0
    %793 = vmatprep.subr.mxu0 0.0
    %794 = vmatpush1.msra.mxu0 0.0
    %795 = vmatprep.subr.mxu0 0.0
    %796 = vmatpush1.msra.mxu0 0.0
    %797 = vmatprep.subr.mxu0 0.0
    %798 = vmatpush1.msra.mxu0 0.0
    %799 = vmatprep.subr.mxu0 0.0
    %800 = vmatpush1.msra.mxu0 0.0
    %801 = vmatprep.mubr.f32.mxu0 0.0
    %802 = vmatmul.mubr.f32.gmra.mrb[0].mxu0 %v735
    %v803 = vpop.f32.mrb[0].mxu0
    %v804 = vadd.f32 %v729, %v803
    %v805 = vpop.f32.mrb[0].mxu0
    %806 = vdwg.mxu0
    %v807 = vadd.f32 %v804, %v276
    %v808 = vxor.u32 %v807, 2147483648
    %v809 = vmul.f32 %v808, 1.442695
    %v810 = vpow.pop %v809
    %v811 = vadd.f32 %v810, 1.0
    %v812 = vrcp.pop %v811
    %v813 = vmul.f32 1.0, %v812
    %v814 = vtanh.pop %v807
    %v815 = vmul.f32 %v813, %v555
    %817 = vrot.lane.b32.xlu0 %v814, 32
    %v818 = vpop.permute.xlu0 %817
    %v820 = vmul.f32 %v813, %v818
    %822 = vrot.lane.b32.xlu0 %v820, 32
    %v823 = vpop.permute.xlu0 %822
    %v825 = vadd.f32 %v815, %v823
    %v826 = vtanh.pop %v825
    %828 = vrot.lane.b32.xlu0 %v826, 32
    %v829 = vpop.permute.xlu0 %828
    %v831 = vmul.f32 %v813, %v829
    %832 = vmatprep.subr.mxu0 0.0
    %833 = vmatpush1.msra.mxu0 %v259
    %834 = vmatprep.subr.mxu0 0.0
    %835 = vmatpush1.msra.mxu0 %v260
    %836 = vmatprep.subr.mxu0 0.0
    %837 = vmatpush1.msra.mxu0 %v261
    %838 = vmatprep.subr.mxu0 0.0
    %839 = vmatpush1.msra.mxu0 %v262
    %840 = vmatprep.subr.mxu0 0.0
    %841 = vmatpush1.msra.mxu0 0.0
    %842 = vmatprep.subr.mxu0 0.0
    %843 = vmatpush1.msra.mxu0 0.0
    %844 = vmatprep.subr.mxu0 0.0
    %845 = vmatpush1.msra.mxu0 0.0
    %846 = vmatprep.subr.mxu0 0.0
    %847 = vmatpush1.msra.mxu0 0.0
    %848 = vmatprep.subr.mxu0 0.0
    %849 = vmatpush1.msra.mxu0 0.0
    %850 = vmatprep.subr.mxu0 0.0
    %851 = vmatpush1.msra.mxu0 0.0
    %852 = vmatprep.subr.mxu0 0.0
    %853 = vmatpush1.msra.mxu0 0.0
    %854 = vmatprep.subr.mxu0 0.0
    %855 = vmatpush1.msra.mxu0 0.0
    %856 = vmatprep.subr.mxu0 0.0
    %857 = vmatpush1.msra.mxu0 0.0
    %858 = vmatprep.subr.mxu0 0.0
    %859 = vmatpush1.msra.mxu0 0.0
    %860 = vmatprep.subr.mxu0 0.0
    %861 = vmatpush1.msra.mxu0 0.0
    %862 = vmatprep.subr.mxu0 0.0
    %863 = vmatpush1.msra.mxu0 0.0
    %864 = vmatprep.subr.mxu0 0.0
    %865 = vmatpush1.msra.mxu0 0.0
    %866 = vmatprep.subr.mxu0 0.0
    %867 = vmatpush1.msra.mxu0 0.0
    %868 = vmatprep.subr.mxu0 0.0
    %869 = vmatpush1.msra.mxu0 0.0
    %870 = vmatprep.subr.mxu0 0.0
    %871 = vmatpush1.msra.mxu0 0.0
    %872 = vmatprep.subr.mxu0 0.0
    %873 = vmatpush1.msra.mxu0 0.0
    %874 = vmatprep.subr.mxu0 0.0
    %875 = vmatpush1.msra.mxu0 0.0
    %876 = vmatprep.subr.mxu0 0.0
    %877 = vmatpush1.msra.mxu0 0.0
    %878 = vmatprep.subr.mxu0 0.0
    %879 = vmatpush1.msra.mxu0 0.0
    %880 = vmatprep.subr.mxu0 0.0
    %881 = vmatpush1.msra.mxu0 0.0
    %882 = vmatprep.subr.mxu0 0.0
    %883 = vmatpush1.msra.mxu0 0.0
    %884 = vmatprep.subr.mxu0 0.0
    %885 = vmatpush1.msra.mxu0 0.0
    %886 = vmatprep.subr.mxu0 0.0
    %887 = vmatpush1.msra.mxu0 0.0
    %888 = vmatprep.subr.mxu0 0.0
    %889 = vmatpush1.msra.mxu0 0.0
    %890 = vmatprep.subr.mxu0 0.0
    %891 = vmatpush1.msra.mxu0 0.0
    %892 = vmatprep.subr.mxu0 0.0
    %893 = vmatpush1.msra.mxu0 0.0
    %894 = vmatprep.subr.mxu0 0.0
    %895 = vmatpush1.msra.mxu0 0.0
    %896 = vmatprep.mubr.f32.mxu0 0.0
    %897 = vmatmul.mubr.f32.gmra.mrb[0].mxu0 %v735
    %v898 = vpop.f32.mrb[0].mxu0
    %v899 = vadd.f32 0.0, %v898
    %v900 = vpop.f32.mrb[0].mxu0
    %901 = vdwg.mxu0
    %v902 = vadd.f32 %v253, %v899
    %v903 = vxor.u32 %v902, 2147483648
    %v904 = vmul.f32 %v903, 1.442695
    %v905 = vpow.pop %v904
    %v906 = vadd.f32 %v905, 1.0
    %v907 = vrcp.pop %v906
    %v908 = vmul.f32 1.0, %v907
    %v909 = vtanh.pop %v902
    %v910 = vmul.f32 %v908, %v650
    %912 = vrot.lane.b32.xlu0 %v909, 32
    %v913 = vpop.permute.xlu0 %912
    %v915 = vmul.f32 %v908, %v913
    %917 = vrot.lane.b32.xlu0 %v915, 32
    %v918 = vpop.permute.xlu0 %917
    %v920 = vadd.f32 %v910, %v918
    %v921 = vtanh.pop %v920
    %923 = vrot.lane.b32.xlu0 %v921, 32
    %v924 = vpop.permute.xlu0 %923
    %v926 = vmul.f32 %v908, %v924
    %928 = vrot.lane.b32.xlu0 %v831, 64
    %v929 = vpop.permute.xlu0 %928
    %v930 = vsel %vm282, %v929, 0
    %932 = vmatprep.subr.mxu0 0.0
    %933 = vmatpush1.msra.mxu0 %v267
    %934 = vmatprep.subr.mxu0 0.0
    %935 = vmatpush1.msra.mxu0 %v268
    %936 = vmatprep.subr.mxu0 0.0
    %937 = vmatpush1.msra.mxu0 %v269
    %938 = vmatprep.subr.mxu0 0.0
    %939 = vmatpush1.msra.mxu0 %v270
    %940 = vmatprep.subr.mxu0 0.0
    %941 = vmatpush1.msra.mxu0 0.0
    %942 = vmatprep.subr.mxu0 0.0
    %943 = vmatpush1.msra.mxu0 0.0
    %944 = vmatprep.subr.mxu0 0.0
    %945 = vmatpush1.msra.mxu0 0.0
    %946 = vmatprep.subr.mxu0 0.0
    %947 = vmatpush1.msra.mxu0 0.0
    %948 = vmatprep.subr.mxu0 0.0
    %949 = vmatpush1.msra.mxu0 0.0
    %950 = vmatprep.subr.mxu0 0.0
    %951 = vmatpush1.msra.mxu0 0.0
    %952 = vmatprep.subr.mxu0 0.0
    %953 = vmatpush1.msra.mxu0 0.0
    %954 = vmatprep.subr.mxu0 0.0
    %955 = vmatpush1.msra.mxu0 0.0
    %956 = vmatprep.subr.mxu0 0.0
    %957 = vmatpush1.msra.mxu0 0.0
    %958 = vmatprep.subr.mxu0 0.0
    %959 = vmatpush1.msra.mxu0 0.0
    %960 = vmatprep.subr.mxu0 0.0
    %961 = vmatpush1.msra.mxu0 0.0
    %962 = vmatprep.subr.mxu0 0.0
    %963 = vmatpush1.msra.mxu0 0.0
    %964 = vmatprep.subr.mxu0 0.0
    %965 = vmatpush1.msra.mxu0 0.0
    %966 = vmatprep.subr.mxu0 0.0
    %967 = vmatpush1.msra.mxu0 0.0
    %968 = vmatprep.subr.mxu0 0.0
    %969 = vmatpush1.msra.mxu0 0.0
    %970 = vmatprep.subr.mxu0 0.0
    %971 = vmatpush1.msra.mxu0 0.0
    %972 = vmatprep.subr.mxu0 0.0
    %973 = vmatpush1.msra.mxu0 0.0
    %974 = vmatprep.subr.mxu0 0.0
    %975 = vmatpush1.msra.mxu0 0.0
    %976 = vmatprep.subr.mxu0 0.0
    %977 = vmatpush1.msra.mxu0 0.0
    %978 = vmatprep.subr.mxu0 0.0
    %979 = vmatpush1.msra.mxu0 0.0
    %980 = vmatprep.subr.mxu0 0.0
    %981 = vmatpush1.msra.mxu0 0.0
    %982 = vmatprep.subr.mxu0 0.0
    %983 = vmatpush1.msra.mxu0 0.0
    %984 = vmatprep.subr.mxu0 0.0
    %985 = vmatpush1.msra.mxu0 0.0
    %986 = vmatprep.subr.mxu0 0.0
    %987 = vmatpush1.msra.mxu0 0.0
    %988 = vmatprep.subr.mxu0 0.0
    %989 = vmatpush1.msra.mxu0 0.0
    %990 = vmatprep.subr.mxu0 0.0
    %991 = vmatpush1.msra.mxu0 0.0
    %992 = vmatprep.subr.mxu0 0.0
    %993 = vmatpush1.msra.mxu0 0.0
    %994 = vmatprep.subr.mxu0 0.0
    %995 = vmatpush1.msra.mxu0 0.0
    %996 = vmatprep.mubr.f32.mxu0 0.0
    %997 = vmatmul.mubr.f32.gmra.mrb[0].mxu0 %v930
    %v998 = vpop.f32.mrb[0].mxu0
    %v999 = vadd.f32 0.0, %v998
    %v1000 = vpop.f32.mrb[0].mxu0
    %1001 = vdwg.mxu0
    %1003 = vrot.lane.b32.xlu0 %v926, 64
    %v1004 = vpop.permute.xlu0 %1003
    %v1005 = vsel %vm282, %v1004, 0
    %1007 = vmatprep.subr.mxu0 0.0
    %1008 = vmatpush1.msra.mxu0 %v263
    %1009 = vmatprep.subr.mxu0 0.0
    %1010 = vmatpush1.msra.mxu0 %v264
    %1011 = vmatprep.subr.mxu0 0.0
    %1012 = vmatpush1.msra.mxu0 %v265
    %1013 = vmatprep.subr.mxu0 0.0
    %1014 = vmatpush1.msra.mxu0 %v266
    %1015 = vmatprep.subr.mxu0 0.0
    %1016 = vmatpush1.msra.mxu0 0.0
    %1017 = vmatprep.subr.mxu0 0.0
    %1018 = vmatpush1.msra.mxu0 0.0
    %1019 = vmatprep.subr.mxu0 0.0
    %1020 = vmatpush1.msra.mxu0 0.0
    %1021 = vmatprep.subr.mxu0 0.0
    %1022 = vmatpush1.msra.mxu0 0.0
    %1023 = vmatprep.subr.mxu0 0.0
    %1024 = vmatpush1.msra.mxu0 0.0
    %1025 = vmatprep.subr.mxu0 0.0
    %1026 = vmatpush1.msra.mxu0 0.0
    %1027 = vmatprep.subr.mxu0 0.0
    %1028 = vmatpush1.msra.mxu0 0.0
    %1029 = vmatprep.subr.mxu0 0.0
    %1030 = vmatpush1.msra.mxu0 0.0
    %1031 = vmatprep.subr.mxu0 0.0
    %1032 = vmatpush1.msra.mxu0 0.0
    %1033 = vmatprep.subr.mxu0 0.0
    %1034 = vmatpush1.msra.mxu0 0.0
    %1035 = vmatprep.subr.mxu0 0.0
    %1036 = vmatpush1.msra.mxu0 0.0
    %1037 = vmatprep.subr.mxu0 0.0
    %1038 = vmatpush1.msra.mxu0 0.0
    %1039 = vmatprep.subr.mxu0 0.0
    %1040 = vmatpush1.msra.mxu0 0.0
    %1041 = vmatprep.subr.mxu0 0.0
    %1042 = vmatpush1.msra.mxu0 0.0
    %1043 = vmatprep.subr.mxu0 0.0
    %1044 = vmatpush1.msra.mxu0 0.0
    %1045 = vmatprep.subr.mxu0 0.0
    %1046 = vmatpush1.msra.mxu0 0.0
    %1047 = vmatprep.subr.mxu0 0.0
    %1048 = vmatpush1.msra.mxu0 0.0
    %1049 = vmatprep.subr.mxu0 0.0
    %1050 = vmatpush1.msra.mxu0 0.0
    %1051 = vmatprep.subr.mxu0 0.0
    %1052 = vmatpush1.msra.mxu0 0.0
    %1053 = vmatprep.subr.mxu0 0.0
    %1054 = vmatpush1.msra.mxu0 0.0
    %1055 = vmatprep.subr.mxu0 0.0
    %1056 = vmatpush1.msra.mxu0 0.0
    %1057 = vmatprep.subr.mxu0 0.0
    %1058 = vmatpush1.msra.mxu0 0.0
    %1059 = vmatprep.subr.mxu0 0.0
    %1060 = vmatpush1.msra.mxu0 0.0
    %1061 = vmatprep.subr.mxu0 0.0
    %1062 = vmatpush1.msra.mxu0 0.0
    %1063 = vmatprep.subr.mxu0 0.0
    %1064 = vmatpush1.msra.mxu0 0.0
    %1065 = vmatprep.subr.mxu0 0.0
    %1066 = vmatpush1.msra.mxu0 0.0
    %1067 = vmatprep.subr.mxu0 0.0
    %1068 = vmatpush1.msra.mxu0 0.0
    %1069 = vmatprep.subr.mxu0 0.0
    %1070 = vmatpush1.msra.mxu0 0.0
    %1071 = vmatprep.mubr.f32.mxu0 0.0
    %1072 = vmatmul.mubr.f32.gmra.mrb[0].mxu0 %v1005
    %v1073 = vpop.f32.mrb[0].mxu0
    %v1074 = vadd.f32 %v999, %v1073
    %v1075 = vpop.f32.mrb[0].mxu0
    %1076 = vdwg.mxu0
    %v1077 = vadd.f32 %v1074, %v276
    %v1078 = vxor.u32 %v1077, 2147483648
    %v1079 = vmul.f32 %v1078, 1.442695
    %v1080 = vpow.pop %v1079
    %v1081 = vadd.f32 %v1080, 1.0
    %v1082 = vrcp.pop %v1081
    %v1083 = vmul.f32 1.0, %v1082
    %v1084 = vtanh.pop %v1077
    %v1085 = vmul.f32 %v1083, %v825
    %1087 = vrot.lane.b32.xlu0 %v1084, 32
    %v1088 = vpop.permute.xlu0 %1087
    %v1090 = vmul.f32 %v1083, %v1088
    %1092 = vrot.lane.b32.xlu0 %v1090, 32
    %v1093 = vpop.permute.xlu0 %1092
    %v1095 = vadd.f32 %v1085, %v1093
    %v1096 = vtanh.pop %v1095
    %1098 = vrot.lane.b32.xlu0 %v1096, 32
    %v1099 = vpop.permute.xlu0 %1098
    %v1101 = vmul.f32 %v1083, %v1099
    %1102 = vmatprep.subr.mxu0 0.0
    %1103 = vmatpush1.msra.mxu0 %v259
    %1104 = vmatprep.subr.mxu0 0.0
    %1105 = vmatpush1.msra.mxu0 %v260
    %1106 = vmatprep.subr.mxu0 0.0
    %1107 = vmatpush1.msra.mxu0 %v261
    %1108 = vmatprep.subr.mxu0 0.0
    %1109 = vmatpush1.msra.mxu0 %v262
    %1110 = vmatprep.subr.mxu0 0.0
    %1111 = vmatpush1.msra.mxu0 0.0
    %1112 = vmatprep.subr.mxu0 0.0
    %1113 = vmatpush1.msra.mxu0 0.0
    %1114 = vmatprep.subr.mxu0 0.0
    %1115 = vmatpush1.msra.mxu0 0.0
    %1116 = vmatprep.subr.mxu0 0.0
    %1117 = vmatpush1.msra.mxu0 0.0
    %1118 = vmatprep.subr.mxu0 0.0
    %1119 = vmatpush1.msra.mxu0 0.0
    %1120 = vmatprep.subr.mxu0 0.0
    %1121 = vmatpush1.msra.mxu0 0.0
    %1122 = vmatprep.subr.mxu0 0.0
    %1123 = vmatpush1.msra.mxu0 0.0
    %1124 = vmatprep.subr.mxu0 0.0
    %1125 = vmatpush1.msra.mxu0 0.0
    %1126 = vmatprep.subr.mxu0 0.0
    %1127 = vmatpush1.msra.mxu0 0.0
    %1128 = vmatprep.subr.mxu0 0.0
    %1129 = vmatpush1.msra.mxu0 0.0
    %1130 = vmatprep.subr.mxu0 0.0
    %1131 = vmatpush1.msra.mxu0 0.0
    %1132 = vmatprep.subr.mxu0 0.0
    %1133 = vmatpush1.msra.mxu0 0.0
    %1134 = vmatprep.subr.mxu0 0.0
    %1135 = vmatpush1.msra.mxu0 0.0
    %1136 = vmatprep.subr.mxu0 0.0
    %1137 = vmatpush1.msra.mxu0 0.0
    %1138 = vmatprep.subr.mxu0 0.0
    %1139 = vmatpush1.msra.mxu0 0.0
    %1140 = vmatprep.subr.mxu0 0.0
    %1141 = vmatpush1.msra.mxu0 0.0
    %1142 = vmatprep.subr.mxu0 0.0
    %1143 = vmatpush1.msra.mxu0 0.0
    %1144 = vmatprep.subr.mxu0 0.0
    %1145 = vmatpush1.msra.mxu0 0.0
    %1146 = vmatprep.subr.mxu0 0.0
    %1147 = vmatpush1.msra.mxu0 0.0
    %1148 = vmatprep.subr.mxu0 0.0
    %1149 = vmatpush1.msra.mxu0 0.0
    %1150 = vmatprep.subr.mxu0 0.0
    %1151 = vmatpush1.msra.mxu0 0.0
    %1152 = vmatprep.subr.mxu0 0.0
    %1153 = vmatpush1.msra.mxu0 0.0
    %1154 = vmatprep.subr.mxu0 0.0
    %1155 = vmatpush1.msra.mxu0 0.0
    %1156 = vmatprep.subr.mxu0 0.0
    %1157 = vmatpush1.msra.mxu0 0.0
    %1158 = vmatprep.subr.mxu0 0.0
    %1159 = vmatpush1.msra.mxu0 0.0
    %1160 = vmatprep.subr.mxu0 0.0
    %1161 = vmatpush1.msra.mxu0 0.0
    %1162 = vmatprep.subr.mxu0 0.0
    %1163 = vmatpush1.msra.mxu0 0.0
    %1164 = vmatprep.subr.mxu0 0.0
    %1165 = vmatpush1.msra.mxu0 0.0
    %1166 = vmatprep.mubr.f32.mxu0 0.0
    %1167 = vmatmul.mubr.f32.gmra.mrb[0].mxu0 %v1005
    %v1168 = vpop.f32.mrb[0].mxu0
    %v1169 = vadd.f32 0.0, %v1168
    %v1170 = vpop.f32.mrb[0].mxu0
    %1171 = vdwg.mxu0
    %v1172 = vadd.f32 %v254, %v1169
    %v1173 = vxor.u32 %v1172, 2147483648
    %v1174 = vmul.f32 %v1173, 1.442695
    %v1175 = vpow.pop %v1174
    %v1176 = vadd.f32 %v1175, 1.0
    %v1177 = vrcp.pop %v1176
    %v1178 = vmul.f32 1.0, %v1177
    %v1179 = vtanh.pop %v1172
    %v1180 = vmul.f32 %v1178, %v920
    %1182 = vrot.lane.b32.xlu0 %v1179, 32
    %v1183 = vpop.permute.xlu0 %1182
    %v1185 = vmul.f32 %v1178, %v1183
    %1187 = vrot.lane.b32.xlu0 %v1185, 32
    %v1188 = vpop.permute.xlu0 %1187
    %v1190 = vadd.f32 %v1180, %v1188
    %v1191 = vtanh.pop %v1190
    %1193 = vrot.lane.b32.xlu0 %v1191, 32
    %v1194 = vpop.permute.xlu0 %1193
    %v1196 = vmul.f32 %v1178, %v1194
    %1198 = vrot.lane.b32.xlu0 %v1101, 64
    %v1199 = vpop.permute.xlu0 %1198
    %v1200 = vsel %vm282, %v1199, 0
    %1202 = vmatprep.subr.mxu0 0.0
    %1203 = vmatpush1.msra.mxu0 %v267
    %1204 = vmatprep.subr.mxu0 0.0
    %1205 = vmatpush1.msra.mxu0 %v268
    %1206 = vmatprep.subr.mxu0 0.0
    %1207 = vmatpush1.msra.mxu0 %v269
    %1208 = vmatprep.subr.mxu0 0.0
    %1209 = vmatpush1.msra.mxu0 %v270
    %1210 = vmatprep.subr.mxu0 0.0
    %1211 = vmatpush1.msra.mxu0 0.0
    %1212 = vmatprep.subr.mxu0 0.0
    %1213 = vmatpush1.msra.mxu0 0.0
    %1214 = vmatprep.subr.mxu0 0.0
    %1215 = vmatpush1.msra.mxu0 0.0
    %1216 = vmatprep.subr.mxu0 0.0
    %1217 = vmatpush1.msra.mxu0 0.0
    %1218 = vmatprep.subr.mxu0 0.0
    %1219 = vmatpush1.msra.mxu0 0.0
    %1220 = vmatprep.subr.mxu0 0.0
    %1221 = vmatpush1.msra.mxu0 0.0
    %1222 = vmatprep.subr.mxu0 0.0
    %1223 = vmatpush1.msra.mxu0 0.0
    %1224 = vmatprep.subr.mxu0 0.0
    %1225 = vmatpush1.msra.mxu0 0.0
    %1226 = vmatprep.subr.mxu0 0.0
    %1227 = vmatpush1.msra.mxu0 0.0
    %1228 = vmatprep.subr.mxu0 0.0
    %1229 = vmatpush1.msra.mxu0 0.0
    %1230 = vmatprep.subr.mxu0 0.0
    %1231 = vmatpush1.msra.mxu0 0.0
    %1232 = vmatprep.subr.mxu0 0.0
    %1233 = vmatpush1.msra.mxu0 0.0
    %1234 = vmatprep.subr.mxu0 0.0
    %1235 = vmatpush1.msra.mxu0 0.0
    %1236 = vmatprep.subr.mxu0 0.0
    %1237 = vmatpush1.msra.mxu0 0.0
    %1238 = vmatprep.subr.mxu0 0.0
    %1239 = vmatpush1.msra.mxu0 0.0
    %1240 = vmatprep.subr.mxu0 0.0
    %1241 = vmatpush1.msra.mxu0 0.0
    %1242 = vmatprep.subr.mxu0 0.0
    %1243 = vmatpush1.msra.mxu0 0.0
    %1244 = vmatprep.subr.mxu0 0.0
    %1245 = vmatpush1.msra.mxu0 0.0
    %1246 = vmatprep.subr.mxu0 0.0
    %1247 = vmatpush1.msra.mxu0 0.0
    %1248 = vmatprep.subr.mxu0 0.0
    %1249 = vmatpush1.msra.mxu0 0.0
    %1250 = vmatprep.subr.mxu0 0.0
    %1251 = vmatpush1.msra.mxu0 0.0
    %1252 = vmatprep.subr.mxu0 0.0
    %1253 = vmatpush1.msra.mxu0 0.0
    %1254 = vmatprep.subr.mxu0 0.0
    %1255 = vmatpush1.msra.mxu0 0.0
    %1256 = vmatprep.subr.mxu0 0.0
    %1257 = vmatpush1.msra.mxu0 0.0
    %1258 = vmatprep.subr.mxu0 0.0
    %1259 = vmatpush1.msra.mxu0 0.0
    %1260 = vmatprep.subr.mxu0 0.0
    %1261 = vmatpush1.msra.mxu0 0.0
    %1262 = vmatprep.subr.mxu0 0.0
    %1263 = vmatpush1.msra.mxu0 0.0
    %1264 = vmatprep.subr.mxu0 0.0
    %1265 = vmatpush1.msra.mxu0 0.0
    %1266 = vmatprep.mubr.f32.mxu0 0.0
    %1267 = vmatmul.mubr.f32.gmra.mrb[0].mxu0 %v1200
    %v1268 = vpop.f32.mrb[0].mxu0
    %v1269 = vadd.f32 0.0, %v1268
    %v1270 = vpop.f32.mrb[0].mxu0
    %1271 = vdwg.mxu0
    %1273 = vrot.lane.b32.xlu0 %v1196, 64
    %v1274 = vpop.permute.xlu0 %1273
    %v1275 = vsel %vm282, %v1274, 0
    %1277 = vmatprep.subr.mxu0 0.0
    %1278 = vmatpush1.msra.mxu0 %v263
    %1279 = vmatprep.subr.mxu0 0.0
    %1280 = vmatpush1.msra.mxu0 %v264
    %1281 = vmatprep.subr.mxu0 0.0
    %1282 = vmatpush1.msra.mxu0 %v265
    %1283 = vmatprep.subr.mxu0 0.0
    %1284 = vmatpush1.msra.mxu0 %v266
    %1285 = vmatprep.subr.mxu0 0.0
    %1286 = vmatpush1.msra.mxu0 0.0
    %1287 = vmatprep.subr.mxu0 0.0
    %1288 = vmatpush1.msra.mxu0 0.0
    %1289 = vmatprep.subr.mxu0 0.0
    %1290 = vmatpush1.msra.mxu0 0.0
    %1291 = vmatprep.subr.mxu0 0.0
    %1292 = vmatpush1.msra.mxu0 0.0
    %1293 = vmatprep.subr.mxu0 0.0
    %1294 = vmatpush1.msra.mxu0 0.0
    %1295 = vmatprep.subr.mxu0 0.0
    %1296 = vmatpush1.msra.mxu0 0.0
    %1297 = vmatprep.subr.mxu0 0.0
    %1298 = vmatpush1.msra.mxu0 0.0
    %1299 = vmatprep.subr.mxu0 0.0
    %1300 = vmatpush1.msra.mxu0 0.0
    %1301 = vmatprep.subr.mxu0 0.0
    %1302 = vmatpush1.msra.mxu0 0.0
    %1303 = vmatprep.subr.mxu0 0.0
    %1304 = vmatpush1.msra.mxu0 0.0
    %1305 = vmatprep.subr.mxu0 0.0
    %1306 = vmatpush1.msra.mxu0 0.0
    %1307 = vmatprep.subr.mxu0 0.0
    %1308 = vmatpush1.msra.mxu0 0.0
    %1309 = vmatprep.subr.mxu0 0.0
    %1310 = vmatpush1.msra.mxu0 0.0
    %1311 = vmatprep.subr.mxu0 0.0
    %1312 = vmatpush1.msra.mxu0 0.0
    %1313 = vmatprep.subr.mxu0 0.0
    %1314 = vmatpush1.msra.mxu0 0.0
    %1315 = vmatprep.subr.mxu0 0.0
    %1316 = vmatpush1.msra.mxu0 0.0
    %1317 = vmatprep.subr.mxu0 0.0
    %1318 = vmatpush1.msra.mxu0 0.0
    %1319 = vmatprep.subr.mxu0 0.0
    %1320 = vmatpush1.msra.mxu0 0.0
    %1321 = vmatprep.subr.mxu0 0.0
    %1322 = vmatpush1.msra.mxu0 0.0
    %1323 = vmatprep.subr.mxu0 0.0
    %1324 = vmatpush1.msra.mxu0 0.0
    %1325 = vmatprep.subr.mxu0 0.0
    %1326 = vmatpush1.msra.mxu0 0.0
    %1327 = vmatprep.subr.mxu0 0.0
    %1328 = vmatpush1.msra.mxu0 0.0
    %1329 = vmatprep.subr.mxu0 0.0
    %1330 = vmatpush1.msra.mxu0 0.0
    %1331 = vmatprep.subr.mxu0 0.0
    %1332 = vmatpush1.msra.mxu0 0.0
    %1333 = vmatprep.subr.mxu0 0.0
    %1334 = vmatpush1.msra.mxu0 0.0
    %1335 = vmatprep.subr.mxu0 0.0
    %1336 = vmatpush1.msra.mxu0 0.0
    %1337 = vmatprep.subr.mxu0 0.0
    %1338 = vmatpush1.msra.mxu0 0.0
    %1339 = vmatprep.subr.mxu0 0.0
    %1340 = vmatpush1.msra.mxu0 0.0
    %1341 = vmatprep.mubr.f32.mxu0 0.0
    %1342 = vmatmul.mubr.f32.gmra.mrb[0].mxu0 %v1275
    %v1343 = vpop.f32.mrb[0].mxu0
    %v1344 = vadd.f32 %v1269, %v1343
    %v1345 = vpop.f32.mrb[0].mxu0
    %1346 = vdwg.mxu0
    %v1347 = vadd.f32 %v1344, %v276
    %v1348 = vxor.u32 %v1347, 2147483648
    %v1349 = vmul.f32 %v1348, 1.442695
    %v1350 = vpow.pop %v1349
    %v1351 = vadd.f32 %v1350, 1.0
    %v1352 = vrcp.pop %v1351
    %v1353 = vmul.f32 1.0, %v1352
    %v1354 = vtanh.pop %v1347
    %v1355 = vmul.f32 %v1353, %v1095
    %1357 = vrot.lane.b32.xlu0 %v1354, 32
    %v1358 = vpop.permute.xlu0 %1357
    %v1360 = vmul.f32 %v1353, %v1358
    %1362 = vrot.lane.b32.xlu0 %v1360, 32
    %v1363 = vpop.permute.xlu0 %1362
    %v1365 = vadd.f32 %v1355, %v1363
    %v1366 = vtanh.pop %v1365
    %1368 = vrot.lane.b32.xlu0 %v1366, 32
    %v1369 = vpop.permute.xlu0 %1368
    %v1371 = vmul.f32 %v1353, %v1369
    %1372 = vmatprep.subr.mxu0 0.0
    %1373 = vmatpush1.msra.mxu0 %v259
    %1374 = vmatprep.subr.mxu0 0.0
    %1375 = vmatpush1.msra.mxu0 %v260
    %1376 = vmatprep.subr.mxu0 0.0
    %1377 = vmatpush1.msra.mxu0 %v261
    %1378 = vmatprep.subr.mxu0 0.0
    %1379 = vmatpush1.msra.mxu0 %v262
    %1380 = vmatprep.subr.mxu0 0.0
    %1381 = vmatpush1.msra.mxu0 0.0
    %1382 = vmatprep.subr.mxu0 0.0
    %1383 = vmatpush1.msra.mxu0 0.0
    %1384 = vmatprep.subr.mxu0 0.0
    %1385 = vmatpush1.msra.mxu0 0.0
    %1386 = vmatprep.subr.mxu0 0.0
    %1387 = vmatpush1.msra.mxu0 0.0
    %1388 = vmatprep.subr.mxu0 0.0
    %1389 = vmatpush1.msra.mxu0 0.0
    %1390 = vmatprep.subr.mxu0 0.0
    %1391 = vmatpush1.msra.mxu0 0.0
    %1392 = vmatprep.subr.mxu0 0.0
    %1393 = vmatpush1.msra.mxu0 0.0
    %1394 = vmatprep.subr.mxu0 0.0
    %1395 = vmatpush1.msra.mxu0 0.0
    %1396 = vmatprep.subr.mxu0 0.0
    %1397 = vmatpush1.msra.mxu0 0.0
    %1398 = vmatprep.subr.mxu0 0.0
    %1399 = vmatpush1.msra.mxu0 0.0
    %1400 = vmatprep.subr.mxu0 0.0
    %1401 = vmatpush1.msra.mxu0 0.0
    %1402 = vmatprep.subr.mxu0 0.0
    %1403 = vmatpush1.msra.mxu0 0.0
    %1404 = vmatprep.subr.mxu0 0.0
    %1405 = vmatpush1.msra.mxu0 0.0
    %1406 = vmatprep.subr.mxu0 0.0
    %1407 = vmatpush1.msra.mxu0 0.0
    %1408 = vmatprep.subr.mxu0 0.0
    %1409 = vmatpush1.msra.mxu0 0.0
    %1410 = vmatprep.subr.mxu0 0.0
    %1411 = vmatpush1.msra.mxu0 0.0
    %1412 = vmatprep.subr.mxu0 0.0
    %1413 = vmatpush1.msra.mxu0 0.0
    %1414 = vmatprep.subr.mxu0 0.0
    %1415 = vmatpush1.msra.mxu0 0.0
    %1416 = vmatprep.subr.mxu0 0.0
    %1417 = vmatpush1.msra.mxu0 0.0
    %1418 = vmatprep.subr.mxu0 0.0
    %1419 = vmatpush1.msra.mxu0 0.0
    %1420 = vmatprep.subr.mxu0 0.0
    %1421 = vmatpush1.msra.mxu0 0.0
    %1422 = vmatprep.subr.mxu0 0.0
    %1423 = vmatpush1.msra.mxu0 0.0
    %1424 = vmatprep.subr.mxu0 0.0
    %1425 = vmatpush1.msra.mxu0 0.0
    %1426 = vmatprep.subr.mxu0 0.0
    %1427 = vmatpush1.msra.mxu0 0.0
    %1428 = vmatprep.subr.mxu0 0.0
    %1429 = vmatpush1.msra.mxu0 0.0
    %1430 = vmatprep.subr.mxu0 0.0
    %1431 = vmatpush1.msra.mxu0 0.0
    %1432 = vmatprep.subr.mxu0 0.0
    %1433 = vmatpush1.msra.mxu0 0.0
    %1434 = vmatprep.subr.mxu0 0.0
    %1435 = vmatpush1.msra.mxu0 0.0
    %1436 = vmatprep.mubr.f32.mxu0 0.0
    %1437 = vmatmul.mubr.f32.gmra.mrb[0].mxu0 %v1275
    %v1438 = vpop.f32.mrb[0].mxu0
    %v1439 = vadd.f32 0.0, %v1438
    %v1440 = vpop.f32.mrb[0].mxu0
    %1441 = vdwg.mxu0
    %v1442 = vadd.f32 %v255, %v1439
    %v1443 = vxor.u32 %v1442, 2147483648
    %v1444 = vmul.f32 %v1443, 1.442695
    %v1445 = vpow.pop %v1444
    %v1446 = vadd.f32 %v1445, 1.0
    %v1447 = vrcp.pop %v1446
    %v1448 = vmul.f32 1.0, %v1447
    %v1449 = vtanh.pop %v1442
    %v1450 = vmul.f32 %v1448, %v1190
    %1452 = vrot.lane.b32.xlu0 %v1449, 32
    %v1453 = vpop.permute.xlu0 %1452
    %v1455 = vmul.f32 %v1448, %v1453
    %1457 = vrot.lane.b32.xlu0 %v1455, 32
    %v1458 = vpop.permute.xlu0 %1457
    %v1460 = vadd.f32 %v1450, %v1458
    %v1461 = vtanh.pop %v1460
    %1463 = vrot.lane.b32.xlu0 %v1461, 32
    %v1464 = vpop.permute.xlu0 %1463
    %v1466 = vmul.f32 %v1448, %v1464
    %1468 = vrot.lane.b32.xlu0 %v1371, 64
    %v1469 = vpop.permute.xlu0 %1468
    %v1470 = vsel %vm282, %v1469, 0
    %1472 = vmatprep.subr.mxu0 0.0
    %1473 = vmatpush1.msra.mxu0 %v267
    %1474 = vmatprep.subr.mxu0 0.0
    %1475 = vmatpush1.msra.mxu0 %v268
    %1476 = vmatprep.subr.mxu0 0.0
    %1477 = vmatpush1.msra.mxu0 %v269
    %1478 = vmatprep.subr.mxu0 0.0
    %1479 = vmatpush1.msra.mxu0 %v270
    %1480 = vmatprep.subr.mxu0 0.0
    %1481 = vmatpush1.msra.mxu0 0.0
    %1482 = vmatprep.subr.mxu0 0.0
    %1483 = vmatpush1.msra.mxu0 0.0
    %1484 = vmatprep.subr.mxu0 0.0
    %1485 = vmatpush1.msra.mxu0 0.0
    %1486 = vmatprep.subr.mxu0 0.0
    %1487 = vmatpush1.msra.mxu0 0.0
    %1488 = vmatprep.subr.mxu0 0.0
    %1489 = vmatpush1.msra.mxu0 0.0
    %1490 = vmatprep.subr.mxu0 0.0
    %1491 = vmatpush1.msra.mxu0 0.0
    %1492 = vmatprep.subr.mxu0 0.0
    %1493 = vmatpush1.msra.mxu0 0.0
    %1494 = vmatprep.subr.mxu0 0.0
    %1495 = vmatpush1.msra.mxu0 0.0
    %1496 = vmatprep.subr.mxu0 0.0
    %1497 = vmatpush1.msra.mxu0 0.0
    %1498 = vmatprep.subr.mxu0 0.0
    %1499 = vmatpush1.msra.mxu0 0.0
    %1500 = vmatprep.subr.mxu0 0.0
    %1501 = vmatpush1.msra.mxu0 0.0
    %1502 = vmatprep.subr.mxu0 0.0
    %1503 = vmatpush1.msra.mxu0 0.0
    %1504 = vmatprep.subr.mxu0 0.0
    %1505 = vmatpush1.msra.mxu0 0.0
    %1506 = vmatprep.subr.mxu0 0.0
    %1507 = vmatpush1.msra.mxu0 0.0
    %1508 = vmatprep.subr.mxu0 0.0
    %1509 = vmatpush1.msra.mxu0 0.0
    %1510 = vmatprep.subr.mxu0 0.0
    %1511 = vmatpush1.msra.mxu0 0.0
    %1512 = vmatprep.subr.mxu0 0.0
    %1513 = vmatpush1.msra.mxu0 0.0
    %1514 = vmatprep.subr.mxu0 0.0
    %1515 = vmatpush1.msra.mxu0 0.0
    %1516 = vmatprep.subr.mxu0 0.0
    %1517 = vmatpush1.msra.mxu0 0.0
    %1518 = vmatprep.subr.mxu0 0.0
    %1519 = vmatpush1.msra.mxu0 0.0
    %1520 = vmatprep.subr.mxu0 0.0
    %1521 = vmatpush1.msra.mxu0 0.0
    %1522 = vmatprep.subr.mxu0 0.0
    %1523 = vmatpush1.msra.mxu0 0.0
    %1524 = vmatprep.subr.mxu0 0.0
    %1525 = vmatpush1.msra.mxu0 0.0
    %1526 = vmatprep.subr.mxu0 0.0
    %1527 = vmatpush1.msra.mxu0 0.0
    %1528 = vmatprep.subr.mxu0 0.0
    %1529 = vmatpush1.msra.mxu0 0.0
    %1530 = vmatprep.subr.mxu0 0.0
    %1531 = vmatpush1.msra.mxu0 0.0
    %1532 = vmatprep.subr.mxu0 0.0
    %1533 = vmatpush1.msra.mxu0 0.0
    %1534 = vmatprep.subr.mxu0 0.0
    %1535 = vmatpush1.msra.mxu0 0.0
    %1536 = vmatprep.mubr.f32.mxu0 0.0
    %1537 = vmatmul.mubr.f32.gmra.mrb[0].mxu0 %v1470
    %v1538 = vpop.f32.mrb[0].mxu0
    %v1539 = vadd.f32 0.0, %v1538
    %v1540 = vpop.f32.mrb[0].mxu0
    %1541 = vdwg.mxu0
    %1543 = vrot.lane.b32.xlu0 %v1466, 64
    %v1544 = vpop.permute.xlu0 %1543
    %v1545 = vsel %vm282, %v1544, 0
    %1547 = vmatprep.subr.mxu0 0.0
    %1548 = vmatpush1.msra.mxu0 %v263
    %1549 = vmatprep.subr.mxu0 0.0
    %1550 = vmatpush1.msra.mxu0 %v264
    %1551 = vmatprep.subr.mxu0 0.0
    %1552 = vmatpush1.msra.mxu0 %v265
    %1553 = vmatprep.subr.mxu0 0.0
    %1554 = vmatpush1.msra.mxu0 %v266
    %1555 = vmatprep.subr.mxu0 0.0
    %1556 = vmatpush1.msra.mxu0 0.0
    %1557 = vmatprep.subr.mxu0 0.0
    %1558 = vmatpush1.msra.mxu0 0.0
    %1559 = vmatprep.subr.mxu0 0.0
    %1560 = vmatpush1.msra.mxu0 0.0
    %1561 = vmatprep.subr.mxu0 0.0
    %1562 = vmatpush1.msra.mxu0 0.0
    %1563 = vmatprep.subr.mxu0 0.0
    %1564 = vmatpush1.msra.mxu0 0.0
    %1565 = vmatprep.subr.mxu0 0.0
    %1566 = vmatpush1.msra.mxu0 0.0
    %1567 = vmatprep.subr.mxu0 0.0
    %1568 = vmatpush1.msra.mxu0 0.0
    %1569 = vmatprep.subr.mxu0 0.0
    %1570 = vmatpush1.msra.mxu0 0.0
    %1571 = vmatprep.subr.mxu0 0.0
    %1572 = vmatpush1.msra.mxu0 0.0
    %1573 = vmatprep.subr.mxu0 0.0
    %1574 = vmatpush1.msra.mxu0 0.0
    %1575 = vmatprep.subr.mxu0 0.0
    %1576 = vmatpush1.msra.mxu0 0.0
    %1577 = vmatprep.subr.mxu0 0.0
    %1578 = vmatpush1.msra.mxu0 0.0
    %1579 = vmatprep.subr.mxu0 0.0
    %1580 = vmatpush1.msra.mxu0 0.0
    %1581 = vmatprep.subr.mxu0 0.0
    %1582 = vmatpush1.msra.mxu0 0.0
    %1583 = vmatprep.subr.mxu0 0.0
    %1584 = vmatpush1.msra.mxu0 0.0
    %1585 = vmatprep.subr.mxu0 0.0
    %1586 = vmatpush1.msra.mxu0 0.0
    %1587 = vmatprep.subr.mxu0 0.0
    %1588 = vmatpush1.msra.mxu0 0.0
    %1589 = vmatprep.subr.mxu0 0.0
    %1590 = vmatpush1.msra.mxu0 0.0
    %1591 = vmatprep.subr.mxu0 0.0
    %1592 = vmatpush1.msra.mxu0 0.0
    %1593 = vmatprep.subr.mxu0 0.0
    %1594 = vmatpush1.msra.mxu0 0.0
    %1595 = vmatprep.subr.mxu0 0.0
    %1596 = vmatpush1.msra.mxu0 0.0
    %1597 = vmatprep.subr.mxu0 0.0
    %1598 = vmatpush1.msra.mxu0 0.0
    %1599 = vmatprep.subr.mxu0 0.0
    %1600 = vmatpush1.msra.mxu0 0.0
    %1601 = vmatprep.subr.mxu0 0.0
    %1602 = vmatpush1.msra.mxu0 0.0
    %1603 = vmatprep.subr.mxu0 0.0
    %1604 = vmatpush1.msra.mxu0 0.0
    %1605 = vmatprep.subr.mxu0 0.0
    %1606 = vmatpush1.msra.mxu0 0.0
    %1607 = vmatprep.subr.mxu0 0.0
    %1608 = vmatpush1.msra.mxu0 0.0
    %1609 = vmatprep.subr.mxu0 0.0
    %1610 = vmatpush1.msra.mxu0 0.0
    %1611 = vmatprep.mubr.f32.mxu0 0.0
    %1612 = vmatmul.mubr.f32.gmra.mrb[0].mxu0 %v1545
    %v1613 = vpop.f32.mrb[0].mxu0
    %v1614 = vadd.f32 %v1539, %v1613
    %v1615 = vpop.f32.mrb[0].mxu0
    %1616 = vdwg.mxu0
    %v1617 = vadd.f32 %v1614, %v276
    %v1618 = vxor.u32 %v1617, 2147483648
    %v1619 = vmul.f32 %v1618, 1.442695
    %v1620 = vpow.pop %v1619
    %v1621 = vadd.f32 %v1620, 1.0
    %v1622 = vrcp.pop %v1621
    %v1623 = vmul.f32 1.0, %v1622
    %v1624 = vtanh.pop %v1617
    %v1625 = vmul.f32 %v1623, %v1365
    %1627 = vrot.lane.b32.xlu0 %v1624, 32
    %v1628 = vpop.permute.xlu0 %1627
    %v1630 = vmul.f32 %v1623, %v1628
    %1632 = vrot.lane.b32.xlu0 %v1630, 32
    %v1633 = vpop.permute.xlu0 %1632
    %v1635 = vadd.f32 %v1625, %v1633
    %v1636 = vtanh.pop %v1635
    %1638 = vrot.lane.b32.xlu0 %v1636, 32
    %v1639 = vpop.permute.xlu0 %1638
    %v1641 = vmul.f32 %v1623, %v1639
    %1642 = vmatprep.subr.mxu0 0.0
    %1643 = vmatpush1.msra.mxu0 %v259
    %1644 = vmatprep.subr.mxu0 0.0
    %1645 = vmatpush1.msra.mxu0 %v260
    %1646 = vmatprep.subr.mxu0 0.0
    %1647 = vmatpush1.msra.mxu0 %v261
    %1648 = vmatprep.subr.mxu0 0.0
    %1649 = vmatpush1.msra.mxu0 %v262
    %1650 = vmatprep.subr.mxu0 0.0
    %1651 = vmatpush1.msra.mxu0 0.0
    %1652 = vmatprep.subr.mxu0 0.0
    %1653 = vmatpush1.msra.mxu0 0.0
    %1654 = vmatprep.subr.mxu0 0.0
    %1655 = vmatpush1.msra.mxu0 0.0
    %1656 = vmatprep.subr.mxu0 0.0
    %1657 = vmatpush1.msra.mxu0 0.0
    %1658 = vmatprep.subr.mxu0 0.0
    %1659 = vmatpush1.msra.mxu0 0.0
    %1660 = vmatprep.subr.mxu0 0.0
    %1661 = vmatpush1.msra.mxu0 0.0
    %1662 = vmatprep.subr.mxu0 0.0
    %1663 = vmatpush1.msra.mxu0 0.0
    %1664 = vmatprep.subr.mxu0 0.0
    %1665 = vmatpush1.msra.mxu0 0.0
    %1666 = vmatprep.subr.mxu0 0.0
    %1667 = vmatpush1.msra.mxu0 0.0
    %1668 = vmatprep.subr.mxu0 0.0
    %1669 = vmatpush1.msra.mxu0 0.0
    %1670 = vmatprep.subr.mxu0 0.0
    %1671 = vmatpush1.msra.mxu0 0.0
    %1672 = vmatprep.subr.mxu0 0.0
    %1673 = vmatpush1.msra.mxu0 0.0
    %1674 = vmatprep.subr.mxu0 0.0
    %1675 = vmatpush1.msra.mxu0 0.0
    %1676 = vmatprep.subr.mxu0 0.0
    %1677 = vmatpush1.msra.mxu0 0.0
    %1678 = vmatprep.subr.mxu0 0.0
    %1679 = vmatpush1.msra.mxu0 0.0
    %1680 = vmatprep.subr.mxu0 0.0
    %1681 = vmatpush1.msra.mxu0 0.0
    %1682 = vmatprep.subr.mxu0 0.0
    %1683 = vmatpush1.msra.mxu0 0.0
    %1684 = vmatprep.subr.mxu0 0.0
    %1685 = vmatpush1.msra.mxu0 0.0
    %1686 = vmatprep.subr.mxu0 0.0
    %1687 = vmatpush1.msra.mxu0 0.0
    %1688 = vmatprep.subr.mxu0 0.0
    %1689 = vmatpush1.msra.mxu0 0.0
    %1690 = vmatprep.subr.mxu0 0.0
    %1691 = vmatpush1.msra.mxu0 0.0
    %1692 = vmatprep.subr.mxu0 0.0
    %1693 = vmatpush1.msra.mxu0 0.0
    %1694 = vmatprep.subr.mxu0 0.0
    %1695 = vmatpush1.msra.mxu0 0.0
    %1696 = vmatprep.subr.mxu0 0.0
    %1697 = vmatpush1.msra.mxu0 0.0
    %1698 = vmatprep.subr.mxu0 0.0
    %1699 = vmatpush1.msra.mxu0 0.0
    %1700 = vmatprep.subr.mxu0 0.0
    %1701 = vmatpush1.msra.mxu0 0.0
    %1702 = vmatprep.subr.mxu0 0.0
    %1703 = vmatpush1.msra.mxu0 0.0
    %1704 = vmatprep.subr.mxu0 0.0
    %1705 = vmatpush1.msra.mxu0 0.0
    %1706 = vmatprep.mubr.f32.mxu0 0.0
    %1707 = vmatmul.mubr.f32.gmra.mrb[0].mxu0 %v1545
    %v1708 = vpop.f32.mrb[0].mxu0
    %v1709 = vadd.f32 0.0, %v1708
    %v1710 = vpop.f32.mrb[0].mxu0
    %1711 = vdwg.mxu0
    %v1712 = vadd.f32 %v256, %v1709
    %v1713 = vxor.u32 %v1712, 2147483648
    %v1714 = vmul.f32 %v1713, 1.442695
    %v1715 = vpow.pop %v1714
    %v1716 = vadd.f32 %v1715, 1.0
    %v1717 = vrcp.pop %v1716
    %v1718 = vmul.f32 1.0, %v1717
    %v1719 = vtanh.pop %v1712
    %v1720 = vmul.f32 %v1718, %v1460
    %1722 = vrot.lane.b32.xlu0 %v1719, 32
    %v1723 = vpop.permute.xlu0 %1722
    %v1725 = vmul.f32 %v1718, %v1723
    %1727 = vrot.lane.b32.xlu0 %v1725, 32
    %v1728 = vpop.permute.xlu0 %1727
    %v1730 = vadd.f32 %v1720, %v1728
    %v1731 = vtanh.pop %v1730
    %1733 = vrot.lane.b32.xlu0 %v1731, 32
    %v1734 = vpop.permute.xlu0 %1733
    %v1736 = vmul.f32 %v1718, %v1734
    %1738 = vrot.lane.b32.xlu0 %v1641, 64
    %v1739 = vpop.permute.xlu0 %1738
    %v1740 = vsel %vm282, %v1739, 0
    %1742 = vmatprep.subr.mxu0 0.0
    %1743 = vmatpush1.msra.mxu0 %v267
    %1744 = vmatprep.subr.mxu0 0.0
    %1745 = vmatpush1.msra.mxu0 %v268
    %1746 = vmatprep.subr.mxu0 0.0
    %1747 = vmatpush1.msra.mxu0 %v269
    %1748 = vmatprep.subr.mxu0 0.0
    %1749 = vmatpush1.msra.mxu0 %v270
    %1750 = vmatprep.subr.mxu0 0.0
    %1751 = vmatpush1.msra.mxu0 0.0
    %1752 = vmatprep.subr.mxu0 0.0
    %1753 = vmatpush1.msra.mxu0 0.0
    %1754 = vmatprep.subr.mxu0 0.0
    %1755 = vmatpush1.msra.mxu0 0.0
    %1756 = vmatprep.subr.mxu0 0.0
    %1757 = vmatpush1.msra.mxu0 0.0
    %1758 = vmatprep.subr.mxu0 0.0
    %1759 = vmatpush1.msra.mxu0 0.0
    %1760 = vmatprep.subr.mxu0 0.0
    %1761 = vmatpush1.msra.mxu0 0.0
    %1762 = vmatprep.subr.mxu0 0.0
    %1763 = vmatpush1.msra.mxu0 0.0
    %1764 = vmatprep.subr.mxu0 0.0
    %1765 = vmatpush1.msra.mxu0 0.0
    %1766 = vmatprep.subr.mxu0 0.0
    %1767 = vmatpush1.msra.mxu0 0.0
    %1768 = vmatprep.subr.mxu0 0.0
    %1769 = vmatpush1.msra.mxu0 0.0
    %1770 = vmatprep.subr.mxu0 0.0
    %1771 = vmatpush1.msra.mxu0 0.0
    %1772 = vmatprep.subr.mxu0 0.0
    %1773 = vmatpush1.msra.mxu0 0.0
    %1774 = vmatprep.subr.mxu0 0.0
    %1775 = vmatpush1.msra.mxu0 0.0
    %1776 = vmatprep.subr.mxu0 0.0
    %1777 = vmatpush1.msra.mxu0 0.0
    %1778 = vmatprep.subr.mxu0 0.0
    %1779 = vmatpush1.msra.mxu0 0.0
    %1780 = vmatprep.subr.mxu0 0.0
    %1781 = vmatpush1.msra.mxu0 0.0
    %1782 = vmatprep.subr.mxu0 0.0
    %1783 = vmatpush1.msra.mxu0 0.0
    %1784 = vmatprep.subr.mxu0 0.0
    %1785 = vmatpush1.msra.mxu0 0.0
    %1786 = vmatprep.subr.mxu0 0.0
    %1787 = vmatpush1.msra.mxu0 0.0
    %1788 = vmatprep.subr.mxu0 0.0
    %1789 = vmatpush1.msra.mxu0 0.0
    %1790 = vmatprep.subr.mxu0 0.0
    %1791 = vmatpush1.msra.mxu0 0.0
    %1792 = vmatprep.subr.mxu0 0.0
    %1793 = vmatpush1.msra.mxu0 0.0
    %1794 = vmatprep.subr.mxu0 0.0
    %1795 = vmatpush1.msra.mxu0 0.0
    %1796 = vmatprep.subr.mxu0 0.0
    %1797 = vmatpush1.msra.mxu0 0.0
    %1798 = vmatprep.subr.mxu0 0.0
    %1799 = vmatpush1.msra.mxu0 0.0
    %1800 = vmatprep.subr.mxu0 0.0
    %1801 = vmatpush1.msra.mxu0 0.0
    %1802 = vmatprep.subr.mxu0 0.0
    %1803 = vmatpush1.msra.mxu0 0.0
    %1804 = vmatprep.subr.mxu0 0.0
    %1805 = vmatpush1.msra.mxu0 0.0
    %1806 = vmatprep.mubr.f32.mxu0 0.0
    %1807 = vmatmul.mubr.f32.gmra.mrb[0].mxu0 %v1740
    %v1808 = vpop.f32.mrb[0].mxu0
    %v1809 = vadd.f32 0.0, %v1808
    %v1810 = vpop.f32.mrb[0].mxu0
    %1811 = vdwg.mxu0
    %1813 = vrot.lane.b32.xlu0 %v1736, 64
    %v1814 = vpop.permute.xlu0 %1813
    %v1815 = vsel %vm282, %v1814, 0
    %1817 = vmatprep.subr.mxu0 0.0
    %1818 = vmatpush1.msra.mxu0 %v263
    %1819 = vmatprep.subr.mxu0 0.0
    %1820 = vmatpush1.msra.mxu0 %v264
    %1821 = vmatprep.subr.mxu0 0.0
    %1822 = vmatpush1.msra.mxu0 %v265
    %1823 = vmatprep.subr.mxu0 0.0
    %1824 = vmatpush1.msra.mxu0 %v266
    %1825 = vmatprep.subr.mxu0 0.0
    %1826 = vmatpush1.msra.mxu0 0.0
    %1827 = vmatprep.subr.mxu0 0.0
    %1828 = vmatpush1.msra.mxu0 0.0
    %1829 = vmatprep.subr.mxu0 0.0
    %1830 = vmatpush1.msra.mxu0 0.0
    %1831 = vmatprep.subr.mxu0 0.0
    %1832 = vmatpush1.msra.mxu0 0.0
    %1833 = vmatprep.subr.mxu0 0.0
    %1834 = vmatpush1.msra.mxu0 0.0
    %1835 = vmatprep.subr.mxu0 0.0
    %1836 = vmatpush1.msra.mxu0 0.0
    %1837 = vmatprep.subr.mxu0 0.0
    %1838 = vmatpush1.msra.mxu0 0.0
    %1839 = vmatprep.subr.mxu0 0.0
    %1840 = vmatpush1.msra.mxu0 0.0
    %1841 = vmatprep.subr.mxu0 0.0
    %1842 = vmatpush1.msra.mxu0 0.0
    %1843 = vmatprep.subr.mxu0 0.0
    %1844 = vmatpush1.msra.mxu0 0.0
    %1845 = vmatprep.subr.mxu0 0.0
    %1846 = vmatpush1.msra.mxu0 0.0
    %1847 = vmatprep.subr.mxu0 0.0
    %1848 = vmatpush1.msra.mxu0 0.0
    %1849 = vmatprep.subr.mxu0 0.0
    %1850 = vmatpush1.msra.mxu0 0.0
    %1851 = vmatprep.subr.mxu0 0.0
    %1852 = vmatpush1.msra.mxu0 0.0
    %1853 = vmatprep.subr.mxu0 0.0
    %1854 = vmatpush1.msra.mxu0 0.0
    %1855 = vmatprep.subr.mxu0 0.0
    %1856 = vmatpush1.msra.mxu0 0.0
    %1857 = vmatprep.subr.mxu0 0.0
    %1858 = vmatpush1.msra.mxu0 0.0
    %1859 = vmatprep.subr.mxu0 0.0
    %1860 = vmatpush1.msra.mxu0 0.0
    %1861 = vmatprep.subr.mxu0 0.0
    %1862 = vmatpush1.msra.mxu0 0.0
    %1863 = vmatprep.subr.mxu0 0.0
    %1864 = vmatpush1.msra.mxu0 0.0
    %1865 = vmatprep.subr.mxu0 0.0
    %1866 = vmatpush1.msra.mxu0 0.0
    %1867 = vmatprep.subr.mxu0 0.0
    %1868 = vmatpush1.msra.mxu0 0.0
    %1869 = vmatprep.subr.mxu0 0.0
    %1870 = vmatpush1.msra.mxu0 0.0
    %1871 = vmatprep.subr.mxu0 0.0
    %1872 = vmatpush1.msra.mxu0 0.0
    %1873 = vmatprep.subr.mxu0 0.0
    %1874 = vmatpush1.msra.mxu0 0.0
    %1875 = vmatprep.subr.mxu0 0.0
    %1876 = vmatpush1.msra.mxu0 0.0
    %1877 = vmatprep.subr.mxu0 0.0
    %1878 = vmatpush1.msra.mxu0 0.0
    %1879 = vmatprep.subr.mxu0 0.0
    %1880 = vmatpush1.msra.mxu0 0.0
    %1881 = vmatprep.mubr.f32.mxu0 0.0
    %1882 = vmatmul.mubr.f32.gmra.mrb[0].mxu0 %v1815
    %v1883 = vpop.f32.mrb[0].mxu0
    %v1884 = vadd.f32 %v1809, %v1883
    %v1885 = vpop.f32.mrb[0].mxu0
    %1886 = vdwg.mxu0
    %v1887 = vadd.f32 %v1884, %v276
    %v1888 = vxor.u32 %v1887, 2147483648
    %v1889 = vmul.f32 %v1888, 1.442695
    %v1890 = vpow.pop %v1889
    %v1891 = vadd.f32 %v1890, 1.0
    %v1892 = vrcp.pop %v1891
    %v1893 = vmul.f32 1.0, %v1892
    %v1894 = vtanh.pop %v1887
    %v1895 = vmul.f32 %v1893, %v1635
    %1897 = vrot.lane.b32.xlu0 %v1894, 32
    %v1898 = vpop.permute.xlu0 %1897
    %v1900 = vmul.f32 %v1893, %v1898
    %1902 = vrot.lane.b32.xlu0 %v1900, 32
    %v1903 = vpop.permute.xlu0 %1902
    %v1905 = vadd.f32 %v1895, %v1903
    %v1906 = vtanh.pop %v1905
    %1908 = vrot.lane.b32.xlu0 %v1906, 32
    %v1909 = vpop.permute.xlu0 %1908
    %v1911 = vmul.f32 %v1893, %v1909
    %1912 = vmatprep.subr.mxu0 0.0
    %1913 = vmatpush1.msra.mxu0 %v259
    %1914 = vmatprep.subr.mxu0 0.0
    %1915 = vmatpush1.msra.mxu0 %v260
    %1916 = vmatprep.subr.mxu0 0.0
    %1917 = vmatpush1.msra.mxu0 %v261
    %1918 = vmatprep.subr.mxu0 0.0
    %1919 = vmatpush1.msra.mxu0 %v262
    %1920 = vmatprep.subr.mxu0 0.0
    %1921 = vmatpush1.msra.mxu0 0.0
    %1922 = vmatprep.subr.mxu0 0.0
    %1923 = vmatpush1.msra.mxu0 0.0
    %1924 = vmatprep.subr.mxu0 0.0
    %1925 = vmatpush1.msra.mxu0 0.0
    %1926 = vmatprep.subr.mxu0 0.0
    %1927 = vmatpush1.msra.mxu0 0.0
    %1928 = vmatprep.subr.mxu0 0.0
    %1929 = vmatpush1.msra.mxu0 0.0
    %1930 = vmatprep.subr.mxu0 0.0
    %1931 = vmatpush1.msra.mxu0 0.0
    %1932 = vmatprep.subr.mxu0 0.0
    %1933 = vmatpush1.msra.mxu0 0.0
    %1934 = vmatprep.subr.mxu0 0.0
    %1935 = vmatpush1.msra.mxu0 0.0
    %1936 = vmatprep.subr.mxu0 0.0
    %1937 = vmatpush1.msra.mxu0 0.0
    %1938 = vmatprep.subr.mxu0 0.0
    %1939 = vmatpush1.msra.mxu0 0.0
    %1940 = vmatprep.subr.mxu0 0.0
    %1941 = vmatpush1.msra.mxu0 0.0
    %1942 = vmatprep.subr.mxu0 0.0
    %1943 = vmatpush1.msra.mxu0 0.0
    %1944 = vmatprep.subr.mxu0 0.0
    %1945 = vmatpush1.msra.mxu0 0.0
    %1946 = vmatprep.subr.mxu0 0.0
    %1947 = vmatpush1.msra.mxu0 0.0
    %1948 = vmatprep.subr.mxu0 0.0
    %1949 = vmatpush1.msra.mxu0 0.0
    %1950 = vmatprep.subr.mxu0 0.0
    %1951 = vmatpush1.msra.mxu0 0.0
    %1952 = vmatprep.subr.mxu0 0.0
    %1953 = vmatpush1.msra.mxu0 0.0
    %1954 = vmatprep.subr.mxu0 0.0
    %1955 = vmatpush1.msra.mxu0 0.0
    %1956 = vmatprep.subr.mxu0 0.0
    %1957 = vmatpush1.msra.mxu0 0.0
    %1958 = vmatprep.subr.mxu0 0.0
    %1959 = vmatpush1.msra.mxu0 0.0
    %1960 = vmatprep.subr.mxu0 0.0
    %1961 = vmatpush1.msra.mxu0 0.0
    %1962 = vmatprep.subr.mxu0 0.0
    %1963 = vmatpush1.msra.mxu0 0.0
    %1964 = vmatprep.subr.mxu0 0.0
    %1965 = vmatpush1.msra.mxu0 0.0
    %1966 = vmatprep.subr.mxu0 0.0
    %1967 = vmatpush1.msra.mxu0 0.0
    %1968 = vmatprep.subr.mxu0 0.0
    %1969 = vmatpush1.msra.mxu0 0.0
    %1970 = vmatprep.subr.mxu0 0.0
    %1971 = vmatpush1.msra.mxu0 0.0
    %1972 = vmatprep.subr.mxu0 0.0
    %1973 = vmatpush1.msra.mxu0 0.0
    %1974 = vmatprep.subr.mxu0 0.0
    %1975 = vmatpush1.msra.mxu0 0.0
    %1976 = vmatprep.mubr.f32.mxu0 0.0
    %1977 = vmatmul.mubr.f32.gmra.mrb[0].mxu0 %v1815
    %v1978 = vpop.f32.mrb[0].mxu0
    %v1979 = vadd.f32 0.0, %v1978
    %v1980 = vpop.f32.mrb[0].mxu0
    %1981 = vdwg.mxu0
    %v1982 = vadd.f32 %v257, %v1979
    %v1983 = vxor.u32 %v1982, 2147483648
    %v1984 = vmul.f32 %v1983, 1.442695
    %v1985 = vpow.pop %v1984
    %v1986 = vadd.f32 %v1985, 1.0
    %v1987 = vrcp.pop %v1986
    %v1988 = vmul.f32 1.0, %v1987
    %v1989 = vtanh.pop %v1982
    %v1990 = vmul.f32 %v1988, %v1730
    %1992 = vrot.lane.b32.xlu0 %v1989, 32
    %v1993 = vpop.permute.xlu0 %1992
    %v1995 = vmul.f32 %v1988, %v1993
    %1997 = vrot.lane.b32.xlu0 %v1995, 32
    %v1998 = vpop.permute.xlu0 %1997
    %v2000 = vadd.f32 %v1990, %v1998
    %v2001 = vtanh.pop %v2000
    %2003 = vrot.lane.b32.xlu0 %v2001, 32
    %v2004 = vpop.permute.xlu0 %2003
    %v2006 = vmul.f32 %v1988, %v2004
    %2008 = vrot.lane.b32.xlu0 %v1911, 64
    %v2009 = vpop.permute.xlu0 %2008
    %v2010 = vsel %vm282, %v2009, 0
    %2012 = vmatprep.subr.mxu0 0.0
    %2013 = vmatpush1.msra.mxu0 %v267
    %2014 = vmatprep.subr.mxu0 0.0
    %2015 = vmatpush1.msra.mxu0 %v268
    %2016 = vmatprep.subr.mxu0 0.0
    %2017 = vmatpush1.msra.mxu0 %v269
    %2018 = vmatprep.subr.mxu0 0.0
    %2019 = vmatpush1.msra.mxu0 %v270
    %2020 = vmatprep.subr.mxu0 0.0
    %2021 = vmatpush1.msra.mxu0 0.0
    %2022 = vmatprep.subr.mxu0 0.0
    %2023 = vmatpush1.msra.mxu0 0.0
    %2024 = vmatprep.subr.mxu0 0.0
    %2025 = vmatpush1.msra.mxu0 0.0
    %2026 = vmatprep.subr.mxu0 0.0
    %2027 = vmatpush1.msra.mxu0 0.0
    %2028 = vmatprep.subr.mxu0 0.0
    %2029 = vmatpush1.msra.mxu0 0.0
    %2030 = vmatprep.subr.mxu0 0.0
    %2031 = vmatpush1.msra.mxu0 0.0
    %2032 = vmatprep.subr.mxu0 0.0
    %2033 = vmatpush1.msra.mxu0 0.0
    %2034 = vmatprep.subr.mxu0 0.0
    %2035 = vmatpush1.msra.mxu0 0.0
    %2036 = vmatprep.subr.mxu0 0.0
    %2037 = vmatpush1.msra.mxu0 0.0
    %2038 = vmatprep.subr.mxu0 0.0
    %2039 = vmatpush1.msra.mxu0 0.0
    %2040 = vmatprep.subr.mxu0 0.0
    %2041 = vmatpush1.msra.mxu0 0.0
    %2042 = vmatprep.subr.mxu0 0.0
    %2043 = vmatpush1.msra.mxu0 0.0
    %2044 = vmatprep.subr.mxu0 0.0
    %2045 = vmatpush1.msra.mxu0 0.0
    %2046 = vmatprep.subr.mxu0 0.0
    %2047 = vmatpush1.msra.mxu0 0.0
    %2048 = vmatprep.subr.mxu0 0.0
    %2049 = vmatpush1.msra.mxu0 0.0
    %2050 = vmatprep.subr.mxu0 0.0
    %2051 = vmatpush1.msra.mxu0 0.0
    %2052 = vmatprep.subr.mxu0 0.0
    %2053 = vmatpush1.msra.mxu0 0.0
    %2054 = vmatprep.subr.mxu0 0.0
    %2055 = vmatpush1.msra.mxu0 0.0
    %2056 = vmatprep.subr.mxu0 0.0
    %2057 = vmatpush1.msra.mxu0 0.0
    %2058 = vmatprep.subr.mxu0 0.0
    %2059 = vmatpush1.msra.mxu0 0.0
    %2060 = vmatprep.subr.mxu0 0.0
    %2061 = vmatpush1.msra.mxu0 0.0
    %2062 = vmatprep.subr.mxu0 0.0
    %2063 = vmatpush1.msra.mxu0 0.0
    %2064 = vmatprep.subr.mxu0 0.0
    %2065 = vmatpush1.msra.mxu0 0.0
    %2066 = vmatprep.subr.mxu0 0.0
    %2067 = vmatpush1.msra.mxu0 0.0
    %2068 = vmatprep.subr.mxu0 0.0
    %2069 = vmatpush1.msra.mxu0 0.0
    %2070 = vmatprep.subr.mxu0 0.0
    %2071 = vmatpush1.msra.mxu0 0.0
    %2072 = vmatprep.subr.mxu0 0.0
    %2073 = vmatpush1.msra.mxu0 0.0
    %2074 = vmatprep.subr.mxu0 0.0
    %2075 = vmatpush1.msra.mxu0 0.0
    %2076 = vmatprep.mubr.f32.mxu0 0.0
    %2077 = vmatmul.mubr.f32.gmra.mrb[0].mxu0 %v2010
    %v2078 = vpop.f32.mrb[0].mxu0
    %v2079 = vadd.f32 0.0, %v2078
    %v2080 = vpop.f32.mrb[0].mxu0
    %2081 = vdwg.mxu0
    %2083 = vrot.lane.b32.xlu0 %v2006, 64
    %v2084 = vpop.permute.xlu0 %2083
    %v2085 = vsel %vm282, %v2084, 0
    %2087 = vmatprep.subr.mxu0 0.0
    %2088 = vmatpush1.msra.mxu0 %v263
    %2089 = vmatprep.subr.mxu0 0.0
    %2090 = vmatpush1.msra.mxu0 %v264
    %2091 = vmatprep.subr.mxu0 0.0
    %2092 = vmatpush1.msra.mxu0 %v265
    %2093 = vmatprep.subr.mxu0 0.0
    %2094 = vmatpush1.msra.mxu0 %v266
    %2095 = vmatprep.subr.mxu0 0.0
    %2096 = vmatpush1.msra.mxu0 0.0
    %2097 = vmatprep.subr.mxu0 0.0
    %2098 = vmatpush1.msra.mxu0 0.0
    %2099 = vmatprep.subr.mxu0 0.0
    %2100 = vmatpush1.msra.mxu0 0.0
    %2101 = vmatprep.subr.mxu0 0.0
    %2102 = vmatpush1.msra.mxu0 0.0
    %2103 = vmatprep.subr.mxu0 0.0
    %2104 = vmatpush1.msra.mxu0 0.0
    %2105 = vmatprep.subr.mxu0 0.0
    %2106 = vmatpush1.msra.mxu0 0.0
    %2107 = vmatprep.subr.mxu0 0.0
    %2108 = vmatpush1.msra.mxu0 0.0
    %2109 = vmatprep.subr.mxu0 0.0
    %2110 = vmatpush1.msra.mxu0 0.0
    %2111 = vmatprep.subr.mxu0 0.0
    %2112 = vmatpush1.msra.mxu0 0.0
    %2113 = vmatprep.subr.mxu0 0.0
    %2114 = vmatpush1.msra.mxu0 0.0
    %2115 = vmatprep.subr.mxu0 0.0
    %2116 = vmatpush1.msra.mxu0 0.0
    %2117 = vmatprep.subr.mxu0 0.0
    %2118 = vmatpush1.msra.mxu0 0.0
    %2119 = vmatprep.subr.mxu0 0.0
    %2120 = vmatpush1.msra.mxu0 0.0
    %2121 = vmatprep.subr.mxu0 0.0
    %2122 = vmatpush1.msra.mxu0 0.0
    %2123 = vmatprep.subr.mxu0 0.0
    %2124 = vmatpush1.msra.mxu0 0.0
    %2125 = vmatprep.subr.mxu0 0.0
    %2126 = vmatpush1.msra.mxu0 0.0
    %2127 = vmatprep.subr.mxu0 0.0
    %2128 = vmatpush1.msra.mxu0 0.0
    %2129 = vmatprep.subr.mxu0 0.0
    %2130 = vmatpush1.msra.mxu0 0.0
    %2131 = vmatprep.subr.mxu0 0.0
    %2132 = vmatpush1.msra.mxu0 0.0
    %2133 = vmatprep.subr.mxu0 0.0
    %2134 = vmatpush1.msra.mxu0 0.0
    %2135 = vmatprep.subr.mxu0 0.0
    %2136 = vmatpush1.msra.mxu0 0.0
    %2137 = vmatprep.subr.mxu0 0.0
    %2138 = vmatpush1.msra.mxu0 0.0
    %2139 = vmatprep.subr.mxu0 0.0
    %2140 = vmatpush1.msra.mxu0 0.0
    %2141 = vmatprep.subr.mxu0 0.0
    %2142 = vmatpush1.msra.mxu0 0.0
    %2143 = vmatprep.subr.mxu0 0.0
    %2144 = vmatpush1.msra.mxu0 0.0
    %2145 = vmatprep.subr.mxu0 0.0
    %2146 = vmatpush1.msra.mxu0 0.0
    %2147 = vmatprep.subr.mxu0 0.0
    %2148 = vmatpush1.msra.mxu0 0.0
    %2149 = vmatprep.subr.mxu0 0.0
    %2150 = vmatpush1.msra.mxu0 0.0
    %2151 = vmatprep.mubr.f32.mxu0 0.0
    %2152 = vmatmul.mubr.f32.gmra.mrb[0].mxu0 %v2085
    %v2153 = vpop.f32.mrb[0].mxu0
    %v2154 = vadd.f32 %v2079, %v2153
    %v2155 = vpop.f32.mrb[0].mxu0
    %2156 = vdwg.mxu0
    %v2157 = vadd.f32 %v2154, %v276
    %v2158 = vxor.u32 %v2157, 2147483648
    %v2159 = vmul.f32 %v2158, 1.442695
    %v2160 = vpow.pop %v2159
    %v2161 = vadd.f32 %v2160, 1.0
    %v2162 = vrcp.pop %v2161
    %v2163 = vmul.f32 1.0, %v2162
    %v2164 = vtanh.pop %v2157
    %v2165 = vmul.f32 %v2163, %v1905
    %2167 = vrot.lane.b32.xlu0 %v2164, 32
    %v2168 = vpop.permute.xlu0 %2167
    %v2170 = vmul.f32 %v2163, %v2168
    %2172 = vrot.lane.b32.xlu0 %v2170, 32
    %v2173 = vpop.permute.xlu0 %2172
    %v2175 = vadd.f32 %v2165, %v2173
    %v2176 = vtanh.pop %v2175
    %2178 = vrot.lane.b32.xlu0 %v2176, 32
    %v2179 = vpop.permute.xlu0 %2178
    %v2181 = vmul.f32 %v2163, %v2179
    %2182 = vmatprep.subr.mxu0 0.0
    %2183 = vmatpush1.msra.mxu0 %v259
    %2184 = vmatprep.subr.mxu0 0.0
    %2185 = vmatpush1.msra.mxu0 %v260
    %2186 = vmatprep.subr.mxu0 0.0
    %2187 = vmatpush1.msra.mxu0 %v261
    %2188 = vmatprep.subr.mxu0 0.0
    %2189 = vmatpush1.msra.mxu0 %v262
    %2190 = vmatprep.subr.mxu0 0.0
    %2191 = vmatpush1.msra.mxu0 0.0
    %2192 = vmatprep.subr.mxu0 0.0
    %2193 = vmatpush1.msra.mxu0 0.0
    %2194 = vmatprep.subr.mxu0 0.0
    %2195 = vmatpush1.msra.mxu0 0.0
    %2196 = vmatprep.subr.mxu0 0.0
    %2197 = vmatpush1.msra.mxu0 0.0
    %2198 = vmatprep.subr.mxu0 0.0
    %2199 = vmatpush1.msra.mxu0 0.0
    %2200 = vmatprep.subr.mxu0 0.0
    %2201 = vmatpush1.msra.mxu0 0.0
    %2202 = vmatprep.subr.mxu0 0.0
    %2203 = vmatpush1.msra.mxu0 0.0
    %2204 = vmatprep.subr.mxu0 0.0
    %2205 = vmatpush1.msra.mxu0 0.0
    %2206 = vmatprep.subr.mxu0 0.0
    %2207 = vmatpush1.msra.mxu0 0.0
    %2208 = vmatprep.subr.mxu0 0.0
    %2209 = vmatpush1.msra.mxu0 0.0
    %2210 = vmatprep.subr.mxu0 0.0
    %2211 = vmatpush1.msra.mxu0 0.0
    %2212 = vmatprep.subr.mxu0 0.0
    %2213 = vmatpush1.msra.mxu0 0.0
    %2214 = vmatprep.subr.mxu0 0.0
    %2215 = vmatpush1.msra.mxu0 0.0
    %2216 = vmatprep.subr.mxu0 0.0
    %2217 = vmatpush1.msra.mxu0 0.0
    %2218 = vmatprep.subr.mxu0 0.0
    %2219 = vmatpush1.msra.mxu0 0.0
    %2220 = vmatprep.subr.mxu0 0.0
    %2221 = vmatpush1.msra.mxu0 0.0
    %2222 = vmatprep.subr.mxu0 0.0
    %2223 = vmatpush1.msra.mxu0 0.0
    %2224 = vmatprep.subr.mxu0 0.0
    %2225 = vmatpush1.msra.mxu0 0.0
    %2226 = vmatprep.subr.mxu0 0.0
    %2227 = vmatpush1.msra.mxu0 0.0
    %2228 = vmatprep.subr.mxu0 0.0
    %2229 = vmatpush1.msra.mxu0 0.0
    %2230 = vmatprep.subr.mxu0 0.0
    %2231 = vmatpush1.msra.mxu0 0.0
    %2232 = vmatprep.subr.mxu0 0.0
    %2233 = vmatpush1.msra.mxu0 0.0
    %2234 = vmatprep.subr.mxu0 0.0
    %2235 = vmatpush1.msra.mxu0 0.0
    %2236 = vmatprep.subr.mxu0 0.0
    %2237 = vmatpush1.msra.mxu0 0.0
    %2238 = vmatprep.subr.mxu0 0.0
    %2239 = vmatpush1.msra.mxu0 0.0
    %2240 = vmatprep.subr.mxu0 0.0
    %2241 = vmatpush1.msra.mxu0 0.0
    %2242 = vmatprep.subr.mxu0 0.0
    %2243 = vmatpush1.msra.mxu0 0.0
    %2244 = vmatprep.subr.mxu0 0.0
    %2245 = vmatpush1.msra.mxu0 0.0
    %2246 = vmatprep.mubr.f32.mxu0 0.0
    %2247 = vmatmul.mubr.f32.gmra.mrb[0].mxu0 %v2085
    %v2248 = vpop.f32.mrb[0].mxu0
    %v2249 = vadd.f32 0.0, %v2248
    %v2250 = vpop.f32.mrb[0].mxu0
    %2251 = vdwg.mxu0
    %v2252 = vadd.f32 %v258, %v2249
    %v2253 = vxor.u32 %v2252, 2147483648
    %v2254 = vmul.f32 %v2253, 1.442695
    %v2255 = vpow.pop %v2254
    %v2256 = vadd.f32 %v2255, 1.0
    %v2257 = vrcp.pop %v2256
    %v2258 = vmul.f32 1.0, %v2257
    %v2259 = vtanh.pop %v2252
    %v2260 = vmul.f32 %v2258, %v2000
    %2262 = vrot.lane.b32.xlu0 %v2259, 32
    %v2263 = vpop.permute.xlu0 %2262
    %v2265 = vmul.f32 %v2258, %v2263
    %2267 = vrot.lane.b32.xlu0 %v2265, 32
    %v2268 = vpop.permute.xlu0 %2267
    %v2270 = vadd.f32 %v2260, %v2268
    %v2271 = vtanh.pop %v2270
    %2273 = vrot.lane.b32.xlu0 %v2271, 32
    %v2274 = vpop.permute.xlu0 %2273
    %v2276 = vmul.f32 %v2258, %v2274
    %2278 = vrot.lane.b32.xlu0 %v2181, 64
    %v2279 = vpop.permute.xlu0 %2278
    %v2280 = vsel %vm282, %v2279, 0
    %2282 = vmatprep.subr.mxu0 0.0
    %2283 = vmatpush1.msra.mxu0 %v267
    %2284 = vmatprep.subr.mxu0 0.0
    %2285 = vmatpush1.msra.mxu0 %v268
    %2286 = vmatprep.subr.mxu0 0.0
    %2287 = vmatpush1.msra.mxu0 %v269
    %2288 = vmatprep.subr.mxu0 0.0
    %2289 = vmatpush1.msra.mxu0 %v270
    %2290 = vmatprep.subr.mxu0 0.0
    %2291 = vmatpush1.msra.mxu0 0.0
    %2292 = vmatprep.subr.mxu0 0.0
    %2293 = vmatpush1.msra.mxu0 0.0
    %2294 = vmatprep.subr.mxu0 0.0
    %2295 = vmatpush1.msra.mxu0 0.0
    %2296 = vmatprep.subr.mxu0 0.0
    %2297 = vmatpush1.msra.mxu0 0.0
    %2298 = vmatprep.subr.mxu0 0.0
    %2299 = vmatpush1.msra.mxu0 0.0
    %2300 = vmatprep.subr.mxu0 0.0
    %2301 = vmatpush1.msra.mxu0 0.0
    %2302 = vmatprep.subr.mxu0 0.0
    %2303 = vmatpush1.msra.mxu0 0.0
    %2304 = vmatprep.subr.mxu0 0.0
    %2305 = vmatpush1.msra.mxu0 0.0
    %2306 = vmatprep.subr.mxu0 0.0
    %2307 = vmatpush1.msra.mxu0 0.0
    %2308 = vmatprep.subr.mxu0 0.0
    %2309 = vmatpush1.msra.mxu0 0.0
    %2310 = vmatprep.subr.mxu0 0.0
    %2311 = vmatpush1.msra.mxu0 0.0
    %2312 = vmatprep.subr.mxu0 0.0
    %2313 = vmatpush1.msra.mxu0 0.0
    %2314 = vmatprep.subr.mxu0 0.0
    %2315 = vmatpush1.msra.mxu0 0.0
    %2316 = vmatprep.subr.mxu0 0.0
    %2317 = vmatpush1.msra.mxu0 0.0
    %2318 = vmatprep.subr.mxu0 0.0
    %2319 = vmatpush1.msra.mxu0 0.0
    %2320 = vmatprep.subr.mxu0 0.0
    %2321 = vmatpush1.msra.mxu0 0.0
    %2322 = vmatprep.subr.mxu0 0.0
    %2323 = vmatpush1.msra.mxu0 0.0
    %2324 = vmatprep.subr.mxu0 0.0
    %2325 = vmatpush1.msra.mxu0 0.0
    %2326 = vmatprep.subr.mxu0 0.0
    %2327 = vmatpush1.msra.mxu0 0.0
    %2328 = vmatprep.subr.mxu0 0.0
    %2329 = vmatpush1.msra.mxu0 0.0
    %2330 = vmatprep.subr.mxu0 0.0
    %2331 = vmatpush1.msra.mxu0 0.0
    %2332 = vmatprep.subr.mxu0 0.0
    %2333 = vmatpush1.msra.mxu0 0.0
    %2334 = vmatprep.subr.mxu0 0.0
    %2335 = vmatpush1.msra.mxu0 0.0
    %2336 = vmatprep.subr.mxu0 0.0
    %2337 = vmatpush1.msra.mxu0 0.0
    %2338 = vmatprep.subr.mxu0 0.0
    %2339 = vmatpush1.msra.mxu0 0.0
    %2340 = vmatprep.subr.mxu0 0.0
    %2341 = vmatpush1.msra.mxu0 0.0
    %2342 = vmatprep.subr.mxu0 0.0
    %2343 = vmatpush1.msra.mxu0 0.0
    %2344 = vmatprep.subr.mxu0 0.0
    %2345 = vmatpush1.msra.mxu0 0.0
    %2346 = vmatprep.mubr.f32.mxu0 0.0
    %2347 = vmatmul.mubr.f32.gmra.mrb[0].mxu0 %v2280
    %v2348 = vpop.f32.mrb[0].mxu0
    %v2349 = vadd.f32 0.0, %v2348
    %v2350 = vpop.f32.mrb[0].mxu0
    %2351 = vdwg.mxu0
    %2353 = vrot.lane.b32.xlu0 %v2276, 64
    %v2354 = vpop.permute.xlu0 %2353
    %v2355 = vsel %vm282, %v2354, 0
    %2357 = vmatprep.subr.mxu0 0.0
    %2358 = vmatpush1.msra.mxu0 %v263
    %2359 = vmatprep.subr.mxu0 0.0
    %2360 = vmatpush1.msra.mxu0 %v264
    %2361 = vmatprep.subr.mxu0 0.0
    %2362 = vmatpush1.msra.mxu0 %v265
    %2363 = vmatprep.subr.mxu0 0.0
    %2364 = vmatpush1.msra.mxu0 %v266
    %2365 = vmatprep.subr.mxu0 0.0
    %2366 = vmatpush1.msra.mxu0 0.0
    %2367 = vmatprep.subr.mxu0 0.0
    %2368 = vmatpush1.msra.mxu0 0.0
    %2369 = vmatprep.subr.mxu0 0.0
    %2370 = vmatpush1.msra.mxu0 0.0
    %2371 = vmatprep.subr.mxu0 0.0
    %2372 = vmatpush1.msra.mxu0 0.0
    %2373 = vmatprep.subr.mxu0 0.0
    %2374 = vmatpush1.msra.mxu0 0.0
    %2375 = vmatprep.subr.mxu0 0.0
    %2376 = vmatpush1.msra.mxu0 0.0
    %2377 = vmatprep.subr.mxu0 0.0
    %2378 = vmatpush1.msra.mxu0 0.0
    %2379 = vmatprep.subr.mxu0 0.0
    %2380 = vmatpush1.msra.mxu0 0.0
    %2381 = vmatprep.subr.mxu0 0.0
    %2382 = vmatpush1.msra.mxu0 0.0
    %2383 = vmatprep.subr.mxu0 0.0
    %2384 = vmatpush1.msra.mxu0 0.0
    %2385 = vmatprep.subr.mxu0 0.0
    %2386 = vmatpush1.msra.mxu0 0.0
    %2387 = vmatprep.subr.mxu0 0.0
    %2388 = vmatpush1.msra.mxu0 0.0
    %2389 = vmatprep.subr.mxu0 0.0
    %2390 = vmatpush1.msra.mxu0 0.0
    %2391 = vmatprep.subr.mxu0 0.0
    %2392 = vmatpush1.msra.mxu0 0.0
    %2393 = vmatprep.subr.mxu0 0.0
    %2394 = vmatpush1.msra.mxu0 0.0
    %2395 = vmatprep.subr.mxu0 0.0
    %2396 = vmatpush1.msra.mxu0 0.0
    %2397 = vmatprep.subr.mxu0 0.0
    %2398 = vmatpush1.msra.mxu0 0.0
    %2399 = vmatprep.subr.mxu0 0.0
    %2400 = vmatpush1.msra.mxu0 0.0
    %2401 = vmatprep.subr.mxu0 0.0
    %2402 = vmatpush1.msra.mxu0 0.0
    %2403 = vmatprep.subr.mxu0 0.0
    %2404 = vmatpush1.msra.mxu0 0.0
    %2405 = vmatprep.subr.mxu0 0.0
    %2406 = vmatpush1.msra.mxu0 0.0
    %2407 = vmatprep.subr.mxu0 0.0
    %2408 = vmatpush1.msra.mxu0 0.0
    %2409 = vmatprep.subr.mxu0 0.0
    %2410 = vmatpush1.msra.mxu0 0.0
    %2411 = vmatprep.subr.mxu0 0.0
    %2412 = vmatpush1.msra.mxu0 0.0
    %2413 = vmatprep.subr.mxu0 0.0
    %2414 = vmatpush1.msra.mxu0 0.0
    %2415 = vmatprep.subr.mxu0 0.0
    %2416 = vmatpush1.msra.mxu0 0.0
    %2417 = vmatprep.subr.mxu0 0.0
    %2418 = vmatpush1.msra.mxu0 0.0
    %2419 = vmatprep.subr.mxu0 0.0
    %2420 = vmatpush1.msra.mxu0 0.0
    %2421 = vmatprep.mubr.f32.mxu0 0.0
    %2422 = vmatmul.mubr.f32.gmra.mrb[0].mxu0 %v2355
    %v2423 = vpop.f32.mrb[0].mxu0
    %v2424 = vadd.f32 %v2349, %v2423
    %v2425 = vpop.f32.mrb[0].mxu0
    %2426 = vdwg.mxu0
    %v2427 = vadd.f32 %v2424, %v276
    %v2428 = vxor.u32 %v2427, 2147483648
    %v2429 = vmul.f32 %v2428, 1.442695
    %v2430 = vpow.pop %v2429
    %v2431 = vadd.f32 %v2430, 1.0
    %v2432 = vrcp.pop %v2431
    %v2433 = vmul.f32 1.0, %v2432
    %v2434 = vtanh.pop %v2427
    %v2435 = vmul.f32 %v2433, %v2175
    %2437 = vrot.lane.b32.xlu0 %v2434, 32
    %v2438 = vpop.permute.xlu0 %2437
    %v2440 = vmul.f32 %v2433, %v2438
    %2442 = vrot.lane.b32.xlu0 %v2440, 32
    %v2443 = vpop.permute.xlu0 %2442
    %v2445 = vadd.f32 %v2435, %v2443
    %v2446 = vtanh.pop %v2445
    %2448 = vrot.lane.b32.xlu0 %v2446, 32
    %v2449 = vpop.permute.xlu0 %2448
    %v2451 = vmul.f32 %v2433, %v2449
    %2453 = vst.msk [vmem:[#allocation2] sm:$0xff] %vm282, %v2354
    %2455 = vrot.lane.b32.xlu0 %v2270, 96
    %v2456 = vpop.permute.xlu0 %2455
    %2458 = vst.msk [vmem:[#allocation3] sm:$0xff] %vm282, %v2456
    %2460 = vrot.lane.b32.xlu0 %v2451, 64
    %v2461 = vpop.permute.xlu0 %2460
    %2463 = vst.msk [vmem:[#allocation4] sm:$0xff] %vm282, %v2461
    %2465 = vrot.lane.b32.xlu0 %v2445, 96
    %v2466 = vpop.permute.xlu0 %2465
    %2468 = vst.msk [vmem:[#allocation5] sm:$0xff] %vm282, %v2466
    // Predicated region
    $region54: #{tpu_custom_call.1} parent=1 // pred_check
      %p2469 = pneg %p95
    $region55: #{tpu_custom_call.1} parent=1 // pred_check_branch
      %2471 = sbr.rel (%p2469) target = $region57
    $region56: #{tpu_custom_call.1} parent=1 // pred_region
      %2472 = vst.msk [vmem:[#allocation15] sm:$0xff] %vm282, %v2461
    $region57: #{tpu_custom_call.1} parent=1 // pred_fallthru
      _
    // Predicated region
    $region58: #{tpu_custom_call.1} parent=1 // pred_check
      _
    $region59: #{tpu_custom_call.1} parent=1 // pred_check_branch
      %2474 = sbr.rel (0) target = $region61
    $region60: #{tpu_custom_call.1} parent=1 // pred_region
      %s2476 = ssub.s32 128, 128
      %2477 = vsyncadd [#allocation8], %s2476
      %s2479 = sshll.u32 [#allocation15], 4
      %s2480 = int_to_ptr.vmem [resolvable:$true] %s2479
      %2482 = dma.vmem_to_hbm [thread:$0]  %s2480, 128, %s7, [#allocation8]
    $region61: #{tpu_custom_call.1} parent=1 // pred_fallthru
      _
    // Predicated region
    $region62: #{tpu_custom_call.1} parent=1 // pred_check
      _
    $region63: #{tpu_custom_call.1} parent=1 // pred_check_branch
      %2484 = sbr.rel (0) target = $region65
    $region64: #{tpu_custom_call.1} parent=1 // pred_region
      %2485 = dma.done [#allocation8], 128
    $region65: #{tpu_custom_call.1} parent=1 // pred_fallthru
      _
    %2486 = vsyncpa [#allocation7], 1
    %2487 = vsyncpa [#allocation10], 1
    %2488 = vsyncpa [#allocation13], 1
    %2489 = vsyncpa [#allocation8], 1

</llo_original>
